<compile_context>
chip_gen: v6e
topology: v6e:2x2x1
jax: 0.10.0
libtpu: 0.0.40
codegen_flags: <defaults>
</compile_context>

<pallas_src>
import functools

import jax
import jax.numpy as jnp
from jax import lax
from jax.experimental import pallas as pl
from jax.experimental.pallas import tpu as pltpu


def _lflb_stack_kernel(x_ref, *refs, cfgs):
    """Fused LFLB stack for one image.

    x_ref : (1, H, W, Cin) bf16 NHWC input block
    refs  : (w_0, s_0, b_0, ..., w_{L-1}, s_{L-1}, b_{L-1}, o_ref)
            w_i : (KH*KW*Cin_i, Cout_i) bf16 flattened HWIO weights
            s_i, b_i : (1, Cout_i) f32 folded BN scale / (BN+conv) bias
    o_ref : (1, Ho_last, Wo_last*Cout_last) f32
    """
    o_ref = refs[-1]
    x = x_ref[...][0]                                   # (H, W, Cin) bf16 value
    y = None

    for li, c in enumerate(cfgs):
        w_ref, s_ref, b_ref = refs[3 * li], refs[3 * li + 1], refs[3 * li + 2]
        KH, KW, Cin, Cout = c["KH"], c["KW"], c["Cin"], c["Cout"]
        ph, pw = c["pad_h"], c["pad_w"]
        H, W = c["H"], c["W"]
        Hc, Wc, Ho, Wo = c["Hc"], c["Wc"], c["Ho"], c["Wo"]

        # Spatial halo pad in VMEM (value concatenate) -- no extra HBM pass.
        if pw:
            zc = jnp.zeros((H, pw, Cin), x.dtype)
            x = jnp.concatenate([zc, x, zc], axis=1)
        if ph:
            zr = jnp.zeros((ph, W + 2 * pw, Cin), x.dtype)
            x = jnp.concatenate([zr, x, zr], axis=0)

        # Conv as KH*KW accumulating (bf16 x bf16 -> f32) matmuls over shifted,
        # un-strided views.  TODO(synk): stride_cnn != (1, 1) is not specialized.
        w = w_ref[...]                                  # (KH*KW*Cin, Cout) bf16
        acc = jnp.zeros((Hc * Wc, Cout), jnp.float32)
        for kh in range(KH):
            for kw in range(KW):
                patch = x[kh:kh + Hc, kw:kw + Wc, :].reshape(Hc * Wc, Cin)
                tap = w[(kh * KW + kw) * Cin:(kh * KW + kw + 1) * Cin, :]
                acc = acc + jnp.dot(patch, tap,
                                    preferred_element_type=jnp.float32)

        # Folded conv-bias + BatchNorm (running stats) + ReLU, in f32.
        y = jnp.maximum(acc * s_ref[...] + b_ref[...], 0.0)   # (Hc*Wc, Cout)

        # 2x2 / stride-2 / pad-0 max pool (floors odd dims like PyTorch).
        # TODO(synk): pool sizes other than (2,2)/stride 2 are not specialized.
        y = y.reshape(Hc, Wc, Cout)
        y = y[:, :2 * Wo, :].reshape(Hc, Wo, 2, Cout)
        y = jnp.maximum(y[:, :, 0, :], y[:, :, 1, :])          # pool over W
        y = y[:2 * Ho].reshape(Ho, 2, Wo, Cout)
        y = jnp.maximum(y[:, 0], y[:, 1])                      # pool over H

        if li + 1 < len(cfgs):
            x = y.astype(jnp.bfloat16)     # bf16 inter-layer activation (VMEM only)

    last = cfgs[-1]
    # Lane-dense store: flatten (Wo, Cout) into the minor dim.
    o_ref[...] = y.reshape(1, last["Ho"], last["Wo"] * last["Cout"])


def _fold_lflb_params(conv_w_oihw, conv_b, gamma, beta, run_mean, run_var, eps):
    """Fold conv bias + BatchNorm (inference / running stats) into scale & bias."""
    Cout, Cin, KH, KW = conv_w_oihw.shape
    w = jnp.transpose(conv_w_oihw, (2, 3, 1, 0)).astype(jnp.float32)   # HWIO
    w2 = w.reshape(KH * KW * Cin, Cout).astype(jnp.bfloat16)
    scale = gamma / jnp.sqrt(run_var + eps)
    bias = beta - run_mean * scale + conv_b * scale
    return (w2,
            scale.reshape(1, Cout).astype(jnp.float32),
            bias.reshape(1, Cout).astype(jnp.float32))


def spectrogram_model_forward(x_nchw, layer_params, *, eps=1e-5):
    """SpectrogramModel.forward: chained LFLB layers + torch.flatten(x, 1, 2).

    layer_params: list of dicts with conv_w (OIHW), conv_b, gamma, beta,
    run_mean, run_var.  Specialized to stride_cnn=(1,1) and 2x2/stride-2/pad-0
    max pool (what SpectrogramModel builds for kernel_size_pool=(2,2)).
    TODO(synk): BatchNorm2d is folded with running stats (eval mode only);
    training-mode batch statistics are not computed in-kernel.
    """
    N, Cin, H, W = x_nchw.shape
    # One model-boundary pass: NCHW f32 -> NHWC bf16 (halves HBM read bytes).
    x = jnp.transpose(x_nchw, (0, 2, 3, 1)).astype(jnp.bfloat16)

    cfgs, flat_params = [], []
    in_specs = [pl.BlockSpec((1, H, W, Cin), lambda n: (n, 0, 0, 0))]
    h, w_d, cin = H, W, Cin
    for p in layer_params:
        cout, cin_l, KH, KW = p["conv_w"].shape
        assert cin_l == cin
        ph, pw = (KH - 1) // 2, (KW - 1) // 2          # module's padding_cnn
        hc = h + 2 * ph - KH + 1                        # conv output (stride 1)
        wc = w_d + 2 * pw - KW + 1
        ho, wo = hc // 2, wc // 2                       # MaxPool2d floors odd dims
        w2, s2, b2 = _fold_lflb_params(p["conv_w"], p["conv_b"], p["gamma"],
                                       p["beta"], p["run_mean"], p["run_var"], eps)
        flat_params += [w2, s2, b2]
        in_specs += [pl.BlockSpec(w2.shape, lambda n: (0, 0)),
                     pl.BlockSpec((1, cout), lambda n: (0, 0)),
                     pl.BlockSpec((1, cout), lambda n: (0, 0))]
        cfgs.append(dict(KH=KH, KW=KW, Cin=cin, Cout=cout, pad_h=ph, pad_w=pw,
                         H=h, W=w_d, Hc=hc, Wc=wc, Ho=ho, Wo=wo))
        h, w_d, cin = ho, wo, cout

    # TODO(synk): for large spectrograms (e.g. 128 x ~1000 frames) whose per-image
    # working set exceeds VMEM (v7x: 64 MiB), add an H-tiled grid axis with a
    # (KH-1)-row halo instead of this fully fused per-image kernel.
    out = pl.pallas_call(
        functools.partial(_lflb_stack_kernel, cfgs=tuple(cfgs)),
        out_shape=jax.ShapeDtypeStruct((N, h, w_d * cin), jnp.float32),
        grid=(N,),
        in_specs=in_specs,
        out_specs=pl.BlockSpec((1, h, w_d * cin), lambda n: (n, 0, 0)),
        compiler_params=pltpu.CompilerParams(
            dimension_semantics=("parallel",),   # images independent (v7x 2 TCs)
            vmem_limit_bytes=32 * 1024 * 1024,   # ample for the fused small model
        ),
    )(x, *flat_params)

    # Model boundary: (N, Ho, Wo*C) -> NHWC -> NCHW -> torch.flatten(x, 1, 2).
    out = out.reshape(N, h, w_d, cin)
    out = jnp.transpose(out, (0, 3, 1, 2))              # (N, C, H, W)
    return out.reshape(N, cin * h, w_d)


# ------------------------- pure-JAX reference ------------------------------
def _lflb_reference(x, conv_w, conv_b, gamma, beta, run_mean, run_var, pad,
                    eps=1e-5):
    # Emulate the kernel's bf16 matmul operands (f32 accumulation).
    xw = x.astype(jnp.bfloat16).astype(jnp.float32)
    ww = conv_w.astype(jnp.bfloat16).astype(jnp.float32)
    y = lax.conv_general_dilated(xw, ww, window_strides=(1, 1),
                                 padding=((pad[0], pad[0]), (pad[1], pad[1])),
                                 dimension_numbers=("NCHW", "OIHW", "NCHW"))
    y = y + conv_b[None, :, None, None]
    scale = gamma / jnp.sqrt(run_var + eps)
    y = y * scale[None, :, None, None] + (beta - run_mean * scale)[None, :, None, None]
    y = jnp.maximum(y, 0.0)
    y = lax.reduce_window(y, -jnp.inf, lax.max,
                          window_dimensions=(1, 1, 2, 2),
                          window_strides=(1, 1, 2, 2), padding="VALID")
    return y


def spectrogram_model_reference(x_nchw, layer_params, eps=1e-5):
    x = x_nchw.astype(jnp.float32)
    for p in layer_params:
        KH, KW = p["conv_w"].shape[2], p["conv_w"].shape[3]
        x = _lflb_reference(x, p["conv_w"], p["conv_b"], p["gamma"], p["beta"],
                            p["run_mean"], p["run_var"],
                            ((KH - 1) // 2, (KW - 1) // 2), eps)
    N, C, H, W = x.shape
    return x.reshape(N, C * H, W)


if __name__ == "__main__":
    # SpectrogramModel(in_channels=4, out_channels=[8, 16],
    #                  kernel_size_cnn=(3, 3), stride_cnn=(1, 1),
    #                  kernel_size_pool=(2, 2), stride_pool=2)
    N, Cin, H, W = 2, 4, 16, 16
    out_channels = [8, 16]
    K = 3

    key = jax.random.PRNGKey(0)
    key, kx = jax.random.split(key)
    x = jax.random.normal(kx, (N, Cin, H, W), jnp.float32)

    layer_params = []
    c_in = Cin
    for c_out in out_channels:
        key, k1, k2, k3, k4, k5, k6 = jax.random.split(key, 7)
        bound = 1.0 / (c_in * K * K) ** 0.5
        layer_params.append(dict(
            conv_w=jax.random.uniform(k1, (c_out, c_in, K, K), jnp.float32, -bound, bound),
            conv_b=jax.random.uniform(k2, (c_out,), jnp.float32, -bound, bound),
            gamma=jax.random.uniform(k3, (c_out,), jnp.float32, 0.5, 1.5),
            beta=jax.random.uniform(k4, (c_out,), jnp.float32, -0.5, 0.5),
            run_mean=jax.random.uniform(k5, (c_out,), jnp.float32, -0.1, 0.1),
            run_var=jax.random.uniform(k6, (c_out,), jnp.float32, 0.8, 1.2),
        ))
        c_in = c_out

    out = spectrogram_model_forward(x, layer_params)
    out = jax.block_until_ready(out)

    ref = spectrogram_model_reference(x, layer_params)
    assert out.shape == ref.shape, (out.shape, ref.shape)
    # Tolerance covers bf16 operand rounding (and the bf16 inter-layer cast)
    # accumulated across the two LFLB layers.
    max_err = float(jnp.max(jnp.abs(out - ref)))
    assert max_err < 1e-2, f"max_err={max_err}"

    print("KERNEL_OK")
</pallas_src>

<mosaic_0001>
module attributes {stable_mosaic.version = 11 : i64} {
  func.func @_lflb_stack_kernel(%arg0: i32, %arg1: memref<1x16x16x4xbf16, #tpu.memory_space<vmem>>, %arg2: memref<36x8xbf16, #tpu.memory_space<vmem>>, %arg3: memref<1x8xf32, #tpu.memory_space<vmem>>, %arg4: memref<1x8xf32, #tpu.memory_space<vmem>>, %arg5: memref<72x16xbf16, #tpu.memory_space<vmem>>, %arg6: memref<1x16xf32, #tpu.memory_space<vmem>>, %arg7: memref<1x16xf32, #tpu.memory_space<vmem>>, %arg8: memref<1x4x64xf32, #tpu.memory_space<vmem>>) attributes {dimension_semantics = [#tpu.dimension_semantics<parallel>], iteration_bounds = array<i64: 2>, scalar_prefetch = 0 : i64, scratch_operands = 0 : i64, tpu.core_type = #tpu.core_type<tc>, window_params = [{transform_indices = @transform_0, window_bounds = array<i64: 1, 16, 16, 4>}, {pipeline_mode = #tpu.pipeline_mode<synchronous>, transform_indices = @transform_1, window_bounds = array<i64: 36, 8>}, {pipeline_mode = #tpu.pipeline_mode<synchronous>, transform_indices = @transform_2, window_bounds = array<i64: 1, 8>}, {pipeline_mode = #tpu.pipeline_mode<synchronous>, transform_indices = @transform_3, window_bounds = array<i64: 1, 8>}, {pipeline_mode = #tpu.pipeline_mode<synchronous>, transform_indices = @transform_4, window_bounds = array<i64: 72, 16>}, {pipeline_mode = #tpu.pipeline_mode<synchronous>, transform_indices = @transform_5, window_bounds = array<i64: 1, 16>}, {pipeline_mode = #tpu.pipeline_mode<synchronous>, transform_indices = @transform_6, window_bounds = array<i64: 1, 16>}, {transform_indices = @transform_7, window_bounds = array<i64: 1, 4, 64>}]} {
    %c0 = arith.constant 0 : index
    %c0_0 = arith.constant 0 : index
    %c0_1 = arith.constant 0 : index
    %c0_2 = arith.constant 0 : index
    %0 = vector.load %arg1[%c0, %c0_0, %c0_1, %c0_2] : memref<1x16x16x4xbf16, #tpu.memory_space<vmem>>, vector<1x16x16x4xbf16>
    %1 = vector.shape_cast %0 : vector<1x16x16x4xbf16> to vector<16x16x4xbf16>
    %cst = arith.constant 0.000000e+00 : bf16
    %2 = vector.broadcast %cst : bf16 to vector<16x1x4xbf16>
    %3 = tpu.concatenate %2, %1, %2 in 1 : vector<16x1x4xbf16>, vector<16x16x4xbf16>, vector<16x1x4xbf16> -> vector<16x18x4xbf16>
    %cst_3 = arith.constant 0.000000e+00 : bf16
    %4 = vector.broadcast %cst_3 : bf16 to vector<1x18x4xbf16>
    %5 = tpu.concatenate %4, %3, %4 in 0 : vector<1x18x4xbf16>, vector<16x18x4xbf16>, vector<1x18x4xbf16> -> vector<18x18x4xbf16>
    %c0_4 = arith.constant 0 : index
    %c0_5 = arith.constant 0 : index
    %6 = vector.load %arg2[%c0_4, %c0_5] : memref<36x8xbf16, #tpu.memory_space<vmem>>, vector<36x8xbf16>
    %cst_6 = arith.constant 0.000000e+00 : f32
    %7 = vector.broadcast %cst_6 : f32 to vector<256x8xf32>
    %8 = vector.extract_strided_slice %5 {offsets = [0, 0, 0], sizes = [16, 16, 4], strides = [1, 1, 1]} : vector<18x18x4xbf16> to vector<16x16x4xbf16>
    %9 = vector.shape_cast %8 : vector<16x16x4xbf16> to vector<256x4xbf16>
    %10 = vector.extract_strided_slice %6 {offsets = [0, 0], sizes = [4, 8], strides = [1, 1]} : vector<36x8xbf16> to vector<4x8xbf16>
    %cst_7 = arith.constant dense<0.000000e+00> : vector<256x8xf32>
    %11 = tpu.matmul %9, %10, %cst_7 {dimension_numbers = #tpu.dot_dimension_numbers<[1], [0], [0], [1], [0, 0, 1, 1], [], []>} : vector<256x4xbf16>, vector<4x8xbf16>, vector<256x8xf32> -> vector<256x8xf32>
    %12 = arith.addf %7, %11 : vector<256x8xf32>
    %13 = vector.extract_strided_slice %5 {offsets = [0, 1, 0], sizes = [16, 16, 4], strides = [1, 1, 1]} : vector<18x18x4xbf16> to vector<16x16x4xbf16>
    %14 = vector.shape_cast %13 : vector<16x16x4xbf16> to vector<256x4xbf16>
    %15 = vector.extract_strided_slice %6 {offsets = [4, 0], sizes = [4, 8], strides = [1, 1]} : vector<36x8xbf16> to vector<4x8xbf16>
    %cst_8 = arith.constant dense<0.000000e+00> : vector<256x8xf32>
    %16 = tpu.matmul %14, %15, %cst_8 {dimension_numbers = #tpu.dot_dimension_numbers<[1], [0], [0], [1], [0, 0, 1, 1], [], []>} : vector<256x4xbf16>, vector<4x8xbf16>, vector<256x8xf32> -> vector<256x8xf32>
    %17 = arith.addf %12, %16 : vector<256x8xf32>
    %18 = vector.extract_strided_slice %5 {offsets = [0, 2, 0], sizes = [16, 16, 4], strides = [1, 1, 1]} : vector<18x18x4xbf16> to vector<16x16x4xbf16>
    %19 = vector.shape_cast %18 : vector<16x16x4xbf16> to vector<256x4xbf16>
    %20 = vector.extract_strided_slice %6 {offsets = [8, 0], sizes = [4, 8], strides = [1, 1]} : vector<36x8xbf16> to vector<4x8xbf16>
    %cst_9 = arith.constant dense<0.000000e+00> : vector<256x8xf32>
    %21 = tpu.matmul %19, %20, %cst_9 {dimension_numbers = #tpu.dot_dimension_numbers<[1], [0], [0], [1], [0, 0, 1, 1], [], []>} : vector<256x4xbf16>, vector<4x8xbf16>, vector<256x8xf32> -> vector<256x8xf32>
    %22 = arith.addf %17, %21 : vector<256x8xf32>
    %23 = vector.extract_strided_slice %5 {offsets = [1, 0, 0], sizes = [16, 16, 4], strides = [1, 1, 1]} : vector<18x18x4xbf16> to vector<16x16x4xbf16>
    %24 = vector.shape_cast %23 : vector<16x16x4xbf16> to vector<256x4xbf16>
    %25 = vector.extract_strided_slice %6 {offsets = [12, 0], sizes = [4, 8], strides = [1, 1]} : vector<36x8xbf16> to vector<4x8xbf16>
    %cst_10 = arith.constant dense<0.000000e+00> : vector<256x8xf32>
    %26 = tpu.matmul %24, %25, %cst_10 {dimension_numbers = #tpu.dot_dimension_numbers<[1], [0], [0], [1], [0, 0, 1, 1], [], []>} : vector<256x4xbf16>, vector<4x8xbf16>, vector<256x8xf32> -> vector<256x8xf32>
    %27 = arith.addf %22, %26 : vector<256x8xf32>
    %28 = vector.extract_strided_slice %5 {offsets = [1, 1, 0], sizes = [16, 16, 4], strides = [1, 1, 1]} : vector<18x18x4xbf16> to vector<16x16x4xbf16>
    %29 = vector.shape_cast %28 : vector<16x16x4xbf16> to vector<256x4xbf16>
    %30 = vector.extract_strided_slice %6 {offsets = [16, 0], sizes = [4, 8], strides = [1, 1]} : vector<36x8xbf16> to vector<4x8xbf16>
    %cst_11 = arith.constant dense<0.000000e+00> : vector<256x8xf32>
    %31 = tpu.matmul %29, %30, %cst_11 {dimension_numbers = #tpu.dot_dimension_numbers<[1], [0], [0], [1], [0, 0, 1, 1], [], []>} : vector<256x4xbf16>, vector<4x8xbf16>, vector<256x8xf32> -> vector<256x8xf32>
    %32 = arith.addf %27, %31 : vector<256x8xf32>
    %33 = vector.extract_strided_slice %5 {offsets = [1, 2, 0], sizes = [16, 16, 4], strides = [1, 1, 1]} : vector<18x18x4xbf16> to vector<16x16x4xbf16>
    %34 = vector.shape_cast %33 : vector<16x16x4xbf16> to vector<256x4xbf16>
    %35 = vector.extract_strided_slice %6 {offsets = [20, 0], sizes = [4, 8], strides = [1, 1]} : vector<36x8xbf16> to vector<4x8xbf16>
    %cst_12 = arith.constant dense<0.000000e+00> : vector<256x8xf32>
    %36 = tpu.matmul %34, %35, %cst_12 {dimension_numbers = #tpu.dot_dimension_numbers<[1], [0], [0], [1], [0, 0, 1, 1], [], []>} : vector<256x4xbf16>, vector<4x8xbf16>, vector<256x8xf32> -> vector<256x8xf32>
    %37 = arith.addf %32, %36 : vector<256x8xf32>
    %38 = vector.extract_strided_slice %5 {offsets = [2, 0, 0], sizes = [16, 16, 4], strides = [1, 1, 1]} : vector<18x18x4xbf16> to vector<16x16x4xbf16>
    %39 = vector.shape_cast %38 : vector<16x16x4xbf16> to vector<256x4xbf16>
    %40 = vector.extract_strided_slice %6 {offsets = [24, 0], sizes = [4, 8], strides = [1, 1]} : vector<36x8xbf16> to vector<4x8xbf16>
    %cst_13 = arith.constant dense<0.000000e+00> : vector<256x8xf32>
    %41 = tpu.matmul %39, %40, %cst_13 {dimension_numbers = #tpu.dot_dimension_numbers<[1], [0], [0], [1], [0, 0, 1, 1], [], []>} : vector<256x4xbf16>, vector<4x8xbf16>, vector<256x8xf32> -> vector<256x8xf32>
    %42 = arith.addf %37, %41 : vector<256x8xf32>
    %43 = vector.extract_strided_slice %5 {offsets = [2, 1, 0], sizes = [16, 16, 4], strides = [1, 1, 1]} : vector<18x18x4xbf16> to vector<16x16x4xbf16>
    %44 = vector.shape_cast %43 : vector<16x16x4xbf16> to vector<256x4xbf16>
    %45 = vector.extract_strided_slice %6 {offsets = [28, 0], sizes = [4, 8], strides = [1, 1]} : vector<36x8xbf16> to vector<4x8xbf16>
    %cst_14 = arith.constant dense<0.000000e+00> : vector<256x8xf32>
    %46 = tpu.matmul %44, %45, %cst_14 {dimension_numbers = #tpu.dot_dimension_numbers<[1], [0], [0], [1], [0, 0, 1, 1], [], []>} : vector<256x4xbf16>, vector<4x8xbf16>, vector<256x8xf32> -> vector<256x8xf32>
    %47 = arith.addf %42, %46 : vector<256x8xf32>
    %48 = vector.extract_strided_slice %5 {offsets = [2, 2, 0], sizes = [16, 16, 4], strides = [1, 1, 1]} : vector<18x18x4xbf16> to vector<16x16x4xbf16>
    %49 = vector.shape_cast %48 : vector<16x16x4xbf16> to vector<256x4xbf16>
    %50 = vector.extract_strided_slice %6 {offsets = [32, 0], sizes = [4, 8], strides = [1, 1]} : vector<36x8xbf16> to vector<4x8xbf16>
    %cst_15 = arith.constant dense<0.000000e+00> : vector<256x8xf32>
    %51 = tpu.matmul %49, %50, %cst_15 {dimension_numbers = #tpu.dot_dimension_numbers<[1], [0], [0], [1], [0, 0, 1, 1], [], []>} : vector<256x4xbf16>, vector<4x8xbf16>, vector<256x8xf32> -> vector<256x8xf32>
    %52 = arith.addf %47, %51 : vector<256x8xf32>
    %c0_16 = arith.constant 0 : index
    %c0_17 = arith.constant 0 : index
    %53 = vector.load %arg3[%c0_16, %c0_17] : memref<1x8xf32, #tpu.memory_space<vmem>>, vector<1x8xf32>
    %54 = vector.broadcast %53 : vector<1x8xf32> to vector<256x8xf32>
    %55 = arith.mulf %52, %54 : vector<256x8xf32>
    %c0_18 = arith.constant 0 : index
    %c0_19 = arith.constant 0 : index
    %56 = vector.load %arg4[%c0_18, %c0_19] : memref<1x8xf32, #tpu.memory_space<vmem>>, vector<1x8xf32>
    %57 = vector.broadcast %56 : vector<1x8xf32> to vector<256x8xf32>
    %58 = arith.addf %55, %57 : vector<256x8xf32>
    %cst_20 = arith.constant 0.000000e+00 : f32
    %59 = vector.broadcast %cst_20 : f32 to vector<256x8xf32>
    %60 = arith.maximumf %58, %59 : vector<256x8xf32>
    %61 = vector.shape_cast %60 : vector<256x8xf32> to vector<16x16x8xf32>
    %62 = vector.shape_cast %61 : vector<16x16x8xf32> to vector<16x8x2x8xf32>
    %63 = vector.extract_strided_slice %62 {offsets = [0, 0, 0, 0], sizes = [16, 8, 1, 8], strides = [1, 1, 1, 1]} : vector<16x8x2x8xf32> to vector<16x8x1x8xf32>
    %64 = vector.shape_cast %63 : vector<16x8x1x8xf32> to vector<16x8x8xf32>
    %65 = vector.extract_strided_slice %62 {offsets = [0, 0, 1, 0], sizes = [16, 8, 1, 8], strides = [1, 1, 1, 1]} : vector<16x8x2x8xf32> to vector<16x8x1x8xf32>
    %66 = vector.shape_cast %65 : vector<16x8x1x8xf32> to vector<16x8x8xf32>
    %67 = arith.maximumf %64, %66 : vector<16x8x8xf32>
    %68 = vector.shape_cast %67 : vector<16x8x8xf32> to vector<8x2x8x8xf32>
    %69 = vector.extract_strided_slice %68 {offsets = [0, 0, 0, 0], sizes = [8, 1, 8, 8], strides = [1, 1, 1, 1]} : vector<8x2x8x8xf32> to vector<8x1x8x8xf32>
    %70 = vector.shape_cast %69 : vector<8x1x8x8xf32> to vector<8x8x8xf32>
    %71 = vector.extract_strided_slice %68 {offsets = [0, 1, 0, 0], sizes = [8, 1, 8, 8], strides = [1, 1, 1, 1]} : vector<8x2x8x8xf32> to vector<8x1x8x8xf32>
    %72 = vector.shape_cast %71 : vector<8x1x8x8xf32> to vector<8x8x8xf32>
    %73 = arith.maximumf %70, %72 : vector<8x8x8xf32>
    %74 = arith.truncf %73 : vector<8x8x8xf32> to vector<8x8x8xbf16>
    %cst_21 = arith.constant 0.000000e+00 : bf16
    %75 = vector.broadcast %cst_21 : bf16 to vector<8x1x8xbf16>
    %76 = tpu.concatenate %75, %74, %75 in 1 : vector<8x1x8xbf16>, vector<8x8x8xbf16>, vector<8x1x8xbf16> -> vector<8x10x8xbf16>
    %cst_22 = arith.constant 0.000000e+00 : bf16
    %77 = vector.broadcast %cst_22 : bf16 to vector<1x10x8xbf16>
    %78 = tpu.concatenate %77, %76, %77 in 0 : vector<1x10x8xbf16>, vector<8x10x8xbf16>, vector<1x10x8xbf16> -> vector<10x10x8xbf16>
    %c0_23 = arith.constant 0 : index
    %c0_24 = arith.constant 0 : index
    %79 = vector.load %arg5[%c0_23, %c0_24] : memref<72x16xbf16, #tpu.memory_space<vmem>>, vector<72x16xbf16>
    %cst_25 = arith.constant 0.000000e+00 : f32
    %80 = vector.broadcast %cst_25 : f32 to vector<64x16xf32>
    %81 = vector.extract_strided_slice %78 {offsets = [0, 0, 0], sizes = [8, 8, 8], strides = [1, 1, 1]} : vector<10x10x8xbf16> to vector<8x8x8xbf16>
    %82 = vector.shape_cast %81 : vector<8x8x8xbf16> to vector<64x8xbf16>
    %83 = vector.extract_strided_slice %79 {offsets = [0, 0], sizes = [8, 16], strides = [1, 1]} : vector<72x16xbf16> to vector<8x16xbf16>
    %cst_26 = arith.constant dense<0.000000e+00> : vector<64x16xf32>
    %84 = tpu.matmul %82, %83, %cst_26 {dimension_numbers = #tpu.dot_dimension_numbers<[1], [0], [0], [1], [0, 0, 1, 1], [], []>} : vector<64x8xbf16>, vector<8x16xbf16>, vector<64x16xf32> -> vector<64x16xf32>
    %85 = arith.addf %80, %84 : vector<64x16xf32>
    %86 = vector.extract_strided_slice %78 {offsets = [0, 1, 0], sizes = [8, 8, 8], strides = [1, 1, 1]} : vector<10x10x8xbf16> to vector<8x8x8xbf16>
    %87 = vector.shape_cast %86 : vector<8x8x8xbf16> to vector<64x8xbf16>
    %88 = vector.extract_strided_slice %79 {offsets = [8, 0], sizes = [8, 16], strides = [1, 1]} : vector<72x16xbf16> to vector<8x16xbf16>
    %cst_27 = arith.constant dense<0.000000e+00> : vector<64x16xf32>
    %89 = tpu.matmul %87, %88, %cst_27 {dimension_numbers = #tpu.dot_dimension_numbers<[1], [0], [0], [1], [0, 0, 1, 1], [], []>} : vector<64x8xbf16>, vector<8x16xbf16>, vector<64x16xf32> -> vector<64x16xf32>
    %90 = arith.addf %85, %89 : vector<64x16xf32>
    %91 = vector.extract_strided_slice %78 {offsets = [0, 2, 0], sizes = [8, 8, 8], strides = [1, 1, 1]} : vector<10x10x8xbf16> to vector<8x8x8xbf16>
    %92 = vector.shape_cast %91 : vector<8x8x8xbf16> to vector<64x8xbf16>
    %93 = vector.extract_strided_slice %79 {offsets = [16, 0], sizes = [8, 16], strides = [1, 1]} : vector<72x16xbf16> to vector<8x16xbf16>
    %cst_28 = arith.constant dense<0.000000e+00> : vector<64x16xf32>
    %94 = tpu.matmul %92, %93, %cst_28 {dimension_numbers = #tpu.dot_dimension_numbers<[1], [0], [0], [1], [0, 0, 1, 1], [], []>} : vector<64x8xbf16>, vector<8x16xbf16>, vector<64x16xf32> -> vector<64x16xf32>
    %95 = arith.addf %90, %94 : vector<64x16xf32>
    %96 = vector.extract_strided_slice %78 {offsets = [1, 0, 0], sizes = [8, 8, 8], strides = [1, 1, 1]} : vector<10x10x8xbf16> to vector<8x8x8xbf16>
    %97 = vector.shape_cast %96 : vector<8x8x8xbf16> to vector<64x8xbf16>
    %98 = vector.extract_strided_slice %79 {offsets = [24, 0], sizes = [8, 16], strides = [1, 1]} : vector<72x16xbf16> to vector<8x16xbf16>
    %cst_29 = arith.constant dense<0.000000e+00> : vector<64x16xf32>
    %99 = tpu.matmul %97, %98, %cst_29 {dimension_numbers = #tpu.dot_dimension_numbers<[1], [0], [0], [1], [0, 0, 1, 1], [], []>} : vector<64x8xbf16>, vector<8x16xbf16>, vector<64x16xf32> -> vector<64x16xf32>
    %100 = arith.addf %95, %99 : vector<64x16xf32>
    %101 = vector.extract_strided_slice %78 {offsets = [1, 1, 0], sizes = [8, 8, 8], strides = [1, 1, 1]} : vector<10x10x8xbf16> to vector<8x8x8xbf16>
    %102 = vector.shape_cast %101 : vector<8x8x8xbf16> to vector<64x8xbf16>
    %103 = vector.extract_strided_slice %79 {offsets = [32, 0], sizes = [8, 16], strides = [1, 1]} : vector<72x16xbf16> to vector<8x16xbf16>
    %cst_30 = arith.constant dense<0.000000e+00> : vector<64x16xf32>
    %104 = tpu.matmul %102, %103, %cst_30 {dimension_numbers = #tpu.dot_dimension_numbers<[1], [0], [0], [1], [0, 0, 1, 1], [], []>} : vector<64x8xbf16>, vector<8x16xbf16>, vector<64x16xf32> -> vector<64x16xf32>
    %105 = arith.addf %100, %104 : vector<64x16xf32>
    %106 = vector.extract_strided_slice %78 {offsets = [1, 2, 0], sizes = [8, 8, 8], strides = [1, 1, 1]} : vector<10x10x8xbf16> to vector<8x8x8xbf16>
    %107 = vector.shape_cast %106 : vector<8x8x8xbf16> to vector<64x8xbf16>
    %108 = vector.extract_strided_slice %79 {offsets = [40, 0], sizes = [8, 16], strides = [1, 1]} : vector<72x16xbf16> to vector<8x16xbf16>
    %cst_31 = arith.constant dense<0.000000e+00> : vector<64x16xf32>
    %109 = tpu.matmul %107, %108, %cst_31 {dimension_numbers = #tpu.dot_dimension_numbers<[1], [0], [0], [1], [0, 0, 1, 1], [], []>} : vector<64x8xbf16>, vector<8x16xbf16>, vector<64x16xf32> -> vector<64x16xf32>
    %110 = arith.addf %105, %109 : vector<64x16xf32>
    %111 = vector.extract_strided_slice %78 {offsets = [2, 0, 0], sizes = [8, 8, 8], strides = [1, 1, 1]} : vector<10x10x8xbf16> to vector<8x8x8xbf16>
    %112 = vector.shape_cast %111 : vector<8x8x8xbf16> to vector<64x8xbf16>
    %113 = vector.extract_strided_slice %79 {offsets = [48, 0], sizes = [8, 16], strides = [1, 1]} : vector<72x16xbf16> to vector<8x16xbf16>
    %cst_32 = arith.constant dense<0.000000e+00> : vector<64x16xf32>
    %114 = tpu.matmul %112, %113, %cst_32 {dimension_numbers = #tpu.dot_dimension_numbers<[1], [0], [0], [1], [0, 0, 1, 1], [], []>} : vector<64x8xbf16>, vector<8x16xbf16>, vector<64x16xf32> -> vector<64x16xf32>
    %115 = arith.addf %110, %114 : vector<64x16xf32>
    %116 = vector.extract_strided_slice %78 {offsets = [2, 1, 0], sizes = [8, 8, 8], strides = [1, 1, 1]} : vector<10x10x8xbf16> to vector<8x8x8xbf16>
    %117 = vector.shape_cast %116 : vector<8x8x8xbf16> to vector<64x8xbf16>
    %118 = vector.extract_strided_slice %79 {offsets = [56, 0], sizes = [8, 16], strides = [1, 1]} : vector<72x16xbf16> to vector<8x16xbf16>
    %cst_33 = arith.constant dense<0.000000e+00> : vector<64x16xf32>
    %119 = tpu.matmul %117, %118, %cst_33 {dimension_numbers = #tpu.dot_dimension_numbers<[1], [0], [0], [1], [0, 0, 1, 1], [], []>} : vector<64x8xbf16>, vector<8x16xbf16>, vector<64x16xf32> -> vector<64x16xf32>
    %120 = arith.addf %115, %119 : vector<64x16xf32>
    %121 = vector.extract_strided_slice %78 {offsets = [2, 2, 0], sizes = [8, 8, 8], strides = [1, 1, 1]} : vector<10x10x8xbf16> to vector<8x8x8xbf16>
    %122 = vector.shape_cast %121 : vector<8x8x8xbf16> to vector<64x8xbf16>
    %123 = vector.extract_strided_slice %79 {offsets = [64, 0], sizes = [8, 16], strides = [1, 1]} : vector<72x16xbf16> to vector<8x16xbf16>
    %cst_34 = arith.constant dense<0.000000e+00> : vector<64x16xf32>
    %124 = tpu.matmul %122, %123, %cst_34 {dimension_numbers = #tpu.dot_dimension_numbers<[1], [0], [0], [1], [0, 0, 1, 1], [], []>} : vector<64x8xbf16>, vector<8x16xbf16>, vector<64x16xf32> -> vector<64x16xf32>
    %125 = arith.addf %120, %124 : vector<64x16xf32>
    %c0_35 = arith.constant 0 : index
    %c0_36 = arith.constant 0 : index
    %126 = vector.load %arg6[%c0_35, %c0_36] : memref<1x16xf32, #tpu.memory_space<vmem>>, vector<1x16xf32>
    %127 = vector.broadcast %126 : vector<1x16xf32> to vector<64x16xf32>
    %128 = arith.mulf %125, %127 : vector<64x16xf32>
    %c0_37 = arith.constant 0 : index
    %c0_38 = arith.constant 0 : index
    %129 = vector.load %arg7[%c0_37, %c0_38] : memref<1x16xf32, #tpu.memory_space<vmem>>, vector<1x16xf32>
    %130 = vector.broadcast %129 : vector<1x16xf32> to vector<64x16xf32>
    %131 = arith.addf %128, %130 : vector<64x16xf32>
    %cst_39 = arith.constant 0.000000e+00 : f32
    %132 = vector.broadcast %cst_39 : f32 to vector<64x16xf32>
    %133 = arith.maximumf %131, %132 : vector<64x16xf32>
    %134 = vector.shape_cast %133 : vector<64x16xf32> to vector<8x8x16xf32>
    %135 = vector.shape_cast %134 : vector<8x8x16xf32> to vector<8x4x2x16xf32>
    %136 = vector.extract_strided_slice %135 {offsets = [0, 0, 0, 0], sizes = [8, 4, 1, 16], strides = [1, 1, 1, 1]} : vector<8x4x2x16xf32> to vector<8x4x1x16xf32>
    %137 = vector.shape_cast %136 : vector<8x4x1x16xf32> to vector<8x4x16xf32>
    %138 = vector.extract_strided_slice %135 {offsets = [0, 0, 1, 0], sizes = [8, 4, 1, 16], strides = [1, 1, 1, 1]} : vector<8x4x2x16xf32> to vector<8x4x1x16xf32>
    %139 = vector.shape_cast %138 : vector<8x4x1x16xf32> to vector<8x4x16xf32>
    %140 = arith.maximumf %137, %139 : vector<8x4x16xf32>
    %141 = vector.shape_cast %140 : vector<8x4x16xf32> to vector<4x2x4x16xf32>
    %142 = vector.extract_strided_slice %141 {offsets = [0, 0, 0, 0], sizes = [4, 1, 4, 16], strides = [1, 1, 1, 1]} : vector<4x2x4x16xf32> to vector<4x1x4x16xf32>
    %143 = vector.shape_cast %142 : vector<4x1x4x16xf32> to vector<4x4x16xf32>
    %144 = vector.extract_strided_slice %141 {offsets = [0, 1, 0, 0], sizes = [4, 1, 4, 16], strides = [1, 1, 1, 1]} : vector<4x2x4x16xf32> to vector<4x1x4x16xf32>
    %145 = vector.shape_cast %144 : vector<4x1x4x16xf32> to vector<4x4x16xf32>
    %146 = arith.maximumf %143, %145 : vector<4x4x16xf32>
    %147 = vector.shape_cast %146 : vector<4x4x16xf32> to vector<1x4x64xf32>
    %c0_40 = arith.constant 0 : index
    %c0_41 = arith.constant 0 : index
    %c0_42 = arith.constant 0 : index
    %148 = vector.load %arg8[%c0_40, %c0_41, %c0_42] : memref<1x4x64xf32, #tpu.memory_space<vmem>>, vector<1x4x64xf32>
    tpu.vector_store %arg8[%c0_40, %c0_41, %c0_42], %147 {strides = array<i32>} : memref<1x4x64xf32, #tpu.memory_space<vmem>>, vector<1x4x64xf32>,
    return
  }
  func.func @transform_0(%arg0: i32) -> (i32, i32, i32, i32) {
    %c0_i32 = arith.constant 0 : i32
    %c0_i32_0 = arith.constant 0 : i32
    %c0_i32_1 = arith.constant 0 : i32
    %c0_i32_2 = arith.constant 0 : i32
    return %arg0, %c0_i32, %c0_i32_0, %c0_i32_1 : i32, i32, i32, i32
  }
  func.func @transform_1(%arg0: i32) -> (i32, i32) {
    %c0_i32 = arith.constant 0 : i32
    %c0_i32_0 = arith.constant 0 : i32
    %c0_i32_1 = arith.constant 0 : i32
    return %c0_i32, %c0_i32_0 : i32, i32
  }
  func.func @transform_2(%arg0: i32) -> (i32, i32) {
    %c0_i32 = arith.constant 0 : i32
    %c0_i32_0 = arith.constant 0 : i32
    %c0_i32_1 = arith.constant 0 : i32
    return %c0_i32, %c0_i32_0 : i32, i32
  }
  func.func @transform_3(%arg0: i32) -> (i32, i32) {
    %c0_i32 = arith.constant 0 : i32
    %c0_i32_0 = arith.constant 0 : i32
    %c0_i32_1 = arith.constant 0 : i32
    return %c0_i32, %c0_i32_0 : i32, i32
  }
  func.func @transform_4(%arg0: i32) -> (i32, i32) {
    %c0_i32 = arith.constant 0 : i32
    %c0_i32_0 = arith.constant 0 : i32
    %c0_i32_1 = arith.constant 0 : i32
    return %c0_i32, %c0_i32_0 : i32, i32
  }
  func.func @transform_5(%arg0: i32) -> (i32, i32) {
    %c0_i32 = arith.constant 0 : i32
    %c0_i32_0 = arith.constant 0 : i32
    %c0_i32_1 = arith.constant 0 : i32
    return %c0_i32, %c0_i32_0 : i32, i32
  }
  func.func @transform_6(%arg0: i32) -> (i32, i32) {
    %c0_i32 = arith.constant 0 : i32
    %c0_i32_0 = arith.constant 0 : i32
    %c0_i32_1 = arith.constant 0 : i32
    return %c0_i32, %c0_i32_0 : i32, i32
  }
  func.func @transform_7(%arg0: i32) -> (i32, i32, i32) {
    %c0_i32 = arith.constant 0 : i32
    %c0_i32_0 = arith.constant 0 : i32
    %c0_i32_1 = arith.constant 0 : i32
    return %arg0, %c0_i32, %c0_i32_0 : i32, i32, i32
  }
}

</mosaic_0001>

<llo_original>
// kernel: tpu_custom_call.1
$region0: #{tpu_custom_call.1}
  #allocation0 [shape = 'u32[]', space=smem, size = 0x4, offset = 0x4, fixed_abs, tag = 'smem constant byte address 0x4 - core index']
  #allocation1 [shape = 'u32[144,128]{1,0:T(1,128)}', space=vmem, size = 0x12000, scoped, tag = 'internal scratch']
  %s0 = inlined_call_operand.vmem [shape: bf16[2,16,16,4], index: 0, kind: input, shape index: {}]
  %s1 = inlined_call_operand.vmem [shape: bf16[36,8], index: 1, kind: input, shape index: {}]
  %s2 = inlined_call_operand.vmem [shape: f32[1,8], index: 2, kind: input, shape index: {}]
  %s3 = inlined_call_operand.vmem [shape: f32[1,8], index: 3, kind: input, shape index: {}]
  %s4 = inlined_call_operand.vmem [shape: bf16[72,16], index: 4, kind: input, shape index: {}]
  %s5 = inlined_call_operand.vmem [shape: f32[1,16], index: 5, kind: input, shape index: {}]
  %s6 = inlined_call_operand.vmem [shape: f32[1,16], index: 6, kind: input, shape index: {}]
  %s7 = inlined_call_operand.hbm [shape: f32[2,4,64], index: 7, kind: output, shape index: {}]
  %s8 = sld [smem:[#allocation0]]
  $region61: #{tpu_custom_call.1} parent=0
    _
  %s10 = ssub.s32 1, %s8
  %s11 = scalar_select 0, %s10, %s8
  $region1: #{tpu_custom_call.1} parent=0
    #allocation2 [shape = 'u8[4096]{0}', space=vmem, size = 0x1000, scoped, tag = 'output window, operand 0']
    #allocation3 [shape = 's32[2]{0}', space=sflag, size = 0x8, scoped, tag = 'scoped memory for tpu_custom_call.1']
    %12 = vsyncpa [#allocation3], 0
    %s13 = scalar_lea.sflag [#allocation3], 1
    %14 = vsyncpa %s13, 0
    loop: start=0, step=1, limit=4
    $region2: #{tpu_custom_call.1} parent=1 // loop_pre_header
      _
    $region3: #{tpu_custom_call.1} parent=1 // loop_header
      %s16 = sphi 0, %s20
      %p17 = scmp.ge.s32.totalorder %s16, 4
      %s26 = sphi 0, %s28
      %s29 = sphi 0, %s26
      %s30 = sphi 0, %s29
      %s46 = sphi 0, %s30
      %s50 = sphi 0, %s50
      %s52 = sphi 0, %s50
      %s53 = sphi 0, %s52
      %s67 = sphi 0, %s53
      %s71 = sphi 0, %s71
      %s73 = sphi 0, %s71
      %s74 = sphi 0, %s73
      %s88 = sphi 0, %s74
      %s92 = sphi 0, %s92
      %s94 = sphi 0, %s92
      %s95 = sphi 0, %s94
      %s109 = sphi 0, %s95
      %s113 = sphi 0, %s113
      %s115 = sphi 0, %s113
      %s116 = sphi 0, %s115
      %s130 = sphi 0, %s116
      %s134 = sphi 0, %s134
      %s136 = sphi 0, %s134
      %s137 = sphi 0, %s136
      %s151 = sphi 0, %s137
      %s155 = sphi 0, %s155
      %s157 = sphi 0, %s155
      %s158 = sphi 0, %s157
      %s172 = sphi 0, %s158
      %s178 = sphi 0, %s180
      %s181 = sphi 0, %s178
      %s182 = sphi 0, %s181
      %s198 = sphi 0, %s182
    $region4: #{tpu_custom_call.1} parent=1 // loop_header_branch
      %19 = sbr.rel (%p17) target = $region8
    $region5: #{tpu_custom_call.1} parent=1 // loop_body
      %s21 = ssub.s32 %s16, 1
      %s22 = ssub.s32 %s16, 2
      %s23 = sadd.s32 %s16, 1
      %s24 = ssub.s32 %s16, %s23
      %p25 = scmp.eq.s32.totalorder %s24, 0
      %s27 = sadd.s32 %s26, 1
      %s28 = scalar_select %p25, %s26, %s27
      %p31 = pneg %p25
      %p32 = scmp.eq.s32.totalorder %s16, 1
      %p33 = por %p31, %p32
      %p34 = scmp.ne.s32.totalorder %s26, %s29
      %p35 = scmp.eq.s32.totalorder %s16, 0
      %p36 = por %p34, %p35
      %p37 = scmp.ne.s32.totalorder %s26, %s29
      %p38 = scmp.eq.s32.totalorder %s21, 1
      %p39 = por %p37, %p38
      %p40 = scmp.ne.s32.totalorder %s29, %s30
      %p41 = scmp.eq.s32.totalorder %s21, 0
      %p42 = por %p40, %p41
      %p43 = scmp.ne.s32.totalorder %s29, %s30
      %p44 = scmp.eq.s32.totalorder %s22, 1
      %p45 = por %p43, %p44
      %p47 = scmp.ne.s32.totalorder %s30, %s46
      %p48 = scmp.eq.s32.totalorder %s22, 0
      %p49 = por %p47, %p48
      %s51 = sadd.s32 %s50, 1
      %p54 = scmp.eq.s32.totalorder %s16, 1
      %p55 = scmp.ne.s32.totalorder %s50, %s52
      %p56 = scmp.eq.s32.totalorder %s16, 0
      %p57 = por %p55, %p56
      %p58 = scmp.ne.s32.totalorder %s50, %s52
      %p59 = scmp.eq.s32.totalorder %s21, 1
      %p60 = por %p58, %p59
      %p61 = scmp.ne.s32.totalorder %s52, %s53
      %p62 = scmp.eq.s32.totalorder %s21, 0
      %p63 = por %p61, %p62
      %p64 = scmp.ne.s32.totalorder %s52, %s53
      %p65 = scmp.eq.s32.totalorder %s22, 1
      %p66 = por %p64, %p65
      %p68 = scmp.ne.s32.totalorder %s53, %s67
      %p69 = scmp.eq.s32.totalorder %s22, 0
      %p70 = por %p68, %p69
      %s72 = sadd.s32 %s71, 1
      %p75 = scmp.eq.s32.totalorder %s16, 1
      %p76 = scmp.ne.s32.totalorder %s71, %s73
      %p77 = scmp.eq.s32.totalorder %s16, 0
      %p78 = por %p76, %p77
      %p79 = scmp.ne.s32.totalorder %s71, %s73
      %p80 = scmp.eq.s32.totalorder %s21, 1
      %p81 = por %p79, %p80
      %p82 = scmp.ne.s32.totalorder %s73, %s74
      %p83 = scmp.eq.s32.totalorder %s21, 0
      %p84 = por %p82, %p83
      %p85 = scmp.ne.s32.totalorder %s73, %s74
      %p86 = scmp.eq.s32.totalorder %s22, 1
      %p87 = por %p85, %p86
      %p89 = scmp.ne.s32.totalorder %s74, %s88
      %p90 = scmp.eq.s32.totalorder %s22, 0
      %p91 = por %p89, %p90
      %s93 = sadd.s32 %s92, 1
      %p96 = scmp.eq.s32.totalorder %s16, 1
      %p97 = scmp.ne.s32.totalorder %s92, %s94
      %p98 = scmp.eq.s32.totalorder %s16, 0
      %p99 = por %p97, %p98
      %p100 = scmp.ne.s32.totalorder %s92, %s94
      %p101 = scmp.eq.s32.totalorder %s21, 1
      %p102 = por %p100, %p101
      %p103 = scmp.ne.s32.totalorder %s94, %s95
      %p104 = scmp.eq.s32.totalorder %s21, 0
      %p105 = por %p103, %p104
      %p106 = scmp.ne.s32.totalorder %s94, %s95
      %p107 = scmp.eq.s32.totalorder %s22, 1
      %p108 = por %p106, %p107
      %p110 = scmp.ne.s32.totalorder %s95, %s109
      %p111 = scmp.eq.s32.totalorder %s22, 0
      %p112 = por %p110, %p111
      %s114 = sadd.s32 %s113, 1
      %p117 = scmp.eq.s32.totalorder %s16, 1
      %p118 = scmp.ne.s32.totalorder %s113, %s115
      %p119 = scmp.eq.s32.totalorder %s16, 0
      %p120 = por %p118, %p119
      %p121 = scmp.ne.s32.totalorder %s113, %s115
      %p122 = scmp.eq.s32.totalorder %s21, 1
      %p123 = por %p121, %p122
      %p124 = scmp.ne.s32.totalorder %s115, %s116
      %p125 = scmp.eq.s32.totalorder %s21, 0
      %p126 = por %p124, %p125
      %p127 = scmp.ne.s32.totalorder %s115, %s116
      %p128 = scmp.eq.s32.totalorder %s22, 1
      %p129 = por %p127, %p128
      %p131 = scmp.ne.s32.totalorder %s116, %s130
      %p132 = scmp.eq.s32.totalorder %s22, 0
      %p133 = por %p131, %p132
      %s135 = sadd.s32 %s134, 1
      %p138 = scmp.eq.s32.totalorder %s16, 1
      %p139 = scmp.ne.s32.totalorder %s134, %s136
      %p140 = scmp.eq.s32.totalorder %s16, 0
      %p141 = por %p139, %p140
      %p142 = scmp.ne.s32.totalorder %s134, %s136
      %p143 = scmp.eq.s32.totalorder %s21, 1
      %p144 = por %p142, %p143
      %p145 = scmp.ne.s32.totalorder %s136, %s137
      %p146 = scmp.eq.s32.totalorder %s21, 0
      %p147 = por %p145, %p146
      %p148 = scmp.ne.s32.totalorder %s136, %s137
      %p149 = scmp.eq.s32.totalorder %s22, 1
      %p150 = por %p148, %p149
      %p152 = scmp.ne.s32.totalorder %s137, %s151
      %p153 = scmp.eq.s32.totalorder %s22, 0
      %p154 = por %p152, %p153
      %s156 = sadd.s32 %s155, 1
      %p159 = scmp.eq.s32.totalorder %s16, 1
      %p160 = scmp.ne.s32.totalorder %s155, %s157
      %p161 = scmp.eq.s32.totalorder %s16, 0
      %p162 = por %p160, %p161
      %p163 = scmp.ne.s32.totalorder %s155, %s157
      %p164 = scmp.eq.s32.totalorder %s21, 1
      %p165 = por %p163, %p164
      %p166 = scmp.ne.s32.totalorder %s157, %s158
      %p167 = scmp.eq.s32.totalorder %s21, 0
      %p168 = por %p166, %p167
      %p169 = scmp.ne.s32.totalorder %s157, %s158
      %p170 = scmp.eq.s32.totalorder %s22, 1
      %p171 = por %p169, %p170
      %p173 = scmp.ne.s32.totalorder %s158, %s172
      %p174 = scmp.eq.s32.totalorder %s22, 0
      %p175 = por %p173, %p174
      %s176 = ssub.s32 %s16, %s23
      %p177 = scmp.eq.s32.totalorder %s176, 0
      %s179 = sadd.s32 %s178, 1
      %s180 = scalar_select %p177, %s178, %s179
      %p183 = pneg %p177
      %p184 = scmp.eq.s32.totalorder %s16, 1
      %p185 = por %p183, %p184
      %p186 = scmp.ne.s32.totalorder %s178, %s181
      %p187 = scmp.eq.s32.totalorder %s16, 0
      %p188 = por %p186, %p187
      %p189 = scmp.ne.s32.totalorder %s178, %s181
      %p190 = scmp.eq.s32.totalorder %s21, 1
      %p191 = por %p189, %p190
      %p192 = scmp.ne.s32.totalorder %s181, %s182
      %p193 = scmp.eq.s32.totalorder %s21, 0
      %p194 = por %p192, %p193
      %p195 = scmp.ne.s32.totalorder %s181, %s182
      %p196 = scmp.eq.s32.totalorder %s22, 1
      %p197 = por %p195, %p196
      %p199 = scmp.ne.s32.totalorder %s182, %s198
      %p200 = scmp.eq.s32.totalorder %s22, 0
      %p201 = por %p199, %p200
      %p202 = scmp.le.s32.totalorder 1, %s16
      %p203 = scmp.lt.s32.totalorder %s16, 3
      %p204 = pnand %p202, %p203
      %p205 = pneg %p204
      // Predicated region
      $region9: #{tpu_custom_call.1} parent=5 // pred_check
        _
      $region10: #{tpu_custom_call.1} parent=5 // pred_check_branch
        %207 = sbr.rel (%p204) target = $region12
      $region11: #{tpu_custom_call.1} parent=5 // pred_region
        %s208 = ssub.s32 %s16, 1
        // Predicated region
        $region13: #{tpu_custom_call.1} parent=11 // pred_check
          %p209 = pneg %p63
        $region14: #{tpu_custom_call.1} parent=11 // pred_check_branch
          %211 = sbr.rel (%p209) target = $region16
        $region15: #{tpu_custom_call.1} parent=11 // pred_region
          _
        $region16: #{tpu_custom_call.1} parent=11 // pred_fallthru
          _
        // Predicated region
        $region17: #{tpu_custom_call.1} parent=11 // pred_check
          %p212 = pneg %p84
        $region18: #{tpu_custom_call.1} parent=11 // pred_check_branch
          %214 = sbr.rel (%p212) target = $region20
        $region19: #{tpu_custom_call.1} parent=11 // pred_region
          _
        $region20: #{tpu_custom_call.1} parent=11 // pred_fallthru
          _
        // Predicated region
        $region21: #{tpu_custom_call.1} parent=11 // pred_check
          %p215 = pneg %p105
        $region22: #{tpu_custom_call.1} parent=11 // pred_check_branch
          %217 = sbr.rel (%p215) target = $region24
        $region23: #{tpu_custom_call.1} parent=11 // pred_region
          _
        $region24: #{tpu_custom_call.1} parent=11 // pred_fallthru
          _
        // Predicated region
        $region25: #{tpu_custom_call.1} parent=11 // pred_check
          %p218 = pneg %p126
        $region26: #{tpu_custom_call.1} parent=11 // pred_check_branch
          %220 = sbr.rel (%p218) target = $region28
        $region27: #{tpu_custom_call.1} parent=11 // pred_region
          _
        $region28: #{tpu_custom_call.1} parent=11 // pred_fallthru
          _
        // Predicated region
        $region29: #{tpu_custom_call.1} parent=11 // pred_check
          %p221 = pneg %p147
        $region30: #{tpu_custom_call.1} parent=11 // pred_check_branch
          %223 = sbr.rel (%p221) target = $region32
        $region31: #{tpu_custom_call.1} parent=11 // pred_region
          _
        $region32: #{tpu_custom_call.1} parent=11 // pred_fallthru
          _
        // Predicated region
        $region33: #{tpu_custom_call.1} parent=11 // pred_check
          %p224 = pneg %p168
        $region34: #{tpu_custom_call.1} parent=11 // pred_check_branch
          %226 = sbr.rel (%p224) target = $region36
        $region35: #{tpu_custom_call.1} parent=11 // pred_region
          _
        $region36: #{tpu_custom_call.1} parent=11 // pred_fallthru
          _
      $region12: #{tpu_custom_call.1} parent=5 // pred_fallthru
        _
      %p227 = scmp.lt.s32.totalorder %s16, 2
      // Predicated region
      $region37: #{tpu_custom_call.1} parent=5 // pred_check
        %p228 = pneg %p227
      $region38: #{tpu_custom_call.1} parent=5 // pred_check_branch
        %230 = sbr.rel (%p228) target = $region40
      $region39: #{tpu_custom_call.1} parent=5 // pred_region
        // Predicated region
        $region41: #{tpu_custom_call.1} parent=39 // pred_check
          %p231 = pneg %p36
        $region42: #{tpu_custom_call.1} parent=39 // pred_check_branch
          %233 = sbr.rel (%p231) target = $region44
        $region43: #{tpu_custom_call.1} parent=39 // pred_region
          %p234 = scmp.lt.s32.totalorder %s16, 1
          %s235 = scalar_select %p234, %s16, 1
          %s236 = smul.addr %s235, 32
          %s237 = smul.addr %s236, 4
          %s238 = scalar_lea.vmem %s0, %s237
        $region44: #{tpu_custom_call.1} parent=39 // pred_fallthru
          _
      $region40: #{tpu_custom_call.1} parent=5 // pred_fallthru
        _
      %p239 = scmp.le.s32.totalorder 1, %s16
      %p240 = scmp.lt.s32.totalorder %s16, 3
      %p241 = pnand %p239, %p240
      %p242 = pneg %p241
      // Predicated region
      $region45: #{tpu_custom_call.1} parent=5 // pred_check
        _
      $region46: #{tpu_custom_call.1} parent=5 // pred_check_branch
        %244 = sbr.rel (%p241) target = $region48
      $region47: #{tpu_custom_call.1} parent=5 // pred_region
        %s245 = ssub.s32 %s16, 1
        %p246 = scmp.lt.s32.totalorder %s21, 1
        %s247 = scalar_select %p246, %s21, 1
        %s248 = smul.addr %s247, 32
        %s249 = smul.addr %s248, 4
        %s250 = scalar_lea.vmem %s0, %s249
        %p251 = pneg %p42
        %p252 = pneg %p39
        %p253 = pneg %p63
        %p254 = pneg %p60
        %p255 = pneg %p84
        %p256 = pneg %p81
        %p257 = pneg %p105
        %p258 = pneg %p102
        %p259 = pneg %p126
        %p260 = pneg %p123
        %p261 = pneg %p147
        %p262 = pneg %p144
        %p263 = pneg %p168
        %p264 = pneg %p165
        %p265 = pneg %p194
        %p266 = pneg %p191
        %s267 = sand.u32 %s181, 1
        %s268 = scalar_lea.sflag [#allocation3], %s267
        %s269 = sand.u32 %s181, 1
        %s270 = smul.addr %s269, 4
        %s271 = scalar_lea.vmem [#allocation2], %s270
        %p272 = scmp.lt.s32.totalorder %s21, 1
        %s273 = scalar_select %p272, %s21, 1
        %s274 = smul.addr %s273, 32
        %s275 = smul.addr %s274, 4
        %s276 = scalar_lea.vmem %s0, %s275
        %v278 = vld [vmem:[%s276] sm:$0xf]
        %v279 = vld [vmem:[%s276 + $0x4] sm:$0xf]
        %v280 = vld [vmem:[%s276 + $0x8] sm:$0xf]
        %v281 = vld [vmem:[%s276 + $0xc] sm:$0xf]
        %v282 = vld [vmem:[%s276 + $0x10] sm:$0xf]
        %v283 = vld [vmem:[%s276 + $0x14] sm:$0xf]
        %v284 = vld [vmem:[%s276 + $0x18] sm:$0xf]
        %v285 = vld [vmem:[%s276 + $0x1c] sm:$0xf]
        %v286 = vld [vmem:[%s276 + $0x20] sm:$0xf]
        %v287 = vld [vmem:[%s276 + $0x24] sm:$0xf]
        %v288 = vld [vmem:[%s276 + $0x28] sm:$0xf]
        %v289 = vld [vmem:[%s276 + $0x2c] sm:$0xf]
        %v290 = vld [vmem:[%s276 + $0x30] sm:$0xf]
        %v291 = vld [vmem:[%s276 + $0x34] sm:$0xf]
        %v292 = vld [vmem:[%s276 + $0x38] sm:$0xf]
        %v293 = vld [vmem:[%s276 + $0x3c] sm:$0xf]
        %v294 = vld [vmem:[%s276 + $0x40] sm:$0xf]
        %v295 = vld [vmem:[%s276 + $0x44] sm:$0xf]
        %v296 = vld [vmem:[%s276 + $0x48] sm:$0xf]
        %v297 = vld [vmem:[%s276 + $0x4c] sm:$0xf]
        %v298 = vld [vmem:[%s276 + $0x50] sm:$0xf]
        %v299 = vld [vmem:[%s276 + $0x54] sm:$0xf]
        %v300 = vld [vmem:[%s276 + $0x58] sm:$0xf]
        %v301 = vld [vmem:[%s276 + $0x5c] sm:$0xf]
        %v302 = vld [vmem:[%s276 + $0x60] sm:$0xf]
        %v303 = vld [vmem:[%s276 + $0x64] sm:$0xf]
        %v304 = vld [vmem:[%s276 + $0x68] sm:$0xf]
        %v305 = vld [vmem:[%s276 + $0x6c] sm:$0xf]
        %v306 = vld [vmem:[%s276 + $0x70] sm:$0xf]
        %v307 = vld [vmem:[%s276 + $0x74] sm:$0xf]
        %v308 = vld [vmem:[%s276 + $0x78] sm:$0xf]
        %v309 = vld [vmem:[%s276 + $0x7c] sm:$0xf]
        %v342 = vunpack.c.l.b16 %v278
        %v343 = vunpack.c.l.b16 %v279
        %v344 = vunpack.c.l.b16 %v280
        %v345 = vunpack.c.l.b16 %v281
        %v346 = vunpack.c.l.b16 %v282
        %v347 = vunpack.c.l.b16 %v283
        %v348 = vunpack.c.l.b16 %v284
        %v349 = vunpack.c.l.b16 %v285
        %v350 = vunpack.c.l.b16 %v286
        %v351 = vunpack.c.l.b16 %v287
        %v352 = vunpack.c.l.b16 %v288
        %v353 = vunpack.c.l.b16 %v289
        %v354 = vunpack.c.l.b16 %v290
        %v355 = vunpack.c.l.b16 %v291
        %v356 = vunpack.c.l.b16 %v292
        %v357 = vunpack.c.l.b16 %v293
        %v358 = vunpack.c.l.b16 %v294
        %v359 = vunpack.c.l.b16 %v295
        %v360 = vunpack.c.l.b16 %v296
        %v361 = vunpack.c.l.b16 %v297
        %v362 = vunpack.c.l.b16 %v298
        %v363 = vunpack.c.l.b16 %v299
        %v364 = vunpack.c.l.b16 %v300
        %v365 = vunpack.c.l.b16 %v301
        %v366 = vunpack.c.l.b16 %v302
        %v367 = vunpack.c.l.b16 %v303
        %v368 = vunpack.c.l.b16 %v304
        %v369 = vunpack.c.l.b16 %v305
        %v370 = vunpack.c.l.b16 %v306
        %v371 = vunpack.c.l.b16 %v307
        %v372 = vunpack.c.l.b16 %v308
        %v373 = vunpack.c.l.b16 %v309
        %v374 = vpack.c.b16 %v343, %v342
        %v375 = vpack.c.b16 %v345, %v344
        %v376 = vpack.c.b16 %v347, %v346
        %v377 = vpack.c.b16 %v349, %v348
        %v378 = vpack.c.b16 %v351, %v350
        %v379 = vpack.c.b16 %v353, %v352
        %v380 = vpack.c.b16 %v355, %v354
        %v381 = vpack.c.b16 %v357, %v356
        %v382 = vpack.c.b16 %v359, %v358
        %v383 = vpack.c.b16 %v361, %v360
        %v384 = vpack.c.b16 %v363, %v362
        %v385 = vpack.c.b16 %v365, %v364
        %v386 = vpack.c.b16 %v367, %v366
        %v387 = vpack.c.b16 %v369, %v368
        %v388 = vpack.c.b16 %v371, %v370
        %v389 = vpack.c.b16 %v373, %v372
        %v391 = vshrl.u32 %v374, 16
        %v393 = vrot.slane %v391, 7
        %v394 = vshll.u32 %v374, 16
        %v396 = vor.u32 %v393, %v394
        %v398 = vshrl.u32 %v375, 16
        %v400 = vrot.slane %v398, 7
        %v401 = vshll.u32 %v375, 16
        %v403 = vor.u32 %v400, %v401
        %v405 = vshrl.u32 %v376, 16
        %v407 = vrot.slane %v405, 7
        %v408 = vshll.u32 %v376, 16
        %v410 = vor.u32 %v407, %v408
        %v412 = vshrl.u32 %v377, 16
        %v414 = vrot.slane %v412, 7
        %v415 = vshll.u32 %v377, 16
        %v417 = vor.u32 %v414, %v415
        %v419 = vshrl.u32 %v378, 16
        %v421 = vrot.slane %v419, 7
        %v422 = vshll.u32 %v378, 16
        %v424 = vor.u32 %v421, %v422
        %v426 = vshrl.u32 %v379, 16
        %v428 = vrot.slane %v426, 7
        %v429 = vshll.u32 %v379, 16
        %v431 = vor.u32 %v428, %v429
        %v433 = vshrl.u32 %v380, 16
        %v435 = vrot.slane %v433, 7
        %v436 = vshll.u32 %v380, 16
        %v438 = vor.u32 %v435, %v436
        %v440 = vshrl.u32 %v381, 16
        %v442 = vrot.slane %v440, 7
        %v443 = vshll.u32 %v381, 16
        %v445 = vor.u32 %v442, %v443
        %v447 = vshrl.u32 %v382, 16
        %v449 = vrot.slane %v447, 7
        %v450 = vshll.u32 %v382, 16
        %v452 = vor.u32 %v449, %v450
        %v454 = vshrl.u32 %v383, 16
        %v456 = vrot.slane %v454, 7
        %v457 = vshll.u32 %v383, 16
        %v459 = vor.u32 %v456, %v457
        %v461 = vshrl.u32 %v384, 16
        %v463 = vrot.slane %v461, 7
        %v464 = vshll.u32 %v384, 16
        %v466 = vor.u32 %v463, %v464
        %v468 = vshrl.u32 %v385, 16
        %v470 = vrot.slane %v468, 7
        %v471 = vshll.u32 %v385, 16
        %v473 = vor.u32 %v470, %v471
        %v475 = vshrl.u32 %v386, 16
        %v477 = vrot.slane %v475, 7
        %v478 = vshll.u32 %v386, 16
        %v480 = vor.u32 %v477, %v478
        %v482 = vshrl.u32 %v387, 16
        %v484 = vrot.slane %v482, 7
        %v485 = vshll.u32 %v387, 16
        %v487 = vor.u32 %v484, %v485
        %v489 = vshrl.u32 %v388, 16
        %v491 = vrot.slane %v489, 7
        %v492 = vshll.u32 %v388, 16
        %v494 = vor.u32 %v491, %v492
        %v496 = vshrl.u32 %v389, 16
        %v498 = vrot.slane %v496, 7
        %v499 = vshll.u32 %v389, 16
        %v501 = vor.u32 %v498, %v499
        %vm534 = vcmask 1040384
        %vm535 = vsmask.f32 256
        %vm536 = vmand %vm534, %vm535
        %v537 = vsel %vm536, 0, %v396
        %v538 = vsel %vm536, 0, %v403
        %v539 = vsel %vm536, 0, %v410
        %v540 = vsel %vm536, 0, %v417
        %v541 = vsel %vm536, 0, %v424
        %v542 = vsel %vm536, 0, %v431
        %v543 = vsel %vm536, 0, %v438
        %v544 = vsel %vm536, 0, %v445
        %v545 = vsel %vm536, 0, %v452
        %v546 = vsel %vm536, 0, %v459
        %v547 = vsel %vm536, 0, %v466
        %v548 = vsel %vm536, 0, %v473
        %v549 = vsel %vm536, 0, %v480
        %v550 = vsel %vm536, 0, %v487
        %v551 = vsel %vm536, 0, %v494
        %v552 = vsel %vm536, 0, %v501
        %v553 = vsel %vm536, %v393, 0
        %v554 = vsel %vm536, %v400, 0
        %v555 = vsel %vm536, %v407, 0
        %v556 = vsel %vm536, %v414, 0
        %v557 = vsel %vm536, %v421, 0
        %v558 = vsel %vm536, %v428, 0
        %v559 = vsel %vm536, %v435, 0
        %v560 = vsel %vm536, %v442, 0
        %v561 = vsel %vm536, %v449, 0
        %v562 = vsel %vm536, %v456, 0
        %v563 = vsel %vm536, %v463, 0
        %v564 = vsel %vm536, %v470, 0
        %v565 = vsel %vm536, %v477, 0
        %v566 = vsel %vm536, %v484, 0
        %v567 = vsel %vm536, %v491, 0
        %v568 = vsel %vm536, %v498, 0
        %v569 = vld [vmem:[%s1] sm:$0xf]
        %v570 = vld [vmem:[%s1 + $0x4] sm:$0xf]
        %v571 = vld [vmem:[%s1 + $0x8] sm:$0xf]
        %v572 = vld [vmem:[%s1 + $0xc] sm:$0xf]
        %v573 = vld [vmem:[%s1 + $0x10] sm:$0x3]
        %vm574 = vsmask.f32 7424
        %v576 = vshrl.u32 0, 16
        %v578 = vshll.u32 0, 16
        %v580 = vrot.slane %v578, 1
        %v581 = vor.u32 %v576, %v580
        %v582 = vsel %vm574, %v581, %v580
        %v584 = vshrl.u32 %v537, 16
        %v586 = vshll.u32 %v537, 16
        %v588 = vrot.slane %v586, 1
        %v589 = vor.u32 %v584, %v588
        %v591 = vshll.u32 %v553, 16
        %v593 = vrot.slane %v591, 1
        %v594 = vsel %vm574, %v589, %v593
        %v596 = vshrl.u32 %v538, 16
        %v598 = vshll.u32 %v538, 16
        %v600 = vrot.slane %v598, 1
        %v601 = vor.u32 %v596, %v600
        %v603 = vshll.u32 %v554, 16
        %v605 = vrot.slane %v603, 1
        %v606 = vsel %vm574, %v601, %v605
        %v608 = vshrl.u32 %v539, 16
        %v610 = vshll.u32 %v539, 16
        %v612 = vrot.slane %v610, 1
        %v613 = vor.u32 %v608, %v612
        %v615 = vshll.u32 %v555, 16
        %v617 = vrot.slane %v615, 1
        %v618 = vsel %vm574, %v613, %v617
        %v620 = vshrl.u32 %v540, 16
        %v622 = vshll.u32 %v540, 16
        %v624 = vrot.slane %v622, 1
        %v625 = vor.u32 %v620, %v624
        %v627 = vshll.u32 %v556, 16
        %v629 = vrot.slane %v627, 1
        %v630 = vsel %vm574, %v625, %v629
        %v632 = vshrl.u32 %v541, 16
        %v634 = vshll.u32 %v541, 16
        %v636 = vrot.slane %v634, 1
        %v637 = vor.u32 %v632, %v636
        %v639 = vshll.u32 %v557, 16
        %v641 = vrot.slane %v639, 1
        %v642 = vsel %vm574, %v637, %v641
        %v644 = vshrl.u32 %v542, 16
        %v646 = vshll.u32 %v542, 16
        %v648 = vrot.slane %v646, 1
        %v649 = vor.u32 %v644, %v648
        %v651 = vshll.u32 %v558, 16
        %v653 = vrot.slane %v651, 1
        %v654 = vsel %vm574, %v649, %v653
        %v656 = vshrl.u32 %v543, 16
        %v658 = vshll.u32 %v543, 16
        %v660 = vrot.slane %v658, 1
        %v661 = vor.u32 %v656, %v660
        %v663 = vshll.u32 %v559, 16
        %v665 = vrot.slane %v663, 1
        %v666 = vsel %vm574, %v661, %v665
        %v668 = vshrl.u32 %v544, 16
        %v670 = vshll.u32 %v544, 16
        %v672 = vrot.slane %v670, 1
        %v673 = vor.u32 %v668, %v672
        %v675 = vshll.u32 %v560, 16
        %v677 = vrot.slane %v675, 1
        %v678 = vsel %vm574, %v673, %v677
        %v680 = vshrl.u32 %v545, 16
        %v682 = vshll.u32 %v545, 16
        %v684 = vrot.slane %v682, 1
        %v685 = vor.u32 %v680, %v684
        %v687 = vshll.u32 %v561, 16
        %v689 = vrot.slane %v687, 1
        %v690 = vsel %vm574, %v685, %v689
        %v692 = vshrl.u32 %v546, 16
        %v694 = vshll.u32 %v546, 16
        %v696 = vrot.slane %v694, 1
        %v697 = vor.u32 %v692, %v696
        %v699 = vshll.u32 %v562, 16
        %v701 = vrot.slane %v699, 1
        %v702 = vsel %vm574, %v697, %v701
        %v704 = vshrl.u32 %v547, 16
        %v706 = vshll.u32 %v547, 16
        %v708 = vrot.slane %v706, 1
        %v709 = vor.u32 %v704, %v708
        %v711 = vshll.u32 %v563, 16
        %v713 = vrot.slane %v711, 1
        %v714 = vsel %vm574, %v709, %v713
        %v716 = vshrl.u32 %v548, 16
        %v718 = vshll.u32 %v548, 16
        %v720 = vrot.slane %v718, 1
        %v721 = vor.u32 %v716, %v720
        %v723 = vshll.u32 %v564, 16
        %v725 = vrot.slane %v723, 1
        %v726 = vsel %vm574, %v721, %v725
        %v728 = vshrl.u32 %v549, 16
        %v730 = vshll.u32 %v549, 16
        %v732 = vrot.slane %v730, 1
        %v733 = vor.u32 %v728, %v732
        %v735 = vshll.u32 %v565, 16
        %v737 = vrot.slane %v735, 1
        %v738 = vsel %vm574, %v733, %v737
        %v740 = vshrl.u32 %v550, 16
        %v742 = vshll.u32 %v550, 16
        %v744 = vrot.slane %v742, 1
        %v745 = vor.u32 %v740, %v744
        %v747 = vshll.u32 %v566, 16
        %v749 = vrot.slane %v747, 1
        %v750 = vsel %vm574, %v745, %v749
        %v752 = vshrl.u32 %v551, 16
        %v754 = vshll.u32 %v551, 16
        %v756 = vrot.slane %v754, 1
        %v757 = vor.u32 %v752, %v756
        %v759 = vshll.u32 %v567, 16
        %v761 = vrot.slane %v759, 1
        %v762 = vsel %vm574, %v757, %v761
        %v764 = vunpack.c.l.b16 %v569
        %v765 = vpack.c.b16 %v764, %v764
        %v766 = vrot.slane %v765, 2
        %vm767 = vcmask 31744
        %v769 = vsel %vm767, %v582, 0
        %v772 = vsel %vm767, %v594, 0
        %v775 = vsel %vm767, %v606, 0
        %v778 = vsel %vm767, %v618, 0
        %v781 = vsel %vm767, %v630, 0
        %v784 = vsel %vm767, %v642, 0
        %v787 = vsel %vm767, %v654, 0
        %v790 = vsel %vm767, %v666, 0
        %v793 = vsel %vm767, %v678, 0
        %v796 = vsel %vm767, %v690, 0
        %v799 = vsel %vm767, %v702, 0
        %v802 = vsel %vm767, %v714, 0
        %v805 = vsel %vm767, %v726, 0
        %v808 = vsel %vm767, %v738, 0
        %v811 = vsel %vm767, %v750, 0
        %v814 = vsel %vm767, %v762, 0
        %vm816 = vcmask 1041408
        %v818 = vsel %vm816, %v766, 0
        %820 = vmatprep.subr.bf16.mxu0 0
        %821 = vmatpush1.bf16.msra.mxu0 0
        %822 = vmatprep.subr.bf16.mxu0 0
        %823 = vmatpush1.bf16.msra.mxu0 0
        %824 = vmatprep.subr.bf16.mxu0 0
        %825 = vmatpush1.bf16.msra.mxu0 0
        %826 = vmatprep.subr.bf16.mxu0 0
        %827 = vmatpush1.bf16.msra.mxu0 0
        %828 = vmatprep.subr.bf16.mxu0 0
        %829 = vmatpush1.bf16.msra.mxu0 0
        %830 = vmatprep.subr.bf16.mxu0 0
        %831 = vmatpush1.bf16.msra.mxu0 0
        %832 = vmatprep.subr.bf16.mxu0 0
        %833 = vmatpush1.bf16.msra.mxu0 0
        %834 = vmatprep.subr.bf16.mxu0 0
        %835 = vmatpush1.bf16.msra.mxu0 %v818
        %836 = vmatprep.subr.bf16.mxu0 0
        %837 = vmatpush2.bf16.msra.mxu0 0
        %838 = vmatprep.subr.bf16.mxu0 0
        %839 = vmatpush2.bf16.msra.mxu0 0
        %840 = vmatprep.subr.bf16.mxu0 0
        %841 = vmatpush2.bf16.msra.mxu0 0
        %842 = vmatprep.subr.bf16.mxu0 0
        %843 = vmatpush2.bf16.msra.mxu0 0
        %844 = vmatprep.subr.bf16.mxu0 0
        %845 = vmatpush2.bf16.msra.mxu0 0
        %846 = vmatprep.subr.bf16.mxu0 0
        %847 = vmatpush2.bf16.msra.mxu0 0
        %848 = vmatprep.subr.bf16.mxu0 0
        %849 = vmatpush2.bf16.msra.mxu0 0
        %850 = vmatprep.subr.bf16.mxu0 0
        %851 = vmatpush2.bf16.msra.mxu0 0
        %852 = vmatprep.mubr.bf16.mxu0 0
        %853 = vmatmul.mubr.bf16.gmra.mxu0 %v769
        %v854 = vpop.f32.mrf.mxu0
        %v855 = vadd.f32 0.0, %v854
        %v856 = vpop.f32.mrf.mxu0
        %v857 = vpop.f32.mrf.mxu0
        %v858 = vadd.f32 0.0, %v857
        %v859 = vpop.f32.mrf.mxu0
        %860 = vmatprep.mubr.bf16.mxu0 0
        %861 = vmatmul.mubr.bf16.gmra.mxu0 %v772
        %v862 = vpop.f32.mrf.mxu0
        %v863 = vadd.f32 0.0, %v862
        %v864 = vpop.f32.mrf.mxu0
        %v865 = vpop.f32.mrf.mxu0
        %v866 = vadd.f32 0.0, %v865
        %v867 = vpop.f32.mrf.mxu0
        %868 = vmatprep.mubr.bf16.mxu0 0
        %869 = vmatmul.mubr.bf16.gmra.mxu0 %v775
        %v870 = vpop.f32.mrf.mxu0
        %v871 = vadd.f32 0.0, %v870
        %v872 = vpop.f32.mrf.mxu0
        %v873 = vpop.f32.mrf.mxu0
        %v874 = vadd.f32 0.0, %v873
        %v875 = vpop.f32.mrf.mxu0
        %876 = vmatprep.mubr.bf16.mxu0 0
        %877 = vmatmul.mubr.bf16.gmra.mxu0 %v778
        %v878 = vpop.f32.mrf.mxu0
        %v879 = vadd.f32 0.0, %v878
        %v880 = vpop.f32.mrf.mxu0
        %v881 = vpop.f32.mrf.mxu0
        %v882 = vadd.f32 0.0, %v881
        %v883 = vpop.f32.mrf.mxu0
        %884 = vmatprep.mubr.bf16.mxu0 0
        %885 = vmatmul.mubr.bf16.gmra.mxu0 %v781
        %v886 = vpop.f32.mrf.mxu0
        %v887 = vadd.f32 0.0, %v886
        %v888 = vpop.f32.mrf.mxu0
        %v889 = vpop.f32.mrf.mxu0
        %v890 = vadd.f32 0.0, %v889
        %v891 = vpop.f32.mrf.mxu0
        %892 = vmatprep.mubr.bf16.mxu0 0
        %893 = vmatmul.mubr.bf16.gmra.mxu0 %v784
        %v894 = vpop.f32.mrf.mxu0
        %v895 = vadd.f32 0.0, %v894
        %v896 = vpop.f32.mrf.mxu0
        %v897 = vpop.f32.mrf.mxu0
        %v898 = vadd.f32 0.0, %v897
        %v899 = vpop.f32.mrf.mxu0
        %900 = vmatprep.mubr.bf16.mxu0 0
        %901 = vmatmul.mubr.bf16.gmra.mxu0 %v787
        %v902 = vpop.f32.mrf.mxu0
        %v903 = vadd.f32 0.0, %v902
        %v904 = vpop.f32.mrf.mxu0
        %v905 = vpop.f32.mrf.mxu0
        %v906 = vadd.f32 0.0, %v905
        %v907 = vpop.f32.mrf.mxu0
        %908 = vmatprep.mubr.bf16.mxu0 0
        %909 = vmatmul.mubr.bf16.gmra.mxu0 %v790
        %v910 = vpop.f32.mrf.mxu0
        %v911 = vadd.f32 0.0, %v910
        %v912 = vpop.f32.mrf.mxu0
        %v913 = vpop.f32.mrf.mxu0
        %v914 = vadd.f32 0.0, %v913
        %v915 = vpop.f32.mrf.mxu0
        %916 = vmatprep.mubr.bf16.mxu0 0
        %917 = vmatmul.mubr.bf16.gmra.mxu0 %v793
        %v918 = vpop.f32.mrf.mxu0
        %v919 = vadd.f32 0.0, %v918
        %v920 = vpop.f32.mrf.mxu0
        %v921 = vpop.f32.mrf.mxu0
        %v922 = vadd.f32 0.0, %v921
        %v923 = vpop.f32.mrf.mxu0
        %924 = vmatprep.mubr.bf16.mxu0 0
        %925 = vmatmul.mubr.bf16.gmra.mxu0 %v796
        %v926 = vpop.f32.mrf.mxu0
        %v927 = vadd.f32 0.0, %v926
        %v928 = vpop.f32.mrf.mxu0
        %v929 = vpop.f32.mrf.mxu0
        %v930 = vadd.f32 0.0, %v929
        %v931 = vpop.f32.mrf.mxu0
        %932 = vmatprep.mubr.bf16.mxu0 0
        %933 = vmatmul.mubr.bf16.gmra.mxu0 %v799
        %v934 = vpop.f32.mrf.mxu0
        %v935 = vadd.f32 0.0, %v934
        %v936 = vpop.f32.mrf.mxu0
        %v937 = vpop.f32.mrf.mxu0
        %v938 = vadd.f32 0.0, %v937
        %v939 = vpop.f32.mrf.mxu0
        %940 = vmatprep.mubr.bf16.mxu0 0
        %941 = vmatmul.mubr.bf16.gmra.mxu0 %v802
        %v942 = vpop.f32.mrf.mxu0
        %v943 = vadd.f32 0.0, %v942
        %v944 = vpop.f32.mrf.mxu0
        %v945 = vpop.f32.mrf.mxu0
        %v946 = vadd.f32 0.0, %v945
        %v947 = vpop.f32.mrf.mxu0
        %948 = vmatprep.mubr.bf16.mxu0 0
        %949 = vmatmul.mubr.bf16.gmra.mxu0 %v805
        %v950 = vpop.f32.mrf.mxu0
        %v951 = vadd.f32 0.0, %v950
        %v952 = vpop.f32.mrf.mxu0
        %v953 = vpop.f32.mrf.mxu0
        %v954 = vadd.f32 0.0, %v953
        %v955 = vpop.f32.mrf.mxu0
        %956 = vmatprep.mubr.bf16.mxu0 0
        %957 = vmatmul.mubr.bf16.gmra.mxu0 %v808
        %v958 = vpop.f32.mrf.mxu0
        %v959 = vadd.f32 0.0, %v958
        %v960 = vpop.f32.mrf.mxu0
        %v961 = vpop.f32.mrf.mxu0
        %v962 = vadd.f32 0.0, %v961
        %v963 = vpop.f32.mrf.mxu0
        %964 = vmatprep.mubr.bf16.mxu0 0
        %965 = vmatmul.mubr.bf16.gmra.mxu0 %v811
        %v966 = vpop.f32.mrf.mxu0
        %v967 = vadd.f32 0.0, %v966
        %v968 = vpop.f32.mrf.mxu0
        %v969 = vpop.f32.mrf.mxu0
        %v970 = vadd.f32 0.0, %v969
        %v971 = vpop.f32.mrf.mxu0
        %972 = vmatprep.mubr.bf16.mxu0 0
        %973 = vmatmul.mubr.bf16.gmra.mxu0 %v814
        %v974 = vpop.f32.mrf.mxu0
        %v975 = vadd.f32 0.0, %v974
        %v976 = vpop.f32.mrf.mxu0
        %v977 = vpop.f32.mrf.mxu0
        %v978 = vadd.f32 0.0, %v977
        %v979 = vpop.f32.mrf.mxu0
        %980 = vdwg.mxu0
        %v981 = vsel %vm767, 0, 0
        %v983 = vsel %vm767, %v537, 0
        %v985 = vsel %vm767, %v538, 0
        %v987 = vsel %vm767, %v539, 0
        %v989 = vsel %vm767, %v540, 0
        %v991 = vsel %vm767, %v541, 0
        %v993 = vsel %vm767, %v542, 0
        %v995 = vsel %vm767, %v543, 0
        %v997 = vsel %vm767, %v544, 0
        %v999 = vsel %vm767, %v545, 0
        %v1001 = vsel %vm767, %v546, 0
        %v1003 = vsel %vm767, %v547, 0
        %v1005 = vsel %vm767, %v548, 0
        %v1007 = vsel %vm767, %v549, 0
        %v1009 = vsel %vm767, %v550, 0
        %v1011 = vsel %vm767, %v551, 0
        %v1014 = vsel %vm816, %v569, 0
        %1016 = vmatprep.subr.bf16.mxu0 0
        %1017 = vmatpush1.bf16.msra.mxu0 0
        %1018 = vmatprep.subr.bf16.mxu0 0
        %1019 = vmatpush1.bf16.msra.mxu0 0
        %1020 = vmatprep.subr.bf16.mxu0 0
        %1021 = vmatpush1.bf16.msra.mxu0 0
        %1022 = vmatprep.subr.bf16.mxu0 0
        %1023 = vmatpush1.bf16.msra.mxu0 0
        %1024 = vmatprep.subr.bf16.mxu0 0
        %1025 = vmatpush1.bf16.msra.mxu0 0
        %1026 = vmatprep.subr.bf16.mxu0 0
        %1027 = vmatpush1.bf16.msra.mxu0 0
        %1028 = vmatprep.subr.bf16.mxu0 0
        %1029 = vmatpush1.bf16.msra.mxu0 0
        %1030 = vmatprep.subr.bf16.mxu0 0
        %1031 = vmatpush1.bf16.msra.mxu0 %v1014
        %1032 = vmatprep.subr.bf16.mxu0 0
        %1033 = vmatpush2.bf16.msra.mxu0 0
        %1034 = vmatprep.subr.bf16.mxu0 0
        %1035 = vmatpush2.bf16.msra.mxu0 0
        %1036 = vmatprep.subr.bf16.mxu0 0
        %1037 = vmatpush2.bf16.msra.mxu0 0
        %1038 = vmatprep.subr.bf16.mxu0 0
        %1039 = vmatpush2.bf16.msra.mxu0 0
        %1040 = vmatprep.subr.bf16.mxu0 0
        %1041 = vmatpush2.bf16.msra.mxu0 0
        %1042 = vmatprep.subr.bf16.mxu0 0
        %1043 = vmatpush2.bf16.msra.mxu0 0
        %1044 = vmatprep.subr.bf16.mxu0 0
        %1045 = vmatpush2.bf16.msra.mxu0 0
        %1046 = vmatprep.subr.bf16.mxu0 0
        %1047 = vmatpush2.bf16.msra.mxu0 0
        %1048 = vmatprep.mubr.bf16.mxu0 0
        %1049 = vmatmul.mubr.bf16.gmra.mxu0 %v981
        %v1050 = vpop.f32.mrf.mxu0
        %v1051 = vadd.f32 %v855, %v1050
        %v1052 = vpop.f32.mrf.mxu0
        %v1053 = vpop.f32.mrf.mxu0
        %v1054 = vadd.f32 %v858, %v1053
        %v1055 = vpop.f32.mrf.mxu0
        %1056 = vmatprep.mubr.bf16.mxu0 0
        %1057 = vmatmul.mubr.bf16.gmra.mxu0 %v983
        %v1058 = vpop.f32.mrf.mxu0
        %v1059 = vadd.f32 %v863, %v1058
        %v1060 = vpop.f32.mrf.mxu0
        %v1061 = vpop.f32.mrf.mxu0
        %v1062 = vadd.f32 %v866, %v1061
        %v1063 = vpop.f32.mrf.mxu0
        %1064 = vmatprep.mubr.bf16.mxu0 0
        %1065 = vmatmul.mubr.bf16.gmra.mxu0 %v985
        %v1066 = vpop.f32.mrf.mxu0
        %v1067 = vadd.f32 %v871, %v1066
        %v1068 = vpop.f32.mrf.mxu0
        %v1069 = vpop.f32.mrf.mxu0
        %v1070 = vadd.f32 %v874, %v1069
        %v1071 = vpop.f32.mrf.mxu0
        %1072 = vmatprep.mubr.bf16.mxu0 0
        %1073 = vmatmul.mubr.bf16.gmra.mxu0 %v987
        %v1074 = vpop.f32.mrf.mxu0
        %v1075 = vadd.f32 %v879, %v1074
        %v1076 = vpop.f32.mrf.mxu0
        %v1077 = vpop.f32.mrf.mxu0
        %v1078 = vadd.f32 %v882, %v1077
        %v1079 = vpop.f32.mrf.mxu0
        %1080 = vmatprep.mubr.bf16.mxu0 0
        %1081 = vmatmul.mubr.bf16.gmra.mxu0 %v989
        %v1082 = vpop.f32.mrf.mxu0
        %v1083 = vadd.f32 %v887, %v1082
        %v1084 = vpop.f32.mrf.mxu0
        %v1085 = vpop.f32.mrf.mxu0
        %v1086 = vadd.f32 %v890, %v1085
        %v1087 = vpop.f32.mrf.mxu0
        %1088 = vmatprep.mubr.bf16.mxu0 0
        %1089 = vmatmul.mubr.bf16.gmra.mxu0 %v991
        %v1090 = vpop.f32.mrf.mxu0
        %v1091 = vadd.f32 %v895, %v1090
        %v1092 = vpop.f32.mrf.mxu0
        %v1093 = vpop.f32.mrf.mxu0
        %v1094 = vadd.f32 %v898, %v1093
        %v1095 = vpop.f32.mrf.mxu0
        %1096 = vmatprep.mubr.bf16.mxu0 0
        %1097 = vmatmul.mubr.bf16.gmra.mxu0 %v993
        %v1098 = vpop.f32.mrf.mxu0
        %v1099 = vadd.f32 %v903, %v1098
        %v1100 = vpop.f32.mrf.mxu0
        %v1101 = vpop.f32.mrf.mxu0
        %v1102 = vadd.f32 %v906, %v1101
        %v1103 = vpop.f32.mrf.mxu0
        %1104 = vmatprep.mubr.bf16.mxu0 0
        %1105 = vmatmul.mubr.bf16.gmra.mxu0 %v995
        %v1106 = vpop.f32.mrf.mxu0
        %v1107 = vadd.f32 %v911, %v1106
        %v1108 = vpop.f32.mrf.mxu0
        %v1109 = vpop.f32.mrf.mxu0
        %v1110 = vadd.f32 %v914, %v1109
        %v1111 = vpop.f32.mrf.mxu0
        %1112 = vmatprep.mubr.bf16.mxu0 0
        %1113 = vmatmul.mubr.bf16.gmra.mxu0 %v997
        %v1114 = vpop.f32.mrf.mxu0
        %v1115 = vadd.f32 %v919, %v1114
        %v1116 = vpop.f32.mrf.mxu0
        %v1117 = vpop.f32.mrf.mxu0
        %v1118 = vadd.f32 %v922, %v1117
        %v1119 = vpop.f32.mrf.mxu0
        %1120 = vmatprep.mubr.bf16.mxu0 0
        %1121 = vmatmul.mubr.bf16.gmra.mxu0 %v999
        %v1122 = vpop.f32.mrf.mxu0
        %v1123 = vadd.f32 %v927, %v1122
        %v1124 = vpop.f32.mrf.mxu0
        %v1125 = vpop.f32.mrf.mxu0
        %v1126 = vadd.f32 %v930, %v1125
        %v1127 = vpop.f32.mrf.mxu0
        %1128 = vmatprep.mubr.bf16.mxu0 0
        %1129 = vmatmul.mubr.bf16.gmra.mxu0 %v1001
        %v1130 = vpop.f32.mrf.mxu0
        %v1131 = vadd.f32 %v935, %v1130
        %v1132 = vpop.f32.mrf.mxu0
        %v1133 = vpop.f32.mrf.mxu0
        %v1134 = vadd.f32 %v938, %v1133
        %v1135 = vpop.f32.mrf.mxu0
        %1136 = vmatprep.mubr.bf16.mxu0 0
        %1137 = vmatmul.mubr.bf16.gmra.mxu0 %v1003
        %v1138 = vpop.f32.mrf.mxu0
        %v1139 = vadd.f32 %v943, %v1138
        %v1140 = vpop.f32.mrf.mxu0
        %v1141 = vpop.f32.mrf.mxu0
        %v1142 = vadd.f32 %v946, %v1141
        %v1143 = vpop.f32.mrf.mxu0
        %1144 = vmatprep.mubr.bf16.mxu0 0
        %1145 = vmatmul.mubr.bf16.gmra.mxu0 %v1005
        %v1146 = vpop.f32.mrf.mxu0
        %v1147 = vadd.f32 %v951, %v1146
        %v1148 = vpop.f32.mrf.mxu0
        %v1149 = vpop.f32.mrf.mxu0
        %v1150 = vadd.f32 %v954, %v1149
        %v1151 = vpop.f32.mrf.mxu0
        %1152 = vmatprep.mubr.bf16.mxu0 0
        %1153 = vmatmul.mubr.bf16.gmra.mxu0 %v1007
        %v1154 = vpop.f32.mrf.mxu0
        %v1155 = vadd.f32 %v959, %v1154
        %v1156 = vpop.f32.mrf.mxu0
        %v1157 = vpop.f32.mrf.mxu0
        %v1158 = vadd.f32 %v962, %v1157
        %v1159 = vpop.f32.mrf.mxu0
        %1160 = vmatprep.mubr.bf16.mxu0 0
        %1161 = vmatmul.mubr.bf16.gmra.mxu0 %v1009
        %v1162 = vpop.f32.mrf.mxu0
        %v1163 = vadd.f32 %v967, %v1162
        %v1164 = vpop.f32.mrf.mxu0
        %v1165 = vpop.f32.mrf.mxu0
        %v1166 = vadd.f32 %v970, %v1165
        %v1167 = vpop.f32.mrf.mxu0
        %1168 = vmatprep.mubr.bf16.mxu0 0
        %1169 = vmatmul.mubr.bf16.gmra.mxu0 %v1011
        %v1170 = vpop.f32.mrf.mxu0
        %v1171 = vadd.f32 %v975, %v1170
        %v1172 = vpop.f32.mrf.mxu0
        %v1173 = vpop.f32.mrf.mxu0
        %v1174 = vadd.f32 %v978, %v1173
        %v1175 = vpop.f32.mrf.mxu0
        %1176 = vdwg.mxu0
        %vm1208 = vcmask 1046528
        %v1209 = vrot.slane 0, 1
        %v1210 = vsel %vm1208, %v1209, %v1209
        %v1211 = vrot.slane %v537, 1
        %v1212 = vrot.slane %v553, 1
        %v1213 = vsel %vm1208, %v1211, %v1212
        %v1214 = vrot.slane %v538, 1
        %v1215 = vrot.slane %v554, 1
        %v1216 = vsel %vm1208, %v1214, %v1215
        %v1217 = vrot.slane %v539, 1
        %v1218 = vrot.slane %v555, 1
        %v1219 = vsel %vm1208, %v1217, %v1218
        %v1220 = vrot.slane %v540, 1
        %v1221 = vrot.slane %v556, 1
        %v1222 = vsel %vm1208, %v1220, %v1221
        %v1223 = vrot.slane %v541, 1
        %v1224 = vrot.slane %v557, 1
        %v1225 = vsel %vm1208, %v1223, %v1224
        %v1226 = vrot.slane %v542, 1
        %v1227 = vrot.slane %v558, 1
        %v1228 = vsel %vm1208, %v1226, %v1227
        %v1229 = vrot.slane %v543, 1
        %v1230 = vrot.slane %v559, 1
        %v1231 = vsel %vm1208, %v1229, %v1230
        %v1232 = vrot.slane %v544, 1
        %v1233 = vrot.slane %v560, 1
        %v1234 = vsel %vm1208, %v1232, %v1233
        %v1235 = vrot.slane %v545, 1
        %v1236 = vrot.slane %v561, 1
        %v1237 = vsel %vm1208, %v1235, %v1236
        %v1238 = vrot.slane %v546, 1
        %v1239 = vrot.slane %v562, 1
        %v1240 = vsel %vm1208, %v1238, %v1239
        %v1241 = vrot.slane %v547, 1
        %v1242 = vrot.slane %v563, 1
        %v1243 = vsel %vm1208, %v1241, %v1242
        %v1244 = vrot.slane %v548, 1
        %v1245 = vrot.slane %v564, 1
        %v1246 = vsel %vm1208, %v1244, %v1245
        %v1247 = vrot.slane %v549, 1
        %v1248 = vrot.slane %v565, 1
        %v1249 = vsel %vm1208, %v1247, %v1248
        %v1250 = vrot.slane %v550, 1
        %v1251 = vrot.slane %v566, 1
        %v1252 = vsel %vm1208, %v1250, %v1251
        %v1253 = vrot.slane %v551, 1
        %v1254 = vrot.slane %v567, 1
        %v1255 = vsel %vm1208, %v1253, %v1254
        %v1257 = vsel %vm767, %v1210, 0
        %v1260 = vsel %vm767, %v1213, 0
        %v1263 = vsel %vm767, %v1216, 0
        %v1266 = vsel %vm767, %v1219, 0
        %v1269 = vsel %vm767, %v1222, 0
        %v1272 = vsel %vm767, %v1225, 0
        %v1275 = vsel %vm767, %v1228, 0
        %v1278 = vsel %vm767, %v1231, 0
        %v1281 = vsel %vm767, %v1234, 0
        %v1284 = vsel %vm767, %v1237, 0
        %v1287 = vsel %vm767, %v1240, 0
        %v1290 = vsel %vm767, %v1243, 0
        %v1293 = vsel %vm767, %v1246, 0
        %v1296 = vsel %vm767, %v1249, 0
        %v1299 = vsel %vm767, %v1252, 0
        %v1302 = vsel %vm767, %v1255, 0
        %v1305 = vsel %vm816, %v570, 0
        %1307 = vmatprep.subr.bf16.mxu0 0
        %1308 = vmatpush1.bf16.msra.mxu0 0
        %1309 = vmatprep.subr.bf16.mxu0 0
        %1310 = vmatpush1.bf16.msra.mxu0 0
        %1311 = vmatprep.subr.bf16.mxu0 0
        %1312 = vmatpush1.bf16.msra.mxu0 0
        %1313 = vmatprep.subr.bf16.mxu0 0
        %1314 = vmatpush1.bf16.msra.mxu0 0
        %1315 = vmatprep.subr.bf16.mxu0 0
        %1316 = vmatpush1.bf16.msra.mxu0 0
        %1317 = vmatprep.subr.bf16.mxu0 0
        %1318 = vmatpush1.bf16.msra.mxu0 0
        %1319 = vmatprep.subr.bf16.mxu0 0
        %1320 = vmatpush1.bf16.msra.mxu0 0
        %1321 = vmatprep.subr.bf16.mxu0 0
        %1322 = vmatpush1.bf16.msra.mxu0 %v1305
        %1323 = vmatprep.subr.bf16.mxu0 0
        %1324 = vmatpush2.bf16.msra.mxu0 0
        %1325 = vmatprep.subr.bf16.mxu0 0
        %1326 = vmatpush2.bf16.msra.mxu0 0
        %1327 = vmatprep.subr.bf16.mxu0 0
        %1328 = vmatpush2.bf16.msra.mxu0 0
        %1329 = vmatprep.subr.bf16.mxu0 0
        %1330 = vmatpush2.bf16.msra.mxu0 0
        %1331 = vmatprep.subr.bf16.mxu0 0
        %1332 = vmatpush2.bf16.msra.mxu0 0
        %1333 = vmatprep.subr.bf16.mxu0 0
        %1334 = vmatpush2.bf16.msra.mxu0 0
        %1335 = vmatprep.subr.bf16.mxu0 0
        %1336 = vmatpush2.bf16.msra.mxu0 0
        %1337 = vmatprep.subr.bf16.mxu0 0
        %1338 = vmatpush2.bf16.msra.mxu0 0
        %1339 = vmatprep.mubr.bf16.mxu0 0
        %1340 = vmatmul.mubr.bf16.gmra.mxu0 %v1257
        %v1341 = vpop.f32.mrf.mxu0
        %v1342 = vadd.f32 0.0, %v1341
        %v1343 = vpop.f32.mrf.mxu0
        %v1344 = vpop.f32.mrf.mxu0
        %v1345 = vadd.f32 0.0, %v1344
        %v1346 = vpop.f32.mrf.mxu0
        %1347 = vmatprep.mubr.bf16.mxu0 0
        %1348 = vmatmul.mubr.bf16.gmra.mxu0 %v1260
        %v1349 = vpop.f32.mrf.mxu0
        %v1350 = vadd.f32 0.0, %v1349
        %v1351 = vpop.f32.mrf.mxu0
        %v1352 = vpop.f32.mrf.mxu0
        %v1353 = vadd.f32 0.0, %v1352
        %v1354 = vpop.f32.mrf.mxu0
        %1355 = vmatprep.mubr.bf16.mxu0 0
        %1356 = vmatmul.mubr.bf16.gmra.mxu0 %v1263
        %v1357 = vpop.f32.mrf.mxu0
        %v1358 = vadd.f32 0.0, %v1357
        %v1359 = vpop.f32.mrf.mxu0
        %v1360 = vpop.f32.mrf.mxu0
        %v1361 = vadd.f32 0.0, %v1360
        %v1362 = vpop.f32.mrf.mxu0
        %1363 = vmatprep.mubr.bf16.mxu0 0
        %1364 = vmatmul.mubr.bf16.gmra.mxu0 %v1266
        %v1365 = vpop.f32.mrf.mxu0
        %v1366 = vadd.f32 0.0, %v1365
        %v1367 = vpop.f32.mrf.mxu0
        %v1368 = vpop.f32.mrf.mxu0
        %v1369 = vadd.f32 0.0, %v1368
        %v1370 = vpop.f32.mrf.mxu0
        %1371 = vmatprep.mubr.bf16.mxu0 0
        %1372 = vmatmul.mubr.bf16.gmra.mxu0 %v1269
        %v1373 = vpop.f32.mrf.mxu0
        %v1374 = vadd.f32 0.0, %v1373
        %v1375 = vpop.f32.mrf.mxu0
        %v1376 = vpop.f32.mrf.mxu0
        %v1377 = vadd.f32 0.0, %v1376
        %v1378 = vpop.f32.mrf.mxu0
        %1379 = vmatprep.mubr.bf16.mxu0 0
        %1380 = vmatmul.mubr.bf16.gmra.mxu0 %v1272
        %v1381 = vpop.f32.mrf.mxu0
        %v1382 = vadd.f32 0.0, %v1381
        %v1383 = vpop.f32.mrf.mxu0
        %v1384 = vpop.f32.mrf.mxu0
        %v1385 = vadd.f32 0.0, %v1384
        %v1386 = vpop.f32.mrf.mxu0
        %1387 = vmatprep.mubr.bf16.mxu0 0
        %1388 = vmatmul.mubr.bf16.gmra.mxu0 %v1275
        %v1389 = vpop.f32.mrf.mxu0
        %v1390 = vadd.f32 0.0, %v1389
        %v1391 = vpop.f32.mrf.mxu0
        %v1392 = vpop.f32.mrf.mxu0
        %v1393 = vadd.f32 0.0, %v1392
        %v1394 = vpop.f32.mrf.mxu0
        %1395 = vmatprep.mubr.bf16.mxu0 0
        %1396 = vmatmul.mubr.bf16.gmra.mxu0 %v1278
        %v1397 = vpop.f32.mrf.mxu0
        %v1398 = vadd.f32 0.0, %v1397
        %v1399 = vpop.f32.mrf.mxu0
        %v1400 = vpop.f32.mrf.mxu0
        %v1401 = vadd.f32 0.0, %v1400
        %v1402 = vpop.f32.mrf.mxu0
        %1403 = vmatprep.mubr.bf16.mxu0 0
        %1404 = vmatmul.mubr.bf16.gmra.mxu0 %v1281
        %v1405 = vpop.f32.mrf.mxu0
        %v1406 = vadd.f32 0.0, %v1405
        %v1407 = vpop.f32.mrf.mxu0
        %v1408 = vpop.f32.mrf.mxu0
        %v1409 = vadd.f32 0.0, %v1408
        %v1410 = vpop.f32.mrf.mxu0
        %1411 = vmatprep.mubr.bf16.mxu0 0
        %1412 = vmatmul.mubr.bf16.gmra.mxu0 %v1284
        %v1413 = vpop.f32.mrf.mxu0
        %v1414 = vadd.f32 0.0, %v1413
        %v1415 = vpop.f32.mrf.mxu0
        %v1416 = vpop.f32.mrf.mxu0
        %v1417 = vadd.f32 0.0, %v1416
        %v1418 = vpop.f32.mrf.mxu0
        %1419 = vmatprep.mubr.bf16.mxu0 0
        %1420 = vmatmul.mubr.bf16.gmra.mxu0 %v1287
        %v1421 = vpop.f32.mrf.mxu0
        %v1422 = vadd.f32 0.0, %v1421
        %v1423 = vpop.f32.mrf.mxu0
        %v1424 = vpop.f32.mrf.mxu0
        %v1425 = vadd.f32 0.0, %v1424
        %v1426 = vpop.f32.mrf.mxu0
        %1427 = vmatprep.mubr.bf16.mxu0 0
        %1428 = vmatmul.mubr.bf16.gmra.mxu0 %v1290
        %v1429 = vpop.f32.mrf.mxu0
        %v1430 = vadd.f32 0.0, %v1429
        %v1431 = vpop.f32.mrf.mxu0
        %v1432 = vpop.f32.mrf.mxu0
        %v1433 = vadd.f32 0.0, %v1432
        %v1434 = vpop.f32.mrf.mxu0
        %1435 = vmatprep.mubr.bf16.mxu0 0
        %1436 = vmatmul.mubr.bf16.gmra.mxu0 %v1293
        %v1437 = vpop.f32.mrf.mxu0
        %v1438 = vadd.f32 0.0, %v1437
        %v1439 = vpop.f32.mrf.mxu0
        %v1440 = vpop.f32.mrf.mxu0
        %v1441 = vadd.f32 0.0, %v1440
        %v1442 = vpop.f32.mrf.mxu0
        %1443 = vmatprep.mubr.bf16.mxu0 0
        %1444 = vmatmul.mubr.bf16.gmra.mxu0 %v1296
        %v1445 = vpop.f32.mrf.mxu0
        %v1446 = vadd.f32 0.0, %v1445
        %v1447 = vpop.f32.mrf.mxu0
        %v1448 = vpop.f32.mrf.mxu0
        %v1449 = vadd.f32 0.0, %v1448
        %v1450 = vpop.f32.mrf.mxu0
        %1451 = vmatprep.mubr.bf16.mxu0 0
        %1452 = vmatmul.mubr.bf16.gmra.mxu0 %v1299
        %v1453 = vpop.f32.mrf.mxu0
        %v1454 = vadd.f32 0.0, %v1453
        %v1455 = vpop.f32.mrf.mxu0
        %v1456 = vpop.f32.mrf.mxu0
        %v1457 = vadd.f32 0.0, %v1456
        %v1458 = vpop.f32.mrf.mxu0
        %1459 = vmatprep.mubr.bf16.mxu0 0
        %1460 = vmatmul.mubr.bf16.gmra.mxu0 %v1302
        %v1461 = vpop.f32.mrf.mxu0
        %v1462 = vadd.f32 0.0, %v1461
        %v1463 = vpop.f32.mrf.mxu0
        %v1464 = vpop.f32.mrf.mxu0
        %v1465 = vadd.f32 0.0, %v1464
        %v1466 = vpop.f32.mrf.mxu0
        %1467 = vdwg.mxu0
        %v1468 = vadd.f32 %v1051, %v1342
        %v1469 = vadd.f32 %v1054, %v1345
        %v1470 = vadd.f32 %v1059, %v1350
        %v1471 = vadd.f32 %v1062, %v1353
        %v1472 = vadd.f32 %v1067, %v1358
        %v1473 = vadd.f32 %v1070, %v1361
        %v1474 = vadd.f32 %v1075, %v1366
        %v1475 = vadd.f32 %v1078, %v1369
        %v1476 = vadd.f32 %v1083, %v1374
        %v1477 = vadd.f32 %v1086, %v1377
        %v1478 = vadd.f32 %v1091, %v1382
        %v1479 = vadd.f32 %v1094, %v1385
        %v1480 = vadd.f32 %v1099, %v1390
        %v1481 = vadd.f32 %v1102, %v1393
        %v1482 = vadd.f32 %v1107, %v1398
        %v1483 = vadd.f32 %v1110, %v1401
        %v1484 = vadd.f32 %v1115, %v1406
        %v1485 = vadd.f32 %v1118, %v1409
        %v1486 = vadd.f32 %v1123, %v1414
        %v1487 = vadd.f32 %v1126, %v1417
        %v1488 = vadd.f32 %v1131, %v1422
        %v1489 = vadd.f32 %v1134, %v1425
        %v1490 = vadd.f32 %v1139, %v1430
        %v1491 = vadd.f32 %v1142, %v1433
        %v1492 = vadd.f32 %v1147, %v1438
        %v1493 = vadd.f32 %v1150, %v1441
        %v1494 = vadd.f32 %v1155, %v1446
        %v1495 = vadd.f32 %v1158, %v1449
        %v1496 = vadd.f32 %v1163, %v1454
        %v1497 = vadd.f32 %v1166, %v1457
        %v1498 = vadd.f32 %v1171, %v1462
        %v1499 = vadd.f32 %v1174, %v1465
        %v1501 = vunpack.c.l.b16 %v570
        %v1502 = vpack.c.b16 %v1501, %v1501
        %v1503 = vrot.slane %v1502, 2
        %v1505 = vsel %vm767, %v552, 0
        %v1508 = vsel %vm816, %v1503, 0
        %1510 = vmatprep.subr.bf16.mxu0 0
        %1511 = vmatpush1.bf16.msra.mxu0 0
        %1512 = vmatprep.subr.bf16.mxu0 0
        %1513 = vmatpush1.bf16.msra.mxu0 0
        %1514 = vmatprep.subr.bf16.mxu0 0
        %1515 = vmatpush1.bf16.msra.mxu0 0
        %1516 = vmatprep.subr.bf16.mxu0 0
        %1517 = vmatpush1.bf16.msra.mxu0 0
        %1518 = vmatprep.subr.bf16.mxu0 0
        %1519 = vmatpush1.bf16.msra.mxu0 0
        %1520 = vmatprep.subr.bf16.mxu0 0
        %1521 = vmatpush1.bf16.msra.mxu0 0
        %1522 = vmatprep.subr.bf16.mxu0 0
        %1523 = vmatpush1.bf16.msra.mxu0 0
        %1524 = vmatprep.subr.bf16.mxu0 0
        %1525 = vmatpush1.bf16.msra.mxu0 %v1508
        %1526 = vmatprep.subr.bf16.mxu0 0
        %1527 = vmatpush2.bf16.msra.mxu0 0
        %1528 = vmatprep.subr.bf16.mxu0 0
        %1529 = vmatpush2.bf16.msra.mxu0 0
        %1530 = vmatprep.subr.bf16.mxu0 0
        %1531 = vmatpush2.bf16.msra.mxu0 0
        %1532 = vmatprep.subr.bf16.mxu0 0
        %1533 = vmatpush2.bf16.msra.mxu0 0
        %1534 = vmatprep.subr.bf16.mxu0 0
        %1535 = vmatpush2.bf16.msra.mxu0 0
        %1536 = vmatprep.subr.bf16.mxu0 0
        %1537 = vmatpush2.bf16.msra.mxu0 0
        %1538 = vmatprep.subr.bf16.mxu0 0
        %1539 = vmatpush2.bf16.msra.mxu0 0
        %1540 = vmatprep.subr.bf16.mxu0 0
        %1541 = vmatpush2.bf16.msra.mxu0 0
        %1542 = vmatprep.mubr.bf16.mxu0 0
        %1543 = vmatmul.mubr.bf16.gmra.mxu0 %v983
        %v1544 = vpop.f32.mrf.mxu0
        %v1545 = vadd.f32 0.0, %v1544
        %v1546 = vpop.f32.mrf.mxu0
        %v1547 = vpop.f32.mrf.mxu0
        %v1548 = vadd.f32 0.0, %v1547
        %v1549 = vpop.f32.mrf.mxu0
        %1550 = vmatprep.mubr.bf16.mxu0 0
        %1551 = vmatmul.mubr.bf16.gmra.mxu0 %v985
        %v1552 = vpop.f32.mrf.mxu0
        %v1553 = vadd.f32 0.0, %v1552
        %v1554 = vpop.f32.mrf.mxu0
        %v1555 = vpop.f32.mrf.mxu0
        %v1556 = vadd.f32 0.0, %v1555
        %v1557 = vpop.f32.mrf.mxu0
        %1558 = vmatprep.mubr.bf16.mxu0 0
        %1559 = vmatmul.mubr.bf16.gmra.mxu0 %v987
        %v1560 = vpop.f32.mrf.mxu0
        %v1561 = vadd.f32 0.0, %v1560
        %v1562 = vpop.f32.mrf.mxu0
        %v1563 = vpop.f32.mrf.mxu0
        %v1564 = vadd.f32 0.0, %v1563
        %v1565 = vpop.f32.mrf.mxu0
        %1566 = vmatprep.mubr.bf16.mxu0 0
        %1567 = vmatmul.mubr.bf16.gmra.mxu0 %v989
        %v1568 = vpop.f32.mrf.mxu0
        %v1569 = vadd.f32 0.0, %v1568
        %v1570 = vpop.f32.mrf.mxu0
        %v1571 = vpop.f32.mrf.mxu0
        %v1572 = vadd.f32 0.0, %v1571
        %v1573 = vpop.f32.mrf.mxu0
        %1574 = vmatprep.mubr.bf16.mxu0 0
        %1575 = vmatmul.mubr.bf16.gmra.mxu0 %v991
        %v1576 = vpop.f32.mrf.mxu0
        %v1577 = vadd.f32 0.0, %v1576
        %v1578 = vpop.f32.mrf.mxu0
        %v1579 = vpop.f32.mrf.mxu0
        %v1580 = vadd.f32 0.0, %v1579
        %v1581 = vpop.f32.mrf.mxu0
        %1582 = vmatprep.mubr.bf16.mxu0 0
        %1583 = vmatmul.mubr.bf16.gmra.mxu0 %v993
        %v1584 = vpop.f32.mrf.mxu0
        %v1585 = vadd.f32 0.0, %v1584
        %v1586 = vpop.f32.mrf.mxu0
        %v1587 = vpop.f32.mrf.mxu0
        %v1588 = vadd.f32 0.0, %v1587
        %v1589 = vpop.f32.mrf.mxu0
        %1590 = vmatprep.mubr.bf16.mxu0 0
        %1591 = vmatmul.mubr.bf16.gmra.mxu0 %v995
        %v1592 = vpop.f32.mrf.mxu0
        %v1593 = vadd.f32 0.0, %v1592
        %v1594 = vpop.f32.mrf.mxu0
        %v1595 = vpop.f32.mrf.mxu0
        %v1596 = vadd.f32 0.0, %v1595
        %v1597 = vpop.f32.mrf.mxu0
        %1598 = vmatprep.mubr.bf16.mxu0 0
        %1599 = vmatmul.mubr.bf16.gmra.mxu0 %v997
        %v1600 = vpop.f32.mrf.mxu0
        %v1601 = vadd.f32 0.0, %v1600
        %v1602 = vpop.f32.mrf.mxu0
        %v1603 = vpop.f32.mrf.mxu0
        %v1604 = vadd.f32 0.0, %v1603
        %v1605 = vpop.f32.mrf.mxu0
        %1606 = vmatprep.mubr.bf16.mxu0 0
        %1607 = vmatmul.mubr.bf16.gmra.mxu0 %v999
        %v1608 = vpop.f32.mrf.mxu0
        %v1609 = vadd.f32 0.0, %v1608
        %v1610 = vpop.f32.mrf.mxu0
        %v1611 = vpop.f32.mrf.mxu0
        %v1612 = vadd.f32 0.0, %v1611
        %v1613 = vpop.f32.mrf.mxu0
        %1614 = vmatprep.mubr.bf16.mxu0 0
        %1615 = vmatmul.mubr.bf16.gmra.mxu0 %v1001
        %v1616 = vpop.f32.mrf.mxu0
        %v1617 = vadd.f32 0.0, %v1616
        %v1618 = vpop.f32.mrf.mxu0
        %v1619 = vpop.f32.mrf.mxu0
        %v1620 = vadd.f32 0.0, %v1619
        %v1621 = vpop.f32.mrf.mxu0
        %1622 = vmatprep.mubr.bf16.mxu0 0
        %1623 = vmatmul.mubr.bf16.gmra.mxu0 %v1003
        %v1624 = vpop.f32.mrf.mxu0
        %v1625 = vadd.f32 0.0, %v1624
        %v1626 = vpop.f32.mrf.mxu0
        %v1627 = vpop.f32.mrf.mxu0
        %v1628 = vadd.f32 0.0, %v1627
        %v1629 = vpop.f32.mrf.mxu0
        %1630 = vmatprep.mubr.bf16.mxu0 0
        %1631 = vmatmul.mubr.bf16.gmra.mxu0 %v1005
        %v1632 = vpop.f32.mrf.mxu0
        %v1633 = vadd.f32 0.0, %v1632
        %v1634 = vpop.f32.mrf.mxu0
        %v1635 = vpop.f32.mrf.mxu0
        %v1636 = vadd.f32 0.0, %v1635
        %v1637 = vpop.f32.mrf.mxu0
        %1638 = vmatprep.mubr.bf16.mxu0 0
        %1639 = vmatmul.mubr.bf16.gmra.mxu0 %v1007
        %v1640 = vpop.f32.mrf.mxu0
        %v1641 = vadd.f32 0.0, %v1640
        %v1642 = vpop.f32.mrf.mxu0
        %v1643 = vpop.f32.mrf.mxu0
        %v1644 = vadd.f32 0.0, %v1643
        %v1645 = vpop.f32.mrf.mxu0
        %1646 = vmatprep.mubr.bf16.mxu0 0
        %1647 = vmatmul.mubr.bf16.gmra.mxu0 %v1009
        %v1648 = vpop.f32.mrf.mxu0
        %v1649 = vadd.f32 0.0, %v1648
        %v1650 = vpop.f32.mrf.mxu0
        %v1651 = vpop.f32.mrf.mxu0
        %v1652 = vadd.f32 0.0, %v1651
        %v1653 = vpop.f32.mrf.mxu0
        %1654 = vmatprep.mubr.bf16.mxu0 0
        %1655 = vmatmul.mubr.bf16.gmra.mxu0 %v1011
        %v1656 = vpop.f32.mrf.mxu0
        %v1657 = vadd.f32 0.0, %v1656
        %v1658 = vpop.f32.mrf.mxu0
        %v1659 = vpop.f32.mrf.mxu0
        %v1660 = vadd.f32 0.0, %v1659
        %v1661 = vpop.f32.mrf.mxu0
        %1662 = vmatprep.mubr.bf16.mxu0 0
        %1663 = vmatmul.mubr.bf16.gmra.mxu0 %v1505
        %v1664 = vpop.f32.mrf.mxu0
        %v1665 = vadd.f32 0.0, %v1664
        %v1666 = vpop.f32.mrf.mxu0
        %v1667 = vpop.f32.mrf.mxu0
        %v1668 = vadd.f32 0.0, %v1667
        %v1669 = vpop.f32.mrf.mxu0
        %1670 = vdwg.mxu0
        %v1671 = vadd.f32 %v1468, %v1545
        %v1672 = vadd.f32 %v1469, %v1548
        %v1673 = vadd.f32 %v1470, %v1553
        %v1674 = vadd.f32 %v1471, %v1556
        %v1675 = vadd.f32 %v1472, %v1561
        %v1676 = vadd.f32 %v1473, %v1564
        %v1677 = vadd.f32 %v1474, %v1569
        %v1678 = vadd.f32 %v1475, %v1572
        %v1679 = vadd.f32 %v1476, %v1577
        %v1680 = vadd.f32 %v1477, %v1580
        %v1681 = vadd.f32 %v1478, %v1585
        %v1682 = vadd.f32 %v1479, %v1588
        %v1683 = vadd.f32 %v1480, %v1593
        %v1684 = vadd.f32 %v1481, %v1596
        %v1685 = vadd.f32 %v1482, %v1601
        %v1686 = vadd.f32 %v1483, %v1604
        %v1687 = vadd.f32 %v1484, %v1609
        %v1688 = vadd.f32 %v1485, %v1612
        %v1689 = vadd.f32 %v1486, %v1617
        %v1690 = vadd.f32 %v1487, %v1620
        %v1691 = vadd.f32 %v1488, %v1625
        %v1692 = vadd.f32 %v1489, %v1628
        %v1693 = vadd.f32 %v1490, %v1633
        %v1694 = vadd.f32 %v1491, %v1636
        %v1695 = vadd.f32 %v1492, %v1641
        %v1696 = vadd.f32 %v1493, %v1644
        %v1697 = vadd.f32 %v1494, %v1649
        %v1698 = vadd.f32 %v1495, %v1652
        %v1699 = vadd.f32 %v1496, %v1657
        %v1700 = vadd.f32 %v1497, %v1660
        %v1701 = vadd.f32 %v1498, %v1665
        %v1702 = vadd.f32 %v1499, %v1668
        %v1703 = vshrl.u32 %v552, 16
        %v1705 = vshll.u32 %v552, 16
        %v1707 = vrot.slane %v1705, 1
        %v1708 = vor.u32 %v1703, %v1707
        %v1710 = vshll.u32 %v568, 16
        %v1712 = vrot.slane %v1710, 1
        %v1713 = vsel %vm574, %v1708, %v1712
        %v1715 = vsel %vm767, %v1713, 0
        %v1718 = vsel %vm816, %v571, 0
        %1720 = vmatprep.subr.bf16.mxu0 0
        %1721 = vmatpush1.bf16.msra.mxu0 0
        %1722 = vmatprep.subr.bf16.mxu0 0
        %1723 = vmatpush1.bf16.msra.mxu0 0
        %1724 = vmatprep.subr.bf16.mxu0 0
        %1725 = vmatpush1.bf16.msra.mxu0 0
        %1726 = vmatprep.subr.bf16.mxu0 0
        %1727 = vmatpush1.bf16.msra.mxu0 0
        %1728 = vmatprep.subr.bf16.mxu0 0
        %1729 = vmatpush1.bf16.msra.mxu0 0
        %1730 = vmatprep.subr.bf16.mxu0 0
        %1731 = vmatpush1.bf16.msra.mxu0 0
        %1732 = vmatprep.subr.bf16.mxu0 0
        %1733 = vmatpush1.bf16.msra.mxu0 0
        %1734 = vmatprep.subr.bf16.mxu0 0
        %1735 = vmatpush1.bf16.msra.mxu0 %v1718
        %1736 = vmatprep.subr.bf16.mxu0 0
        %1737 = vmatpush2.bf16.msra.mxu0 0
        %1738 = vmatprep.subr.bf16.mxu0 0
        %1739 = vmatpush2.bf16.msra.mxu0 0
        %1740 = vmatprep.subr.bf16.mxu0 0
        %1741 = vmatpush2.bf16.msra.mxu0 0
        %1742 = vmatprep.subr.bf16.mxu0 0
        %1743 = vmatpush2.bf16.msra.mxu0 0
        %1744 = vmatprep.subr.bf16.mxu0 0
        %1745 = vmatpush2.bf16.msra.mxu0 0
        %1746 = vmatprep.subr.bf16.mxu0 0
        %1747 = vmatpush2.bf16.msra.mxu0 0
        %1748 = vmatprep.subr.bf16.mxu0 0
        %1749 = vmatpush2.bf16.msra.mxu0 0
        %1750 = vmatprep.subr.bf16.mxu0 0
        %1751 = vmatpush2.bf16.msra.mxu0 0
        %1752 = vmatprep.mubr.bf16.mxu0 0
        %1753 = vmatmul.mubr.bf16.gmra.mxu0 %v772
        %v1754 = vpop.f32.mrf.mxu0
        %v1755 = vadd.f32 0.0, %v1754
        %v1756 = vpop.f32.mrf.mxu0
        %v1757 = vpop.f32.mrf.mxu0
        %v1758 = vadd.f32 0.0, %v1757
        %v1759 = vpop.f32.mrf.mxu0
        %1760 = vmatprep.mubr.bf16.mxu0 0
        %1761 = vmatmul.mubr.bf16.gmra.mxu0 %v775
        %v1762 = vpop.f32.mrf.mxu0
        %v1763 = vadd.f32 0.0, %v1762
        %v1764 = vpop.f32.mrf.mxu0
        %v1765 = vpop.f32.mrf.mxu0
        %v1766 = vadd.f32 0.0, %v1765
        %v1767 = vpop.f32.mrf.mxu0
        %1768 = vmatprep.mubr.bf16.mxu0 0
        %1769 = vmatmul.mubr.bf16.gmra.mxu0 %v778
        %v1770 = vpop.f32.mrf.mxu0
        %v1771 = vadd.f32 0.0, %v1770
        %v1772 = vpop.f32.mrf.mxu0
        %v1773 = vpop.f32.mrf.mxu0
        %v1774 = vadd.f32 0.0, %v1773
        %v1775 = vpop.f32.mrf.mxu0
        %1776 = vmatprep.mubr.bf16.mxu0 0
        %1777 = vmatmul.mubr.bf16.gmra.mxu0 %v781
        %v1778 = vpop.f32.mrf.mxu0
        %v1779 = vadd.f32 0.0, %v1778
        %v1780 = vpop.f32.mrf.mxu0
        %v1781 = vpop.f32.mrf.mxu0
        %v1782 = vadd.f32 0.0, %v1781
        %v1783 = vpop.f32.mrf.mxu0
        %1784 = vmatprep.mubr.bf16.mxu0 0
        %1785 = vmatmul.mubr.bf16.gmra.mxu0 %v784
        %v1786 = vpop.f32.mrf.mxu0
        %v1787 = vadd.f32 0.0, %v1786
        %v1788 = vpop.f32.mrf.mxu0
        %v1789 = vpop.f32.mrf.mxu0
        %v1790 = vadd.f32 0.0, %v1789
        %v1791 = vpop.f32.mrf.mxu0
        %1792 = vmatprep.mubr.bf16.mxu0 0
        %1793 = vmatmul.mubr.bf16.gmra.mxu0 %v787
        %v1794 = vpop.f32.mrf.mxu0
        %v1795 = vadd.f32 0.0, %v1794
        %v1796 = vpop.f32.mrf.mxu0
        %v1797 = vpop.f32.mrf.mxu0
        %v1798 = vadd.f32 0.0, %v1797
        %v1799 = vpop.f32.mrf.mxu0
        %1800 = vmatprep.mubr.bf16.mxu0 0
        %1801 = vmatmul.mubr.bf16.gmra.mxu0 %v790
        %v1802 = vpop.f32.mrf.mxu0
        %v1803 = vadd.f32 0.0, %v1802
        %v1804 = vpop.f32.mrf.mxu0
        %v1805 = vpop.f32.mrf.mxu0
        %v1806 = vadd.f32 0.0, %v1805
        %v1807 = vpop.f32.mrf.mxu0
        %1808 = vmatprep.mubr.bf16.mxu0 0
        %1809 = vmatmul.mubr.bf16.gmra.mxu0 %v793
        %v1810 = vpop.f32.mrf.mxu0
        %v1811 = vadd.f32 0.0, %v1810
        %v1812 = vpop.f32.mrf.mxu0
        %v1813 = vpop.f32.mrf.mxu0
        %v1814 = vadd.f32 0.0, %v1813
        %v1815 = vpop.f32.mrf.mxu0
        %1816 = vmatprep.mubr.bf16.mxu0 0
        %1817 = vmatmul.mubr.bf16.gmra.mxu0 %v796
        %v1818 = vpop.f32.mrf.mxu0
        %v1819 = vadd.f32 0.0, %v1818
        %v1820 = vpop.f32.mrf.mxu0
        %v1821 = vpop.f32.mrf.mxu0
        %v1822 = vadd.f32 0.0, %v1821
        %v1823 = vpop.f32.mrf.mxu0
        %1824 = vmatprep.mubr.bf16.mxu0 0
        %1825 = vmatmul.mubr.bf16.gmra.mxu0 %v799
        %v1826 = vpop.f32.mrf.mxu0
        %v1827 = vadd.f32 0.0, %v1826
        %v1828 = vpop.f32.mrf.mxu0
        %v1829 = vpop.f32.mrf.mxu0
        %v1830 = vadd.f32 0.0, %v1829
        %v1831 = vpop.f32.mrf.mxu0
        %1832 = vmatprep.mubr.bf16.mxu0 0
        %1833 = vmatmul.mubr.bf16.gmra.mxu0 %v802
        %v1834 = vpop.f32.mrf.mxu0
        %v1835 = vadd.f32 0.0, %v1834
        %v1836 = vpop.f32.mrf.mxu0
        %v1837 = vpop.f32.mrf.mxu0
        %v1838 = vadd.f32 0.0, %v1837
        %v1839 = vpop.f32.mrf.mxu0
        %1840 = vmatprep.mubr.bf16.mxu0 0
        %1841 = vmatmul.mubr.bf16.gmra.mxu0 %v805
        %v1842 = vpop.f32.mrf.mxu0
        %v1843 = vadd.f32 0.0, %v1842
        %v1844 = vpop.f32.mrf.mxu0
        %v1845 = vpop.f32.mrf.mxu0
        %v1846 = vadd.f32 0.0, %v1845
        %v1847 = vpop.f32.mrf.mxu0
        %1848 = vmatprep.mubr.bf16.mxu0 0
        %1849 = vmatmul.mubr.bf16.gmra.mxu0 %v808
        %v1850 = vpop.f32.mrf.mxu0
        %v1851 = vadd.f32 0.0, %v1850
        %v1852 = vpop.f32.mrf.mxu0
        %v1853 = vpop.f32.mrf.mxu0
        %v1854 = vadd.f32 0.0, %v1853
        %v1855 = vpop.f32.mrf.mxu0
        %1856 = vmatprep.mubr.bf16.mxu0 0
        %1857 = vmatmul.mubr.bf16.gmra.mxu0 %v811
        %v1858 = vpop.f32.mrf.mxu0
        %v1859 = vadd.f32 0.0, %v1858
        %v1860 = vpop.f32.mrf.mxu0
        %v1861 = vpop.f32.mrf.mxu0
        %v1862 = vadd.f32 0.0, %v1861
        %v1863 = vpop.f32.mrf.mxu0
        %1864 = vmatprep.mubr.bf16.mxu0 0
        %1865 = vmatmul.mubr.bf16.gmra.mxu0 %v814
        %v1866 = vpop.f32.mrf.mxu0
        %v1867 = vadd.f32 0.0, %v1866
        %v1868 = vpop.f32.mrf.mxu0
        %v1869 = vpop.f32.mrf.mxu0
        %v1870 = vadd.f32 0.0, %v1869
        %v1871 = vpop.f32.mrf.mxu0
        %1872 = vmatprep.mubr.bf16.mxu0 0
        %1873 = vmatmul.mubr.bf16.gmra.mxu0 %v1715
        %v1874 = vpop.f32.mrf.mxu0
        %v1875 = vadd.f32 0.0, %v1874
        %v1876 = vpop.f32.mrf.mxu0
        %v1877 = vpop.f32.mrf.mxu0
        %v1878 = vadd.f32 0.0, %v1877
        %v1879 = vpop.f32.mrf.mxu0
        %1880 = vdwg.mxu0
        %v1881 = vadd.f32 %v1671, %v1755
        %v1882 = vadd.f32 %v1672, %v1758
        %v1883 = vadd.f32 %v1673, %v1763
        %v1884 = vadd.f32 %v1674, %v1766
        %v1885 = vadd.f32 %v1675, %v1771
        %v1886 = vadd.f32 %v1676, %v1774
        %v1887 = vadd.f32 %v1677, %v1779
        %v1888 = vadd.f32 %v1678, %v1782
        %v1889 = vadd.f32 %v1679, %v1787
        %v1890 = vadd.f32 %v1680, %v1790
        %v1891 = vadd.f32 %v1681, %v1795
        %v1892 = vadd.f32 %v1682, %v1798
        %v1893 = vadd.f32 %v1683, %v1803
        %v1894 = vadd.f32 %v1684, %v1806
        %v1895 = vadd.f32 %v1685, %v1811
        %v1896 = vadd.f32 %v1686, %v1814
        %v1897 = vadd.f32 %v1687, %v1819
        %v1898 = vadd.f32 %v1688, %v1822
        %v1899 = vadd.f32 %v1689, %v1827
        %v1900 = vadd.f32 %v1690, %v1830
        %v1901 = vadd.f32 %v1691, %v1835
        %v1902 = vadd.f32 %v1692, %v1838
        %v1903 = vadd.f32 %v1693, %v1843
        %v1904 = vadd.f32 %v1694, %v1846
        %v1905 = vadd.f32 %v1695, %v1851
        %v1906 = vadd.f32 %v1696, %v1854
        %v1907 = vadd.f32 %v1697, %v1859
        %v1908 = vadd.f32 %v1698, %v1862
        %v1909 = vadd.f32 %v1699, %v1867
        %v1910 = vadd.f32 %v1700, %v1870
        %v1911 = vadd.f32 %v1701, %v1875
        %v1912 = vadd.f32 %v1702, %v1878
        %v1915 = vrot.slane %v552, 1
        %v1916 = vrot.slane %v568, 1
        %v1917 = vsel %vm1208, %v1915, %v1916
        %v1919 = vunpack.c.l.b16 %v571
        %v1920 = vpack.c.b16 %v1919, %v1919
        %v1921 = vrot.slane %v1920, 2
        %v1923 = vsel %vm767, %v1917, 0
        %v1926 = vsel %vm816, %v1921, 0
        %1928 = vmatprep.subr.bf16.mxu0 0
        %1929 = vmatpush1.bf16.msra.mxu0 0
        %1930 = vmatprep.subr.bf16.mxu0 0
        %1931 = vmatpush1.bf16.msra.mxu0 0
        %1932 = vmatprep.subr.bf16.mxu0 0
        %1933 = vmatpush1.bf16.msra.mxu0 0
        %1934 = vmatprep.subr.bf16.mxu0 0
        %1935 = vmatpush1.bf16.msra.mxu0 0
        %1936 = vmatprep.subr.bf16.mxu0 0
        %1937 = vmatpush1.bf16.msra.mxu0 0
        %1938 = vmatprep.subr.bf16.mxu0 0
        %1939 = vmatpush1.bf16.msra.mxu0 0
        %1940 = vmatprep.subr.bf16.mxu0 0
        %1941 = vmatpush1.bf16.msra.mxu0 0
        %1942 = vmatprep.subr.bf16.mxu0 0
        %1943 = vmatpush1.bf16.msra.mxu0 %v1926
        %1944 = vmatprep.subr.bf16.mxu0 0
        %1945 = vmatpush2.bf16.msra.mxu0 0
        %1946 = vmatprep.subr.bf16.mxu0 0
        %1947 = vmatpush2.bf16.msra.mxu0 0
        %1948 = vmatprep.subr.bf16.mxu0 0
        %1949 = vmatpush2.bf16.msra.mxu0 0
        %1950 = vmatprep.subr.bf16.mxu0 0
        %1951 = vmatpush2.bf16.msra.mxu0 0
        %1952 = vmatprep.subr.bf16.mxu0 0
        %1953 = vmatpush2.bf16.msra.mxu0 0
        %1954 = vmatprep.subr.bf16.mxu0 0
        %1955 = vmatpush2.bf16.msra.mxu0 0
        %1956 = vmatprep.subr.bf16.mxu0 0
        %1957 = vmatpush2.bf16.msra.mxu0 0
        %1958 = vmatprep.subr.bf16.mxu0 0
        %1959 = vmatpush2.bf16.msra.mxu0 0
        %1960 = vmatprep.mubr.bf16.mxu0 0
        %1961 = vmatmul.mubr.bf16.gmra.mxu0 %v1260
        %v1962 = vpop.f32.mrf.mxu0
        %v1963 = vadd.f32 0.0, %v1962
        %v1964 = vpop.f32.mrf.mxu0
        %v1965 = vpop.f32.mrf.mxu0
        %v1966 = vadd.f32 0.0, %v1965
        %v1967 = vpop.f32.mrf.mxu0
        %1968 = vmatprep.mubr.bf16.mxu0 0
        %1969 = vmatmul.mubr.bf16.gmra.mxu0 %v1263
        %v1970 = vpop.f32.mrf.mxu0
        %v1971 = vadd.f32 0.0, %v1970
        %v1972 = vpop.f32.mrf.mxu0
        %v1973 = vpop.f32.mrf.mxu0
        %v1974 = vadd.f32 0.0, %v1973
        %v1975 = vpop.f32.mrf.mxu0
        %1976 = vmatprep.mubr.bf16.mxu0 0
        %1977 = vmatmul.mubr.bf16.gmra.mxu0 %v1266
        %v1978 = vpop.f32.mrf.mxu0
        %v1979 = vadd.f32 0.0, %v1978
        %v1980 = vpop.f32.mrf.mxu0
        %v1981 = vpop.f32.mrf.mxu0
        %v1982 = vadd.f32 0.0, %v1981
        %v1983 = vpop.f32.mrf.mxu0
        %1984 = vmatprep.mubr.bf16.mxu0 0
        %1985 = vmatmul.mubr.bf16.gmra.mxu0 %v1269
        %v1986 = vpop.f32.mrf.mxu0
        %v1987 = vadd.f32 0.0, %v1986
        %v1988 = vpop.f32.mrf.mxu0
        %v1989 = vpop.f32.mrf.mxu0
        %v1990 = vadd.f32 0.0, %v1989
        %v1991 = vpop.f32.mrf.mxu0
        %1992 = vmatprep.mubr.bf16.mxu0 0
        %1993 = vmatmul.mubr.bf16.gmra.mxu0 %v1272
        %v1994 = vpop.f32.mrf.mxu0
        %v1995 = vadd.f32 0.0, %v1994
        %v1996 = vpop.f32.mrf.mxu0
        %v1997 = vpop.f32.mrf.mxu0
        %v1998 = vadd.f32 0.0, %v1997
        %v1999 = vpop.f32.mrf.mxu0
        %2000 = vmatprep.mubr.bf16.mxu0 0
        %2001 = vmatmul.mubr.bf16.gmra.mxu0 %v1275
        %v2002 = vpop.f32.mrf.mxu0
        %v2003 = vadd.f32 0.0, %v2002
        %v2004 = vpop.f32.mrf.mxu0
        %v2005 = vpop.f32.mrf.mxu0
        %v2006 = vadd.f32 0.0, %v2005
        %v2007 = vpop.f32.mrf.mxu0
        %2008 = vmatprep.mubr.bf16.mxu0 0
        %2009 = vmatmul.mubr.bf16.gmra.mxu0 %v1278
        %v2010 = vpop.f32.mrf.mxu0
        %v2011 = vadd.f32 0.0, %v2010
        %v2012 = vpop.f32.mrf.mxu0
        %v2013 = vpop.f32.mrf.mxu0
        %v2014 = vadd.f32 0.0, %v2013
        %v2015 = vpop.f32.mrf.mxu0
        %2016 = vmatprep.mubr.bf16.mxu0 0
        %2017 = vmatmul.mubr.bf16.gmra.mxu0 %v1281
        %v2018 = vpop.f32.mrf.mxu0
        %v2019 = vadd.f32 0.0, %v2018
        %v2020 = vpop.f32.mrf.mxu0
        %v2021 = vpop.f32.mrf.mxu0
        %v2022 = vadd.f32 0.0, %v2021
        %v2023 = vpop.f32.mrf.mxu0
        %2024 = vmatprep.mubr.bf16.mxu0 0
        %2025 = vmatmul.mubr.bf16.gmra.mxu0 %v1284
        %v2026 = vpop.f32.mrf.mxu0
        %v2027 = vadd.f32 0.0, %v2026
        %v2028 = vpop.f32.mrf.mxu0
        %v2029 = vpop.f32.mrf.mxu0
        %v2030 = vadd.f32 0.0, %v2029
        %v2031 = vpop.f32.mrf.mxu0
        %2032 = vmatprep.mubr.bf16.mxu0 0
        %2033 = vmatmul.mubr.bf16.gmra.mxu0 %v1287
        %v2034 = vpop.f32.mrf.mxu0
        %v2035 = vadd.f32 0.0, %v2034
        %v2036 = vpop.f32.mrf.mxu0
        %v2037 = vpop.f32.mrf.mxu0
        %v2038 = vadd.f32 0.0, %v2037
        %v2039 = vpop.f32.mrf.mxu0
        %2040 = vmatprep.mubr.bf16.mxu0 0
        %2041 = vmatmul.mubr.bf16.gmra.mxu0 %v1290
        %v2042 = vpop.f32.mrf.mxu0
        %v2043 = vadd.f32 0.0, %v2042
        %v2044 = vpop.f32.mrf.mxu0
        %v2045 = vpop.f32.mrf.mxu0
        %v2046 = vadd.f32 0.0, %v2045
        %v2047 = vpop.f32.mrf.mxu0
        %2048 = vmatprep.mubr.bf16.mxu0 0
        %2049 = vmatmul.mubr.bf16.gmra.mxu0 %v1293
        %v2050 = vpop.f32.mrf.mxu0
        %v2051 = vadd.f32 0.0, %v2050
        %v2052 = vpop.f32.mrf.mxu0
        %v2053 = vpop.f32.mrf.mxu0
        %v2054 = vadd.f32 0.0, %v2053
        %v2055 = vpop.f32.mrf.mxu0
        %2056 = vmatprep.mubr.bf16.mxu0 0
        %2057 = vmatmul.mubr.bf16.gmra.mxu0 %v1296
        %v2058 = vpop.f32.mrf.mxu0
        %v2059 = vadd.f32 0.0, %v2058
        %v2060 = vpop.f32.mrf.mxu0
        %v2061 = vpop.f32.mrf.mxu0
        %v2062 = vadd.f32 0.0, %v2061
        %v2063 = vpop.f32.mrf.mxu0
        %2064 = vmatprep.mubr.bf16.mxu0 0
        %2065 = vmatmul.mubr.bf16.gmra.mxu0 %v1299
        %v2066 = vpop.f32.mrf.mxu0
        %v2067 = vadd.f32 0.0, %v2066
        %v2068 = vpop.f32.mrf.mxu0
        %v2069 = vpop.f32.mrf.mxu0
        %v2070 = vadd.f32 0.0, %v2069
        %v2071 = vpop.f32.mrf.mxu0
        %2072 = vmatprep.mubr.bf16.mxu0 0
        %2073 = vmatmul.mubr.bf16.gmra.mxu0 %v1302
        %v2074 = vpop.f32.mrf.mxu0
        %v2075 = vadd.f32 0.0, %v2074
        %v2076 = vpop.f32.mrf.mxu0
        %v2077 = vpop.f32.mrf.mxu0
        %v2078 = vadd.f32 0.0, %v2077
        %v2079 = vpop.f32.mrf.mxu0
        %2080 = vmatprep.mubr.bf16.mxu0 0
        %2081 = vmatmul.mubr.bf16.gmra.mxu0 %v1923
        %v2082 = vpop.f32.mrf.mxu0
        %v2083 = vadd.f32 0.0, %v2082
        %v2084 = vpop.f32.mrf.mxu0
        %v2085 = vpop.f32.mrf.mxu0
        %v2086 = vadd.f32 0.0, %v2085
        %v2087 = vpop.f32.mrf.mxu0
        %2088 = vdwg.mxu0
        %v2089 = vadd.f32 %v1881, %v1963
        %v2090 = vadd.f32 %v1882, %v1966
        %v2091 = vadd.f32 %v1883, %v1971
        %v2092 = vadd.f32 %v1884, %v1974
        %v2093 = vadd.f32 %v1885, %v1979
        %v2094 = vadd.f32 %v1886, %v1982
        %v2095 = vadd.f32 %v1887, %v1987
        %v2096 = vadd.f32 %v1888, %v1990
        %v2097 = vadd.f32 %v1889, %v1995
        %v2098 = vadd.f32 %v1890, %v1998
        %v2099 = vadd.f32 %v1891, %v2003
        %v2100 = vadd.f32 %v1892, %v2006
        %v2101 = vadd.f32 %v1893, %v2011
        %v2102 = vadd.f32 %v1894, %v2014
        %v2103 = vadd.f32 %v1895, %v2019
        %v2104 = vadd.f32 %v1896, %v2022
        %v2105 = vadd.f32 %v1897, %v2027
        %v2106 = vadd.f32 %v1898, %v2030
        %v2107 = vadd.f32 %v1899, %v2035
        %v2108 = vadd.f32 %v1900, %v2038
        %v2109 = vadd.f32 %v1901, %v2043
        %v2110 = vadd.f32 %v1902, %v2046
        %v2111 = vadd.f32 %v1903, %v2051
        %v2112 = vadd.f32 %v1904, %v2054
        %v2113 = vadd.f32 %v1905, %v2059
        %v2114 = vadd.f32 %v1906, %v2062
        %v2115 = vadd.f32 %v1907, %v2067
        %v2116 = vadd.f32 %v1908, %v2070
        %v2117 = vadd.f32 %v1909, %v2075
        %v2118 = vadd.f32 %v1910, %v2078
        %v2119 = vadd.f32 %v1911, %v2083
        %v2120 = vadd.f32 %v1912, %v2086
        %v2122 = vsel %vm816, %v572, 0
        %2124 = vmatprep.subr.bf16.mxu0 0
        %2125 = vmatpush1.bf16.msra.mxu0 0
        %2126 = vmatprep.subr.bf16.mxu0 0
        %2127 = vmatpush1.bf16.msra.mxu0 0
        %2128 = vmatprep.subr.bf16.mxu0 0
        %2129 = vmatpush1.bf16.msra.mxu0 0
        %2130 = vmatprep.subr.bf16.mxu0 0
        %2131 = vmatpush1.bf16.msra.mxu0 0
        %2132 = vmatprep.subr.bf16.mxu0 0
        %2133 = vmatpush1.bf16.msra.mxu0 0
        %2134 = vmatprep.subr.bf16.mxu0 0
        %2135 = vmatpush1.bf16.msra.mxu0 0
        %2136 = vmatprep.subr.bf16.mxu0 0
        %2137 = vmatpush1.bf16.msra.mxu0 0
        %2138 = vmatprep.subr.bf16.mxu0 0
        %2139 = vmatpush1.bf16.msra.mxu0 %v2122
        %2140 = vmatprep.subr.bf16.mxu0 0
        %2141 = vmatpush2.bf16.msra.mxu0 0
        %2142 = vmatprep.subr.bf16.mxu0 0
        %2143 = vmatpush2.bf16.msra.mxu0 0
        %2144 = vmatprep.subr.bf16.mxu0 0
        %2145 = vmatpush2.bf16.msra.mxu0 0
        %2146 = vmatprep.subr.bf16.mxu0 0
        %2147 = vmatpush2.bf16.msra.mxu0 0
        %2148 = vmatprep.subr.bf16.mxu0 0
        %2149 = vmatpush2.bf16.msra.mxu0 0
        %2150 = vmatprep.subr.bf16.mxu0 0
        %2151 = vmatpush2.bf16.msra.mxu0 0
        %2152 = vmatprep.subr.bf16.mxu0 0
        %2153 = vmatpush2.bf16.msra.mxu0 0
        %2154 = vmatprep.subr.bf16.mxu0 0
        %2155 = vmatpush2.bf16.msra.mxu0 0
        %2156 = vmatprep.mubr.bf16.mxu0 0
        %2157 = vmatmul.mubr.bf16.gmra.mxu0 %v985
        %v2158 = vpop.f32.mrf.mxu0
        %v2159 = vadd.f32 0.0, %v2158
        %v2160 = vpop.f32.mrf.mxu0
        %v2161 = vpop.f32.mrf.mxu0
        %v2162 = vadd.f32 0.0, %v2161
        %v2163 = vpop.f32.mrf.mxu0
        %2164 = vmatprep.mubr.bf16.mxu0 0
        %2165 = vmatmul.mubr.bf16.gmra.mxu0 %v987
        %v2166 = vpop.f32.mrf.mxu0
        %v2167 = vadd.f32 0.0, %v2166
        %v2168 = vpop.f32.mrf.mxu0
        %v2169 = vpop.f32.mrf.mxu0
        %v2170 = vadd.f32 0.0, %v2169
        %v2171 = vpop.f32.mrf.mxu0
        %2172 = vmatprep.mubr.bf16.mxu0 0
        %2173 = vmatmul.mubr.bf16.gmra.mxu0 %v989
        %v2174 = vpop.f32.mrf.mxu0
        %v2175 = vadd.f32 0.0, %v2174
        %v2176 = vpop.f32.mrf.mxu0
        %v2177 = vpop.f32.mrf.mxu0
        %v2178 = vadd.f32 0.0, %v2177
        %v2179 = vpop.f32.mrf.mxu0
        %2180 = vmatprep.mubr.bf16.mxu0 0
        %2181 = vmatmul.mubr.bf16.gmra.mxu0 %v991
        %v2182 = vpop.f32.mrf.mxu0
        %v2183 = vadd.f32 0.0, %v2182
        %v2184 = vpop.f32.mrf.mxu0
        %v2185 = vpop.f32.mrf.mxu0
        %v2186 = vadd.f32 0.0, %v2185
        %v2187 = vpop.f32.mrf.mxu0
        %2188 = vmatprep.mubr.bf16.mxu0 0
        %2189 = vmatmul.mubr.bf16.gmra.mxu0 %v993
        %v2190 = vpop.f32.mrf.mxu0
        %v2191 = vadd.f32 0.0, %v2190
        %v2192 = vpop.f32.mrf.mxu0
        %v2193 = vpop.f32.mrf.mxu0
        %v2194 = vadd.f32 0.0, %v2193
        %v2195 = vpop.f32.mrf.mxu0
        %2196 = vmatprep.mubr.bf16.mxu0 0
        %2197 = vmatmul.mubr.bf16.gmra.mxu0 %v995
        %v2198 = vpop.f32.mrf.mxu0
        %v2199 = vadd.f32 0.0, %v2198
        %v2200 = vpop.f32.mrf.mxu0
        %v2201 = vpop.f32.mrf.mxu0
        %v2202 = vadd.f32 0.0, %v2201
        %v2203 = vpop.f32.mrf.mxu0
        %2204 = vmatprep.mubr.bf16.mxu0 0
        %2205 = vmatmul.mubr.bf16.gmra.mxu0 %v997
        %v2206 = vpop.f32.mrf.mxu0
        %v2207 = vadd.f32 0.0, %v2206
        %v2208 = vpop.f32.mrf.mxu0
        %v2209 = vpop.f32.mrf.mxu0
        %v2210 = vadd.f32 0.0, %v2209
        %v2211 = vpop.f32.mrf.mxu0
        %2212 = vmatprep.mubr.bf16.mxu0 0
        %2213 = vmatmul.mubr.bf16.gmra.mxu0 %v999
        %v2214 = vpop.f32.mrf.mxu0
        %v2215 = vadd.f32 0.0, %v2214
        %v2216 = vpop.f32.mrf.mxu0
        %v2217 = vpop.f32.mrf.mxu0
        %v2218 = vadd.f32 0.0, %v2217
        %v2219 = vpop.f32.mrf.mxu0
        %2220 = vmatprep.mubr.bf16.mxu0 0
        %2221 = vmatmul.mubr.bf16.gmra.mxu0 %v1001
        %v2222 = vpop.f32.mrf.mxu0
        %v2223 = vadd.f32 0.0, %v2222
        %v2224 = vpop.f32.mrf.mxu0
        %v2225 = vpop.f32.mrf.mxu0
        %v2226 = vadd.f32 0.0, %v2225
        %v2227 = vpop.f32.mrf.mxu0
        %2228 = vmatprep.mubr.bf16.mxu0 0
        %2229 = vmatmul.mubr.bf16.gmra.mxu0 %v1003
        %v2230 = vpop.f32.mrf.mxu0
        %v2231 = vadd.f32 0.0, %v2230
        %v2232 = vpop.f32.mrf.mxu0
        %v2233 = vpop.f32.mrf.mxu0
        %v2234 = vadd.f32 0.0, %v2233
        %v2235 = vpop.f32.mrf.mxu0
        %2236 = vmatprep.mubr.bf16.mxu0 0
        %2237 = vmatmul.mubr.bf16.gmra.mxu0 %v1005
        %v2238 = vpop.f32.mrf.mxu0
        %v2239 = vadd.f32 0.0, %v2238
        %v2240 = vpop.f32.mrf.mxu0
        %v2241 = vpop.f32.mrf.mxu0
        %v2242 = vadd.f32 0.0, %v2241
        %v2243 = vpop.f32.mrf.mxu0
        %2244 = vmatprep.mubr.bf16.mxu0 0
        %2245 = vmatmul.mubr.bf16.gmra.mxu0 %v1007
        %v2246 = vpop.f32.mrf.mxu0
        %v2247 = vadd.f32 0.0, %v2246
        %v2248 = vpop.f32.mrf.mxu0
        %v2249 = vpop.f32.mrf.mxu0
        %v2250 = vadd.f32 0.0, %v2249
        %v2251 = vpop.f32.mrf.mxu0
        %2252 = vmatprep.mubr.bf16.mxu0 0
        %2253 = vmatmul.mubr.bf16.gmra.mxu0 %v1009
        %v2254 = vpop.f32.mrf.mxu0
        %v2255 = vadd.f32 0.0, %v2254
        %v2256 = vpop.f32.mrf.mxu0
        %v2257 = vpop.f32.mrf.mxu0
        %v2258 = vadd.f32 0.0, %v2257
        %v2259 = vpop.f32.mrf.mxu0
        %2260 = vmatprep.mubr.bf16.mxu0 0
        %2261 = vmatmul.mubr.bf16.gmra.mxu0 %v1011
        %v2262 = vpop.f32.mrf.mxu0
        %v2263 = vadd.f32 0.0, %v2262
        %v2264 = vpop.f32.mrf.mxu0
        %v2265 = vpop.f32.mrf.mxu0
        %v2266 = vadd.f32 0.0, %v2265
        %v2267 = vpop.f32.mrf.mxu0
        %2268 = vmatprep.mubr.bf16.mxu0 0
        %2269 = vmatmul.mubr.bf16.gmra.mxu0 %v1505
        %v2270 = vpop.f32.mrf.mxu0
        %v2271 = vadd.f32 0.0, %v2270
        %v2272 = vpop.f32.mrf.mxu0
        %v2273 = vpop.f32.mrf.mxu0
        %v2274 = vadd.f32 0.0, %v2273
        %v2275 = vpop.f32.mrf.mxu0
        %2276 = vmatprep.mubr.bf16.mxu0 0
        %2277 = vmatmul.mubr.bf16.gmra.mxu0 %v981
        %v2278 = vpop.f32.mrf.mxu0
        %v2279 = vadd.f32 0.0, %v2278
        %v2280 = vpop.f32.mrf.mxu0
        %v2281 = vpop.f32.mrf.mxu0
        %v2282 = vadd.f32 0.0, %v2281
        %v2283 = vpop.f32.mrf.mxu0
        %2284 = vdwg.mxu0
        %v2285 = vadd.f32 %v2089, %v2159
        %v2286 = vadd.f32 %v2090, %v2162
        %v2287 = vadd.f32 %v2091, %v2167
        %v2288 = vadd.f32 %v2092, %v2170
        %v2289 = vadd.f32 %v2093, %v2175
        %v2290 = vadd.f32 %v2094, %v2178
        %v2291 = vadd.f32 %v2095, %v2183
        %v2292 = vadd.f32 %v2096, %v2186
        %v2293 = vadd.f32 %v2097, %v2191
        %v2294 = vadd.f32 %v2098, %v2194
        %v2295 = vadd.f32 %v2099, %v2199
        %v2296 = vadd.f32 %v2100, %v2202
        %v2297 = vadd.f32 %v2101, %v2207
        %v2298 = vadd.f32 %v2102, %v2210
        %v2299 = vadd.f32 %v2103, %v2215
        %v2300 = vadd.f32 %v2104, %v2218
        %v2301 = vadd.f32 %v2105, %v2223
        %v2302 = vadd.f32 %v2106, %v2226
        %v2303 = vadd.f32 %v2107, %v2231
        %v2304 = vadd.f32 %v2108, %v2234
        %v2305 = vadd.f32 %v2109, %v2239
        %v2306 = vadd.f32 %v2110, %v2242
        %v2307 = vadd.f32 %v2111, %v2247
        %v2308 = vadd.f32 %v2112, %v2250
        %v2309 = vadd.f32 %v2113, %v2255
        %v2310 = vadd.f32 %v2114, %v2258
        %v2311 = vadd.f32 %v2115, %v2263
        %v2312 = vadd.f32 %v2116, %v2266
        %v2313 = vadd.f32 %v2117, %v2271
        %v2314 = vadd.f32 %v2118, %v2274
        %v2315 = vadd.f32 %v2119, %v2279
        %v2316 = vadd.f32 %v2120, %v2282
        %v2318 = vunpack.c.l.b16 %v572
        %v2319 = vpack.c.b16 %v2318, %v2318
        %v2320 = vrot.slane %v2319, 2
        %v2322 = vsel %vm816, %v2320, 0
        %2324 = vmatprep.subr.bf16.mxu0 0
        %2325 = vmatpush1.bf16.msra.mxu0 0
        %2326 = vmatprep.subr.bf16.mxu0 0
        %2327 = vmatpush1.bf16.msra.mxu0 0
        %2328 = vmatprep.subr.bf16.mxu0 0
        %2329 = vmatpush1.bf16.msra.mxu0 0
        %2330 = vmatprep.subr.bf16.mxu0 0
        %2331 = vmatpush1.bf16.msra.mxu0 0
        %2332 = vmatprep.subr.bf16.mxu0 0
        %2333 = vmatpush1.bf16.msra.mxu0 0
        %2334 = vmatprep.subr.bf16.mxu0 0
        %2335 = vmatpush1.bf16.msra.mxu0 0
        %2336 = vmatprep.subr.bf16.mxu0 0
        %2337 = vmatpush1.bf16.msra.mxu0 0
        %2338 = vmatprep.subr.bf16.mxu0 0
        %2339 = vmatpush1.bf16.msra.mxu0 %v2322
        %2340 = vmatprep.subr.bf16.mxu0 0
        %2341 = vmatpush2.bf16.msra.mxu0 0
        %2342 = vmatprep.subr.bf16.mxu0 0
        %2343 = vmatpush2.bf16.msra.mxu0 0
        %2344 = vmatprep.subr.bf16.mxu0 0
        %2345 = vmatpush2.bf16.msra.mxu0 0
        %2346 = vmatprep.subr.bf16.mxu0 0
        %2347 = vmatpush2.bf16.msra.mxu0 0
        %2348 = vmatprep.subr.bf16.mxu0 0
        %2349 = vmatpush2.bf16.msra.mxu0 0
        %2350 = vmatprep.subr.bf16.mxu0 0
        %2351 = vmatpush2.bf16.msra.mxu0 0
        %2352 = vmatprep.subr.bf16.mxu0 0
        %2353 = vmatpush2.bf16.msra.mxu0 0
        %2354 = vmatprep.subr.bf16.mxu0 0
        %2355 = vmatpush2.bf16.msra.mxu0 0
        %2356 = vmatprep.mubr.bf16.mxu0 0
        %2357 = vmatmul.mubr.bf16.gmra.mxu0 %v775
        %v2358 = vpop.f32.mrf.mxu0
        %v2359 = vadd.f32 0.0, %v2358
        %v2360 = vpop.f32.mrf.mxu0
        %v2361 = vpop.f32.mrf.mxu0
        %v2362 = vadd.f32 0.0, %v2361
        %v2363 = vpop.f32.mrf.mxu0
        %2364 = vmatprep.mubr.bf16.mxu0 0
        %2365 = vmatmul.mubr.bf16.gmra.mxu0 %v778
        %v2366 = vpop.f32.mrf.mxu0
        %v2367 = vadd.f32 0.0, %v2366
        %v2368 = vpop.f32.mrf.mxu0
        %v2369 = vpop.f32.mrf.mxu0
        %v2370 = vadd.f32 0.0, %v2369
        %v2371 = vpop.f32.mrf.mxu0
        %2372 = vmatprep.mubr.bf16.mxu0 0
        %2373 = vmatmul.mubr.bf16.gmra.mxu0 %v781
        %v2374 = vpop.f32.mrf.mxu0
        %v2375 = vadd.f32 0.0, %v2374
        %v2376 = vpop.f32.mrf.mxu0
        %v2377 = vpop.f32.mrf.mxu0
        %v2378 = vadd.f32 0.0, %v2377
        %v2379 = vpop.f32.mrf.mxu0
        %2380 = vmatprep.mubr.bf16.mxu0 0
        %2381 = vmatmul.mubr.bf16.gmra.mxu0 %v784
        %v2382 = vpop.f32.mrf.mxu0
        %v2383 = vadd.f32 0.0, %v2382
        %v2384 = vpop.f32.mrf.mxu0
        %v2385 = vpop.f32.mrf.mxu0
        %v2386 = vadd.f32 0.0, %v2385
        %v2387 = vpop.f32.mrf.mxu0
        %2388 = vmatprep.mubr.bf16.mxu0 0
        %2389 = vmatmul.mubr.bf16.gmra.mxu0 %v787
        %v2390 = vpop.f32.mrf.mxu0
        %v2391 = vadd.f32 0.0, %v2390
        %v2392 = vpop.f32.mrf.mxu0
        %v2393 = vpop.f32.mrf.mxu0
        %v2394 = vadd.f32 0.0, %v2393
        %v2395 = vpop.f32.mrf.mxu0
        %2396 = vmatprep.mubr.bf16.mxu0 0
        %2397 = vmatmul.mubr.bf16.gmra.mxu0 %v790
        %v2398 = vpop.f32.mrf.mxu0
        %v2399 = vadd.f32 0.0, %v2398
        %v2400 = vpop.f32.mrf.mxu0
        %v2401 = vpop.f32.mrf.mxu0
        %v2402 = vadd.f32 0.0, %v2401
        %v2403 = vpop.f32.mrf.mxu0
        %2404 = vmatprep.mubr.bf16.mxu0 0
        %2405 = vmatmul.mubr.bf16.gmra.mxu0 %v793
        %v2406 = vpop.f32.mrf.mxu0
        %v2407 = vadd.f32 0.0, %v2406
        %v2408 = vpop.f32.mrf.mxu0
        %v2409 = vpop.f32.mrf.mxu0
        %v2410 = vadd.f32 0.0, %v2409
        %v2411 = vpop.f32.mrf.mxu0
        %2412 = vmatprep.mubr.bf16.mxu0 0
        %2413 = vmatmul.mubr.bf16.gmra.mxu0 %v796
        %v2414 = vpop.f32.mrf.mxu0
        %v2415 = vadd.f32 0.0, %v2414
        %v2416 = vpop.f32.mrf.mxu0
        %v2417 = vpop.f32.mrf.mxu0
        %v2418 = vadd.f32 0.0, %v2417
        %v2419 = vpop.f32.mrf.mxu0
        %2420 = vmatprep.mubr.bf16.mxu0 0
        %2421 = vmatmul.mubr.bf16.gmra.mxu0 %v799
        %v2422 = vpop.f32.mrf.mxu0
        %v2423 = vadd.f32 0.0, %v2422
        %v2424 = vpop.f32.mrf.mxu0
        %v2425 = vpop.f32.mrf.mxu0
        %v2426 = vadd.f32 0.0, %v2425
        %v2427 = vpop.f32.mrf.mxu0
        %2428 = vmatprep.mubr.bf16.mxu0 0
        %2429 = vmatmul.mubr.bf16.gmra.mxu0 %v802
        %v2430 = vpop.f32.mrf.mxu0
        %v2431 = vadd.f32 0.0, %v2430
        %v2432 = vpop.f32.mrf.mxu0
        %v2433 = vpop.f32.mrf.mxu0
        %v2434 = vadd.f32 0.0, %v2433
        %v2435 = vpop.f32.mrf.mxu0
        %2436 = vmatprep.mubr.bf16.mxu0 0
        %2437 = vmatmul.mubr.bf16.gmra.mxu0 %v805
        %v2438 = vpop.f32.mrf.mxu0
        %v2439 = vadd.f32 0.0, %v2438
        %v2440 = vpop.f32.mrf.mxu0
        %v2441 = vpop.f32.mrf.mxu0
        %v2442 = vadd.f32 0.0, %v2441
        %v2443 = vpop.f32.mrf.mxu0
        %2444 = vmatprep.mubr.bf16.mxu0 0
        %2445 = vmatmul.mubr.bf16.gmra.mxu0 %v808
        %v2446 = vpop.f32.mrf.mxu0
        %v2447 = vadd.f32 0.0, %v2446
        %v2448 = vpop.f32.mrf.mxu0
        %v2449 = vpop.f32.mrf.mxu0
        %v2450 = vadd.f32 0.0, %v2449
        %v2451 = vpop.f32.mrf.mxu0
        %2452 = vmatprep.mubr.bf16.mxu0 0
        %2453 = vmatmul.mubr.bf16.gmra.mxu0 %v811
        %v2454 = vpop.f32.mrf.mxu0
        %v2455 = vadd.f32 0.0, %v2454
        %v2456 = vpop.f32.mrf.mxu0
        %v2457 = vpop.f32.mrf.mxu0
        %v2458 = vadd.f32 0.0, %v2457
        %v2459 = vpop.f32.mrf.mxu0
        %2460 = vmatprep.mubr.bf16.mxu0 0
        %2461 = vmatmul.mubr.bf16.gmra.mxu0 %v814
        %v2462 = vpop.f32.mrf.mxu0
        %v2463 = vadd.f32 0.0, %v2462
        %v2464 = vpop.f32.mrf.mxu0
        %v2465 = vpop.f32.mrf.mxu0
        %v2466 = vadd.f32 0.0, %v2465
        %v2467 = vpop.f32.mrf.mxu0
        %2468 = vmatprep.mubr.bf16.mxu0 0
        %2469 = vmatmul.mubr.bf16.gmra.mxu0 %v1715
        %v2470 = vpop.f32.mrf.mxu0
        %v2471 = vadd.f32 0.0, %v2470
        %v2472 = vpop.f32.mrf.mxu0
        %v2473 = vpop.f32.mrf.mxu0
        %v2474 = vadd.f32 0.0, %v2473
        %v2475 = vpop.f32.mrf.mxu0
        %2476 = vmatprep.mubr.bf16.mxu0 0
        %2477 = vmatmul.mubr.bf16.gmra.mxu0 %v769
        %v2478 = vpop.f32.mrf.mxu0
        %v2479 = vadd.f32 0.0, %v2478
        %v2480 = vpop.f32.mrf.mxu0
        %v2481 = vpop.f32.mrf.mxu0
        %v2482 = vadd.f32 0.0, %v2481
        %v2483 = vpop.f32.mrf.mxu0
        %2484 = vdwg.mxu0
        %v2485 = vadd.f32 %v2285, %v2359
        %v2486 = vadd.f32 %v2286, %v2362
        %v2487 = vadd.f32 %v2287, %v2367
        %v2488 = vadd.f32 %v2288, %v2370
        %v2489 = vadd.f32 %v2289, %v2375
        %v2490 = vadd.f32 %v2290, %v2378
        %v2491 = vadd.f32 %v2291, %v2383
        %v2492 = vadd.f32 %v2292, %v2386
        %v2493 = vadd.f32 %v2293, %v2391
        %v2494 = vadd.f32 %v2294, %v2394
        %v2495 = vadd.f32 %v2295, %v2399
        %v2496 = vadd.f32 %v2296, %v2402
        %v2497 = vadd.f32 %v2297, %v2407
        %v2498 = vadd.f32 %v2298, %v2410
        %v2499 = vadd.f32 %v2299, %v2415
        %v2500 = vadd.f32 %v2300, %v2418
        %v2501 = vadd.f32 %v2301, %v2423
        %v2502 = vadd.f32 %v2302, %v2426
        %v2503 = vadd.f32 %v2303, %v2431
        %v2504 = vadd.f32 %v2304, %v2434
        %v2505 = vadd.f32 %v2305, %v2439
        %v2506 = vadd.f32 %v2306, %v2442
        %v2507 = vadd.f32 %v2307, %v2447
        %v2508 = vadd.f32 %v2308, %v2450
        %v2509 = vadd.f32 %v2309, %v2455
        %v2510 = vadd.f32 %v2310, %v2458
        %v2511 = vadd.f32 %v2311, %v2463
        %v2512 = vadd.f32 %v2312, %v2466
        %v2513 = vadd.f32 %v2313, %v2471
        %v2514 = vadd.f32 %v2314, %v2474
        %v2515 = vadd.f32 %v2315, %v2479
        %v2516 = vadd.f32 %v2316, %v2482
        %v2518 = vsel %vm816, %v573, 0
        %2520 = vmatprep.subr.bf16.mxu0 0
        %2521 = vmatpush1.bf16.msra.mxu0 0
        %2522 = vmatprep.subr.bf16.mxu0 0
        %2523 = vmatpush1.bf16.msra.mxu0 0
        %2524 = vmatprep.subr.bf16.mxu0 0
        %2525 = vmatpush1.bf16.msra.mxu0 0
        %2526 = vmatprep.subr.bf16.mxu0 0
        %2527 = vmatpush1.bf16.msra.mxu0 0
        %2528 = vmatprep.subr.bf16.mxu0 0
        %2529 = vmatpush1.bf16.msra.mxu0 0
        %2530 = vmatprep.subr.bf16.mxu0 0
        %2531 = vmatpush1.bf16.msra.mxu0 0
        %2532 = vmatprep.subr.bf16.mxu0 0
        %2533 = vmatpush1.bf16.msra.mxu0 0
        %2534 = vmatprep.subr.bf16.mxu0 0
        %2535 = vmatpush1.bf16.msra.mxu0 %v2518
        %2536 = vmatprep.subr.bf16.mxu0 0
        %2537 = vmatpush2.bf16.msra.mxu0 0
        %2538 = vmatprep.subr.bf16.mxu0 0
        %2539 = vmatpush2.bf16.msra.mxu0 0
        %2540 = vmatprep.subr.bf16.mxu0 0
        %2541 = vmatpush2.bf16.msra.mxu0 0
        %2542 = vmatprep.subr.bf16.mxu0 0
        %2543 = vmatpush2.bf16.msra.mxu0 0
        %2544 = vmatprep.subr.bf16.mxu0 0
        %2545 = vmatpush2.bf16.msra.mxu0 0
        %2546 = vmatprep.subr.bf16.mxu0 0
        %2547 = vmatpush2.bf16.msra.mxu0 0
        %2548 = vmatprep.subr.bf16.mxu0 0
        %2549 = vmatpush2.bf16.msra.mxu0 0
        %2550 = vmatprep.subr.bf16.mxu0 0
        %2551 = vmatpush2.bf16.msra.mxu0 0
        %2552 = vmatprep.mubr.bf16.mxu0 0
        %2553 = vmatmul.mubr.bf16.gmra.mxu0 %v1263
        %v2554 = vpop.f32.mrf.mxu0
        %v2555 = vadd.f32 0.0, %v2554
        %v2556 = vpop.f32.mrf.mxu0
        %v2557 = vpop.f32.mrf.mxu0
        %v2558 = vadd.f32 0.0, %v2557
        %v2559 = vpop.f32.mrf.mxu0
        %2560 = vmatprep.mubr.bf16.mxu0 0
        %2561 = vmatmul.mubr.bf16.gmra.mxu0 %v1266
        %v2562 = vpop.f32.mrf.mxu0
        %v2563 = vadd.f32 0.0, %v2562
        %v2564 = vpop.f32.mrf.mxu0
        %v2565 = vpop.f32.mrf.mxu0
        %v2566 = vadd.f32 0.0, %v2565
        %v2567 = vpop.f32.mrf.mxu0
        %2568 = vmatprep.mubr.bf16.mxu0 0
        %2569 = vmatmul.mubr.bf16.gmra.mxu0 %v1269
        %v2570 = vpop.f32.mrf.mxu0
        %v2571 = vadd.f32 0.0, %v2570
        %v2572 = vpop.f32.mrf.mxu0
        %v2573 = vpop.f32.mrf.mxu0
        %v2574 = vadd.f32 0.0, %v2573
        %v2575 = vpop.f32.mrf.mxu0
        %2576 = vmatprep.mubr.bf16.mxu0 0
        %2577 = vmatmul.mubr.bf16.gmra.mxu0 %v1272
        %v2578 = vpop.f32.mrf.mxu0
        %v2579 = vadd.f32 0.0, %v2578
        %v2580 = vpop.f32.mrf.mxu0
        %v2581 = vpop.f32.mrf.mxu0
        %v2582 = vadd.f32 0.0, %v2581
        %v2583 = vpop.f32.mrf.mxu0
        %2584 = vmatprep.mubr.bf16.mxu0 0
        %2585 = vmatmul.mubr.bf16.gmra.mxu0 %v1275
        %v2586 = vpop.f32.mrf.mxu0
        %v2587 = vadd.f32 0.0, %v2586
        %v2588 = vpop.f32.mrf.mxu0
        %v2589 = vpop.f32.mrf.mxu0
        %v2590 = vadd.f32 0.0, %v2589
        %v2591 = vpop.f32.mrf.mxu0
        %2592 = vmatprep.mubr.bf16.mxu0 0
        %2593 = vmatmul.mubr.bf16.gmra.mxu0 %v1278
        %v2594 = vpop.f32.mrf.mxu0
        %v2595 = vadd.f32 0.0, %v2594
        %v2596 = vpop.f32.mrf.mxu0
        %v2597 = vpop.f32.mrf.mxu0
        %v2598 = vadd.f32 0.0, %v2597
        %v2599 = vpop.f32.mrf.mxu0
        %2600 = vmatprep.mubr.bf16.mxu0 0
        %2601 = vmatmul.mubr.bf16.gmra.mxu0 %v1281
        %v2602 = vpop.f32.mrf.mxu0
        %v2603 = vadd.f32 0.0, %v2602
        %v2604 = vpop.f32.mrf.mxu0
        %v2605 = vpop.f32.mrf.mxu0
        %v2606 = vadd.f32 0.0, %v2605
        %v2607 = vpop.f32.mrf.mxu0
        %2608 = vmatprep.mubr.bf16.mxu0 0
        %2609 = vmatmul.mubr.bf16.gmra.mxu0 %v1284
        %v2610 = vpop.f32.mrf.mxu0
        %v2611 = vadd.f32 0.0, %v2610
        %v2612 = vpop.f32.mrf.mxu0
        %v2613 = vpop.f32.mrf.mxu0
        %v2614 = vadd.f32 0.0, %v2613
        %v2615 = vpop.f32.mrf.mxu0
        %2616 = vmatprep.mubr.bf16.mxu0 0
        %2617 = vmatmul.mubr.bf16.gmra.mxu0 %v1287
        %v2618 = vpop.f32.mrf.mxu0
        %v2619 = vadd.f32 0.0, %v2618
        %v2620 = vpop.f32.mrf.mxu0
        %v2621 = vpop.f32.mrf.mxu0
        %v2622 = vadd.f32 0.0, %v2621
        %v2623 = vpop.f32.mrf.mxu0
        %2624 = vmatprep.mubr.bf16.mxu0 0
        %2625 = vmatmul.mubr.bf16.gmra.mxu0 %v1290
        %v2626 = vpop.f32.mrf.mxu0
        %v2627 = vadd.f32 0.0, %v2626
        %v2628 = vpop.f32.mrf.mxu0
        %v2629 = vpop.f32.mrf.mxu0
        %v2630 = vadd.f32 0.0, %v2629
        %v2631 = vpop.f32.mrf.mxu0
        %2632 = vmatprep.mubr.bf16.mxu0 0
        %2633 = vmatmul.mubr.bf16.gmra.mxu0 %v1293
        %v2634 = vpop.f32.mrf.mxu0
        %v2635 = vadd.f32 0.0, %v2634
        %v2636 = vpop.f32.mrf.mxu0
        %v2637 = vpop.f32.mrf.mxu0
        %v2638 = vadd.f32 0.0, %v2637
        %v2639 = vpop.f32.mrf.mxu0
        %2640 = vmatprep.mubr.bf16.mxu0 0
        %2641 = vmatmul.mubr.bf16.gmra.mxu0 %v1296
        %v2642 = vpop.f32.mrf.mxu0
        %v2643 = vadd.f32 0.0, %v2642
        %v2644 = vpop.f32.mrf.mxu0
        %v2645 = vpop.f32.mrf.mxu0
        %v2646 = vadd.f32 0.0, %v2645
        %v2647 = vpop.f32.mrf.mxu0
        %2648 = vmatprep.mubr.bf16.mxu0 0
        %2649 = vmatmul.mubr.bf16.gmra.mxu0 %v1299
        %v2650 = vpop.f32.mrf.mxu0
        %v2651 = vadd.f32 0.0, %v2650
        %v2652 = vpop.f32.mrf.mxu0
        %v2653 = vpop.f32.mrf.mxu0
        %v2654 = vadd.f32 0.0, %v2653
        %v2655 = vpop.f32.mrf.mxu0
        %2656 = vmatprep.mubr.bf16.mxu0 0
        %2657 = vmatmul.mubr.bf16.gmra.mxu0 %v1302
        %v2658 = vpop.f32.mrf.mxu0
        %v2659 = vadd.f32 0.0, %v2658
        %v2660 = vpop.f32.mrf.mxu0
        %v2661 = vpop.f32.mrf.mxu0
        %v2662 = vadd.f32 0.0, %v2661
        %v2663 = vpop.f32.mrf.mxu0
        %2664 = vmatprep.mubr.bf16.mxu0 0
        %2665 = vmatmul.mubr.bf16.gmra.mxu0 %v1923
        %v2666 = vpop.f32.mrf.mxu0
        %v2667 = vadd.f32 0.0, %v2666
        %v2668 = vpop.f32.mrf.mxu0
        %v2669 = vpop.f32.mrf.mxu0
        %v2670 = vadd.f32 0.0, %v2669
        %v2671 = vpop.f32.mrf.mxu0
        %2672 = vmatprep.mubr.bf16.mxu0 0
        %2673 = vmatmul.mubr.bf16.gmra.mxu0 %v1257
        %v2674 = vpop.f32.mrf.mxu0
        %v2675 = vadd.f32 0.0, %v2674
        %v2676 = vpop.f32.mrf.mxu0
        %v2677 = vpop.f32.mrf.mxu0
        %v2678 = vadd.f32 0.0, %v2677
        %v2679 = vpop.f32.mrf.mxu0
        %2680 = vdwg.mxu0
        %v2681 = vadd.f32 %v2485, %v2555
        %v2682 = vadd.f32 %v2486, %v2558
        %v2683 = vadd.f32 %v2487, %v2563
        %v2684 = vadd.f32 %v2488, %v2566
        %v2685 = vadd.f32 %v2489, %v2571
        %v2686 = vadd.f32 %v2490, %v2574
        %v2687 = vadd.f32 %v2491, %v2579
        %v2688 = vadd.f32 %v2492, %v2582
        %v2689 = vadd.f32 %v2493, %v2587
        %v2690 = vadd.f32 %v2494, %v2590
        %v2691 = vadd.f32 %v2495, %v2595
        %v2692 = vadd.f32 %v2496, %v2598
        %v2693 = vadd.f32 %v2497, %v2603
        %v2694 = vadd.f32 %v2498, %v2606
        %v2695 = vadd.f32 %v2499, %v2611
        %v2696 = vadd.f32 %v2500, %v2614
        %v2697 = vadd.f32 %v2501, %v2619
        %v2698 = vadd.f32 %v2502, %v2622
        %v2699 = vadd.f32 %v2503, %v2627
        %v2700 = vadd.f32 %v2504, %v2630
        %v2701 = vadd.f32 %v2505, %v2635
        %v2702 = vadd.f32 %v2506, %v2638
        %v2703 = vadd.f32 %v2507, %v2643
        %v2704 = vadd.f32 %v2508, %v2646
        %v2705 = vadd.f32 %v2509, %v2651
        %v2706 = vadd.f32 %v2510, %v2654
        %v2707 = vadd.f32 %v2511, %v2659
        %v2708 = vadd.f32 %v2512, %v2662
        %v2709 = vadd.f32 %v2513, %v2667
        %v2710 = vadd.f32 %v2514, %v2670
        %v2711 = vadd.f32 %v2515, %v2675
        %v2712 = vadd.f32 %v2516, %v2678
        %v2713 = vld [vmem:[%s2] sm:$0x1]
        %v2715 = vlaneseq
        %v2716 = vshrl.u32 %v2715, 7
        %v2717 = vsub.s32 0, %v2716
        %v2718 = vrot.slane %v2713, %v2717
        %v2720 = vmul.f32 %v2681, %v2718
        %v2721 = vmul.f32 %v2682, %v2718
        %v2722 = vmul.f32 %v2683, %v2718
        %v2723 = vmul.f32 %v2684, %v2718
        %v2724 = vmul.f32 %v2685, %v2718
        %v2725 = vmul.f32 %v2686, %v2718
        %v2726 = vmul.f32 %v2687, %v2718
        %v2727 = vmul.f32 %v2688, %v2718
        %v2728 = vmul.f32 %v2689, %v2718
        %v2729 = vmul.f32 %v2690, %v2718
        %v2730 = vmul.f32 %v2691, %v2718
        %v2731 = vmul.f32 %v2692, %v2718
        %v2732 = vmul.f32 %v2693, %v2718
        %v2733 = vmul.f32 %v2694, %v2718
        %v2734 = vmul.f32 %v2695, %v2718
        %v2735 = vmul.f32 %v2696, %v2718
        %v2736 = vmul.f32 %v2697, %v2718
        %v2737 = vmul.f32 %v2698, %v2718
        %v2738 = vmul.f32 %v2699, %v2718
        %v2739 = vmul.f32 %v2700, %v2718
        %v2740 = vmul.f32 %v2701, %v2718
        %v2741 = vmul.f32 %v2702, %v2718
        %v2742 = vmul.f32 %v2703, %v2718
        %v2743 = vmul.f32 %v2704, %v2718
        %v2744 = vmul.f32 %v2705, %v2718
        %v2745 = vmul.f32 %v2706, %v2718
        %v2746 = vmul.f32 %v2707, %v2718
        %v2747 = vmul.f32 %v2708, %v2718
        %v2748 = vmul.f32 %v2709, %v2718
        %v2749 = vmul.f32 %v2710, %v2718
        %v2750 = vmul.f32 %v2711, %v2718
        %v2751 = vmul.f32 %v2712, %v2718
        %v2752 = vld [vmem:[%s3] sm:$0x1]
        %v2754 = vlaneseq
        %v2755 = vshrl.u32 %v2754, 7
        %v2756 = vsub.s32 0, %v2755
        %v2757 = vrot.slane %v2752, %v2756
        %v2759 = vadd.f32 %v2720, %v2757
        %v2760 = vadd.f32 %v2721, %v2757
        %v2761 = vadd.f32 %v2722, %v2757
        %v2762 = vadd.f32 %v2723, %v2757
        %v2763 = vadd.f32 %v2724, %v2757
        %v2764 = vadd.f32 %v2725, %v2757
        %v2765 = vadd.f32 %v2726, %v2757
        %v2766 = vadd.f32 %v2727, %v2757
        %v2767 = vadd.f32 %v2728, %v2757
        %v2768 = vadd.f32 %v2729, %v2757
        %v2769 = vadd.f32 %v2730, %v2757
        %v2770 = vadd.f32 %v2731, %v2757
        %v2771 = vadd.f32 %v2732, %v2757
        %v2772 = vadd.f32 %v2733, %v2757
        %v2773 = vadd.f32 %v2734, %v2757
        %v2774 = vadd.f32 %v2735, %v2757
        %v2775 = vadd.f32 %v2736, %v2757
        %v2776 = vadd.f32 %v2737, %v2757
        %v2777 = vadd.f32 %v2738, %v2757
        %v2778 = vadd.f32 %v2739, %v2757
        %v2779 = vadd.f32 %v2740, %v2757
        %v2780 = vadd.f32 %v2741, %v2757
        %v2781 = vadd.f32 %v2742, %v2757
        %v2782 = vadd.f32 %v2743, %v2757
        %v2783 = vadd.f32 %v2744, %v2757
        %v2784 = vadd.f32 %v2745, %v2757
        %v2785 = vadd.f32 %v2746, %v2757
        %v2786 = vadd.f32 %v2747, %v2757
        %v2787 = vadd.f32 %v2748, %v2757
        %v2788 = vadd.f32 %v2749, %v2757
        %v2789 = vadd.f32 %v2750, %v2757
        %v2790 = vadd.f32 %v2751, %v2757
        %v2791 = vmax.f32 %v2759, 0.0
        %v2792 = vmax.f32 %v2760, 0.0
        %v2793 = vmax.f32 %v2761, 0.0
        %v2794 = vmax.f32 %v2762, 0.0
        %v2795 = vmax.f32 %v2763, 0.0
        %v2796 = vmax.f32 %v2764, 0.0
        %v2797 = vmax.f32 %v2765, 0.0
        %v2798 = vmax.f32 %v2766, 0.0
        %v2799 = vmax.f32 %v2767, 0.0
        %v2800 = vmax.f32 %v2768, 0.0
        %v2801 = vmax.f32 %v2769, 0.0
        %v2802 = vmax.f32 %v2770, 0.0
        %v2803 = vmax.f32 %v2771, 0.0
        %v2804 = vmax.f32 %v2772, 0.0
        %v2805 = vmax.f32 %v2773, 0.0
        %v2806 = vmax.f32 %v2774, 0.0
        %v2807 = vmax.f32 %v2775, 0.0
        %v2808 = vmax.f32 %v2776, 0.0
        %v2809 = vmax.f32 %v2777, 0.0
        %v2810 = vmax.f32 %v2778, 0.0
        %v2811 = vmax.f32 %v2779, 0.0
        %v2812 = vmax.f32 %v2780, 0.0
        %v2813 = vmax.f32 %v2781, 0.0
        %v2814 = vmax.f32 %v2782, 0.0
        %v2815 = vmax.f32 %v2783, 0.0
        %v2816 = vmax.f32 %v2784, 0.0
        %v2817 = vmax.f32 %v2785, 0.0
        %v2818 = vmax.f32 %v2786, 0.0
        %v2819 = vmax.f32 %v2787, 0.0
        %v2820 = vmax.f32 %v2788, 0.0
        %v2821 = vmax.f32 %v2789, 0.0
        %v2822 = vmax.f32 %v2790, 0.0
        %v2855 = vcombine.high %v2791, %v2791
        %v2857 = vunpack.c.l.s4 1983009808
        %v2858 = vunpack.c.0.s8 %v2857
        %v2859 = vlaneseq
        %v2860 = vshrl.u32 %v2859, 7
        %v2861 = vsub.s32 %v2858, %v2860
        %v2862 = vrot.slane %v2791, %v2861
        %v2864 = vunpack.c.l.s4 1983009808
        %v2865 = vunpack.c.0.s8 %v2864
        %v2866 = vlaneseq
        %v2867 = vshrl.u32 %v2866, 7
        %v2868 = vsub.s32 %v2865, %v2867
        %v2869 = vrot.slane %v2855, %v2868
        %v2870 = vcombine.high %v2862, %v2862
        %v2871 = vcombine.high %v2869, %v2869
        %v2872 = vcombine.high %v2792, %v2792
        %v2874 = vunpack.c.l.s4 1983009808
        %v2875 = vunpack.c.0.s8 %v2874
        %v2876 = vlaneseq
        %v2877 = vshrl.u32 %v2876, 7
        %v2878 = vsub.s32 %v2875, %v2877
        %v2879 = vrot.slane %v2792, %v2878
        %v2881 = vunpack.c.l.s4 1983009808
        %v2882 = vunpack.c.0.s8 %v2881
        %v2883 = vlaneseq
        %v2884 = vshrl.u32 %v2883, 7
        %v2885 = vsub.s32 %v2882, %v2884
        %v2886 = vrot.slane %v2872, %v2885
        %v2887 = vcombine.high %v2879, %v2879
        %v2888 = vcombine.high %v2886, %v2886
        %v2889 = vcombine.high %v2793, %v2793
        %v2891 = vunpack.c.l.s4 1983009808
        %v2892 = vunpack.c.0.s8 %v2891
        %v2893 = vlaneseq
        %v2894 = vshrl.u32 %v2893, 7
        %v2895 = vsub.s32 %v2892, %v2894
        %v2896 = vrot.slane %v2793, %v2895
        %v2898 = vunpack.c.l.s4 1983009808
        %v2899 = vunpack.c.0.s8 %v2898
        %v2900 = vlaneseq
        %v2901 = vshrl.u32 %v2900, 7
        %v2902 = vsub.s32 %v2899, %v2901
        %v2903 = vrot.slane %v2889, %v2902
        %v2904 = vcombine.high %v2896, %v2896
        %v2905 = vcombine.high %v2903, %v2903
        %v2906 = vcombine.high %v2794, %v2794
        %v2908 = vunpack.c.l.s4 1983009808
        %v2909 = vunpack.c.0.s8 %v2908
        %v2910 = vlaneseq
        %v2911 = vshrl.u32 %v2910, 7
        %v2912 = vsub.s32 %v2909, %v2911
        %v2913 = vrot.slane %v2794, %v2912
        %v2915 = vunpack.c.l.s4 1983009808
        %v2916 = vunpack.c.0.s8 %v2915
        %v2917 = vlaneseq
        %v2918 = vshrl.u32 %v2917, 7
        %v2919 = vsub.s32 %v2916, %v2918
        %v2920 = vrot.slane %v2906, %v2919
        %v2921 = vcombine.high %v2913, %v2913
        %v2922 = vcombine.high %v2920, %v2920
        %v2923 = vcombine.high %v2795, %v2795
        %v2925 = vunpack.c.l.s4 1983009808
        %v2926 = vunpack.c.0.s8 %v2925
        %v2927 = vlaneseq
        %v2928 = vshrl.u32 %v2927, 7
        %v2929 = vsub.s32 %v2926, %v2928
        %v2930 = vrot.slane %v2795, %v2929
        %v2932 = vunpack.c.l.s4 1983009808
        %v2933 = vunpack.c.0.s8 %v2932
        %v2934 = vlaneseq
        %v2935 = vshrl.u32 %v2934, 7
        %v2936 = vsub.s32 %v2933, %v2935
        %v2937 = vrot.slane %v2923, %v2936
        %v2938 = vcombine.high %v2930, %v2930
        %v2939 = vcombine.high %v2937, %v2937
        %v2940 = vcombine.high %v2796, %v2796
        %v2942 = vunpack.c.l.s4 1983009808
        %v2943 = vunpack.c.0.s8 %v2942
        %v2944 = vlaneseq
        %v2945 = vshrl.u32 %v2944, 7
        %v2946 = vsub.s32 %v2943, %v2945
        %v2947 = vrot.slane %v2796, %v2946
        %v2949 = vunpack.c.l.s4 1983009808
        %v2950 = vunpack.c.0.s8 %v2949
        %v2951 = vlaneseq
        %v2952 = vshrl.u32 %v2951, 7
        %v2953 = vsub.s32 %v2950, %v2952
        %v2954 = vrot.slane %v2940, %v2953
        %v2955 = vcombine.high %v2947, %v2947
        %v2956 = vcombine.high %v2954, %v2954
        %v2957 = vcombine.high %v2797, %v2797
        %v2959 = vunpack.c.l.s4 1983009808
        %v2960 = vunpack.c.0.s8 %v2959
        %v2961 = vlaneseq
        %v2962 = vshrl.u32 %v2961, 7
        %v2963 = vsub.s32 %v2960, %v2962
        %v2964 = vrot.slane %v2797, %v2963
        %v2966 = vunpack.c.l.s4 1983009808
        %v2967 = vunpack.c.0.s8 %v2966
        %v2968 = vlaneseq
        %v2969 = vshrl.u32 %v2968, 7
        %v2970 = vsub.s32 %v2967, %v2969
        %v2971 = vrot.slane %v2957, %v2970
        %v2972 = vcombine.high %v2964, %v2964
        %v2973 = vcombine.high %v2971, %v2971
        %v2974 = vcombine.high %v2798, %v2798
        %v2976 = vunpack.c.l.s4 1983009808
        %v2977 = vunpack.c.0.s8 %v2976
        %v2978 = vlaneseq
        %v2979 = vshrl.u32 %v2978, 7
        %v2980 = vsub.s32 %v2977, %v2979
        %v2981 = vrot.slane %v2798, %v2980
        %v2983 = vunpack.c.l.s4 1983009808
        %v2984 = vunpack.c.0.s8 %v2983
        %v2985 = vlaneseq
        %v2986 = vshrl.u32 %v2985, 7
        %v2987 = vsub.s32 %v2984, %v2986
        %v2988 = vrot.slane %v2974, %v2987
        %v2989 = vcombine.high %v2981, %v2981
        %v2990 = vcombine.high %v2988, %v2988
        %v2991 = vcombine.high %v2799, %v2799
        %v2993 = vunpack.c.l.s4 1983009808
        %v2994 = vunpack.c.0.s8 %v2993
        %v2995 = vlaneseq
        %v2996 = vshrl.u32 %v2995, 7
        %v2997 = vsub.s32 %v2994, %v2996
        %v2998 = vrot.slane %v2799, %v2997
        %v3000 = vunpack.c.l.s4 1983009808
        %v3001 = vunpack.c.0.s8 %v3000
        %v3002 = vlaneseq
        %v3003 = vshrl.u32 %v3002, 7
        %v3004 = vsub.s32 %v3001, %v3003
        %v3005 = vrot.slane %v2991, %v3004
        %v3006 = vcombine.high %v2998, %v2998
        %v3007 = vcombine.high %v3005, %v3005
        %v3008 = vcombine.high %v2800, %v2800
        %v3010 = vunpack.c.l.s4 1983009808
        %v3011 = vunpack.c.0.s8 %v3010
        %v3012 = vlaneseq
        %v3013 = vshrl.u32 %v3012, 7
        %v3014 = vsub.s32 %v3011, %v3013
        %v3015 = vrot.slane %v2800, %v3014
        %v3017 = vunpack.c.l.s4 1983009808
        %v3018 = vunpack.c.0.s8 %v3017
        %v3019 = vlaneseq
        %v3020 = vshrl.u32 %v3019, 7
        %v3021 = vsub.s32 %v3018, %v3020
        %v3022 = vrot.slane %v3008, %v3021
        %v3023 = vcombine.high %v3015, %v3015
        %v3024 = vcombine.high %v3022, %v3022
        %v3025 = vcombine.high %v2801, %v2801
        %v3027 = vunpack.c.l.s4 1983009808
        %v3028 = vunpack.c.0.s8 %v3027
        %v3029 = vlaneseq
        %v3030 = vshrl.u32 %v3029, 7
        %v3031 = vsub.s32 %v3028, %v3030
        %v3032 = vrot.slane %v2801, %v3031
        %v3034 = vunpack.c.l.s4 1983009808
        %v3035 = vunpack.c.0.s8 %v3034
        %v3036 = vlaneseq
        %v3037 = vshrl.u32 %v3036, 7
        %v3038 = vsub.s32 %v3035, %v3037
        %v3039 = vrot.slane %v3025, %v3038
        %v3040 = vcombine.high %v3032, %v3032
        %v3041 = vcombine.high %v3039, %v3039
        %v3042 = vcombine.high %v2802, %v2802
        %v3044 = vunpack.c.l.s4 1983009808
        %v3045 = vunpack.c.0.s8 %v3044
        %v3046 = vlaneseq
        %v3047 = vshrl.u32 %v3046, 7
        %v3048 = vsub.s32 %v3045, %v3047
        %v3049 = vrot.slane %v2802, %v3048
        %v3051 = vunpack.c.l.s4 1983009808
        %v3052 = vunpack.c.0.s8 %v3051
        %v3053 = vlaneseq
        %v3054 = vshrl.u32 %v3053, 7
        %v3055 = vsub.s32 %v3052, %v3054
        %v3056 = vrot.slane %v3042, %v3055
        %v3057 = vcombine.high %v3049, %v3049
        %v3058 = vcombine.high %v3056, %v3056
        %v3059 = vcombine.high %v2803, %v2803
        %v3061 = vunpack.c.l.s4 1983009808
        %v3062 = vunpack.c.0.s8 %v3061
        %v3063 = vlaneseq
        %v3064 = vshrl.u32 %v3063, 7
        %v3065 = vsub.s32 %v3062, %v3064
        %v3066 = vrot.slane %v2803, %v3065
        %v3068 = vunpack.c.l.s4 1983009808
        %v3069 = vunpack.c.0.s8 %v3068
        %v3070 = vlaneseq
        %v3071 = vshrl.u32 %v3070, 7
        %v3072 = vsub.s32 %v3069, %v3071
        %v3073 = vrot.slane %v3059, %v3072
        %v3074 = vcombine.high %v3066, %v3066
        %v3075 = vcombine.high %v3073, %v3073
        %v3076 = vcombine.high %v2804, %v2804
        %v3078 = vunpack.c.l.s4 1983009808
        %v3079 = vunpack.c.0.s8 %v3078
        %v3080 = vlaneseq
        %v3081 = vshrl.u32 %v3080, 7
        %v3082 = vsub.s32 %v3079, %v3081
        %v3083 = vrot.slane %v2804, %v3082
        %v3085 = vunpack.c.l.s4 1983009808
        %v3086 = vunpack.c.0.s8 %v3085
        %v3087 = vlaneseq
        %v3088 = vshrl.u32 %v3087, 7
        %v3089 = vsub.s32 %v3086, %v3088
        %v3090 = vrot.slane %v3076, %v3089
        %v3091 = vcombine.high %v3083, %v3083
        %v3092 = vcombine.high %v3090, %v3090
        %v3093 = vcombine.high %v2805, %v2805
        %v3095 = vunpack.c.l.s4 1983009808
        %v3096 = vunpack.c.0.s8 %v3095
        %v3097 = vlaneseq
        %v3098 = vshrl.u32 %v3097, 7
        %v3099 = vsub.s32 %v3096, %v3098
        %v3100 = vrot.slane %v2805, %v3099
        %v3102 = vunpack.c.l.s4 1983009808
        %v3103 = vunpack.c.0.s8 %v3102
        %v3104 = vlaneseq
        %v3105 = vshrl.u32 %v3104, 7
        %v3106 = vsub.s32 %v3103, %v3105
        %v3107 = vrot.slane %v3093, %v3106
        %v3108 = vcombine.high %v3100, %v3100
        %v3109 = vcombine.high %v3107, %v3107
        %v3110 = vcombine.high %v2806, %v2806
        %v3112 = vunpack.c.l.s4 1983009808
        %v3113 = vunpack.c.0.s8 %v3112
        %v3114 = vlaneseq
        %v3115 = vshrl.u32 %v3114, 7
        %v3116 = vsub.s32 %v3113, %v3115
        %v3117 = vrot.slane %v2806, %v3116
        %v3119 = vunpack.c.l.s4 1983009808
        %v3120 = vunpack.c.0.s8 %v3119
        %v3121 = vlaneseq
        %v3122 = vshrl.u32 %v3121, 7
        %v3123 = vsub.s32 %v3120, %v3122
        %v3124 = vrot.slane %v3110, %v3123
        %v3125 = vcombine.high %v3117, %v3117
        %v3126 = vcombine.high %v3124, %v3124
        %v3127 = vcombine.high %v2807, %v2807
        %v3129 = vunpack.c.l.s4 1983009808
        %v3130 = vunpack.c.0.s8 %v3129
        %v3131 = vlaneseq
        %v3132 = vshrl.u32 %v3131, 7
        %v3133 = vsub.s32 %v3130, %v3132
        %v3134 = vrot.slane %v2807, %v3133
        %v3136 = vunpack.c.l.s4 1983009808
        %v3137 = vunpack.c.0.s8 %v3136
        %v3138 = vlaneseq
        %v3139 = vshrl.u32 %v3138, 7
        %v3140 = vsub.s32 %v3137, %v3139
        %v3141 = vrot.slane %v3127, %v3140
        %v3142 = vcombine.high %v3134, %v3134
        %v3143 = vcombine.high %v3141, %v3141
        %v3144 = vcombine.high %v2808, %v2808
        %v3146 = vunpack.c.l.s4 1983009808
        %v3147 = vunpack.c.0.s8 %v3146
        %v3148 = vlaneseq
        %v3149 = vshrl.u32 %v3148, 7
        %v3150 = vsub.s32 %v3147, %v3149
        %v3151 = vrot.slane %v2808, %v3150
        %v3153 = vunpack.c.l.s4 1983009808
        %v3154 = vunpack.c.0.s8 %v3153
        %v3155 = vlaneseq
        %v3156 = vshrl.u32 %v3155, 7
        %v3157 = vsub.s32 %v3154, %v3156
        %v3158 = vrot.slane %v3144, %v3157
        %v3159 = vcombine.high %v3151, %v3151
        %v3160 = vcombine.high %v3158, %v3158
        %v3161 = vcombine.high %v2809, %v2809
        %v3163 = vunpack.c.l.s4 1983009808
        %v3164 = vunpack.c.0.s8 %v3163
        %v3165 = vlaneseq
        %v3166 = vshrl.u32 %v3165, 7
        %v3167 = vsub.s32 %v3164, %v3166
        %v3168 = vrot.slane %v2809, %v3167
        %v3170 = vunpack.c.l.s4 1983009808
        %v3171 = vunpack.c.0.s8 %v3170
        %v3172 = vlaneseq
        %v3173 = vshrl.u32 %v3172, 7
        %v3174 = vsub.s32 %v3171, %v3173
        %v3175 = vrot.slane %v3161, %v3174
        %v3176 = vcombine.high %v3168, %v3168
        %v3177 = vcombine.high %v3175, %v3175
        %v3178 = vcombine.high %v2810, %v2810
        %v3180 = vunpack.c.l.s4 1983009808
        %v3181 = vunpack.c.0.s8 %v3180
        %v3182 = vlaneseq
        %v3183 = vshrl.u32 %v3182, 7
        %v3184 = vsub.s32 %v3181, %v3183
        %v3185 = vrot.slane %v2810, %v3184
        %v3187 = vunpack.c.l.s4 1983009808
        %v3188 = vunpack.c.0.s8 %v3187
        %v3189 = vlaneseq
        %v3190 = vshrl.u32 %v3189, 7
        %v3191 = vsub.s32 %v3188, %v3190
        %v3192 = vrot.slane %v3178, %v3191
        %v3193 = vcombine.high %v3185, %v3185
        %v3194 = vcombine.high %v3192, %v3192
        %v3195 = vcombine.high %v2811, %v2811
        %v3197 = vunpack.c.l.s4 1983009808
        %v3198 = vunpack.c.0.s8 %v3197
        %v3199 = vlaneseq
        %v3200 = vshrl.u32 %v3199, 7
        %v3201 = vsub.s32 %v3198, %v3200
        %v3202 = vrot.slane %v2811, %v3201
        %v3204 = vunpack.c.l.s4 1983009808
        %v3205 = vunpack.c.0.s8 %v3204
        %v3206 = vlaneseq
        %v3207 = vshrl.u32 %v3206, 7
        %v3208 = vsub.s32 %v3205, %v3207
        %v3209 = vrot.slane %v3195, %v3208
        %v3210 = vcombine.high %v3202, %v3202
        %v3211 = vcombine.high %v3209, %v3209
        %v3212 = vcombine.high %v2812, %v2812
        %v3214 = vunpack.c.l.s4 1983009808
        %v3215 = vunpack.c.0.s8 %v3214
        %v3216 = vlaneseq
        %v3217 = vshrl.u32 %v3216, 7
        %v3218 = vsub.s32 %v3215, %v3217
        %v3219 = vrot.slane %v2812, %v3218
        %v3221 = vunpack.c.l.s4 1983009808
        %v3222 = vunpack.c.0.s8 %v3221
        %v3223 = vlaneseq
        %v3224 = vshrl.u32 %v3223, 7
        %v3225 = vsub.s32 %v3222, %v3224
        %v3226 = vrot.slane %v3212, %v3225
        %v3227 = vcombine.high %v3219, %v3219
        %v3228 = vcombine.high %v3226, %v3226
        %v3229 = vcombine.high %v2813, %v2813
        %v3231 = vunpack.c.l.s4 1983009808
        %v3232 = vunpack.c.0.s8 %v3231
        %v3233 = vlaneseq
        %v3234 = vshrl.u32 %v3233, 7
        %v3235 = vsub.s32 %v3232, %v3234
        %v3236 = vrot.slane %v2813, %v3235
        %v3238 = vunpack.c.l.s4 1983009808
        %v3239 = vunpack.c.0.s8 %v3238
        %v3240 = vlaneseq
        %v3241 = vshrl.u32 %v3240, 7
        %v3242 = vsub.s32 %v3239, %v3241
        %v3243 = vrot.slane %v3229, %v3242
        %v3244 = vcombine.high %v3236, %v3236
        %v3245 = vcombine.high %v3243, %v3243
        %v3246 = vcombine.high %v2814, %v2814
        %v3248 = vunpack.c.l.s4 1983009808
        %v3249 = vunpack.c.0.s8 %v3248
        %v3250 = vlaneseq
        %v3251 = vshrl.u32 %v3250, 7
        %v3252 = vsub.s32 %v3249, %v3251
        %v3253 = vrot.slane %v2814, %v3252
        %v3255 = vunpack.c.l.s4 1983009808
        %v3256 = vunpack.c.0.s8 %v3255
        %v3257 = vlaneseq
        %v3258 = vshrl.u32 %v3257, 7
        %v3259 = vsub.s32 %v3256, %v3258
        %v3260 = vrot.slane %v3246, %v3259
        %v3261 = vcombine.high %v3253, %v3253
        %v3262 = vcombine.high %v3260, %v3260
        %v3263 = vcombine.high %v2815, %v2815
        %v3265 = vunpack.c.l.s4 1983009808
        %v3266 = vunpack.c.0.s8 %v3265
        %v3267 = vlaneseq
        %v3268 = vshrl.u32 %v3267, 7
        %v3269 = vsub.s32 %v3266, %v3268
        %v3270 = vrot.slane %v2815, %v3269
        %v3272 = vunpack.c.l.s4 1983009808
        %v3273 = vunpack.c.0.s8 %v3272
        %v3274 = vlaneseq
        %v3275 = vshrl.u32 %v3274, 7
        %v3276 = vsub.s32 %v3273, %v3275
        %v3277 = vrot.slane %v3263, %v3276
        %v3278 = vcombine.high %v3270, %v3270
        %v3279 = vcombine.high %v3277, %v3277
        %v3280 = vcombine.high %v2816, %v2816
        %v3282 = vunpack.c.l.s4 1983009808
        %v3283 = vunpack.c.0.s8 %v3282
        %v3284 = vlaneseq
        %v3285 = vshrl.u32 %v3284, 7
        %v3286 = vsub.s32 %v3283, %v3285
        %v3287 = vrot.slane %v2816, %v3286
        %v3289 = vunpack.c.l.s4 1983009808
        %v3290 = vunpack.c.0.s8 %v3289
        %v3291 = vlaneseq
        %v3292 = vshrl.u32 %v3291, 7
        %v3293 = vsub.s32 %v3290, %v3292
        %v3294 = vrot.slane %v3280, %v3293
        %v3295 = vcombine.high %v3287, %v3287
        %v3296 = vcombine.high %v3294, %v3294
        %v3297 = vcombine.high %v2817, %v2817
        %v3299 = vunpack.c.l.s4 1983009808
        %v3300 = vunpack.c.0.s8 %v3299
        %v3301 = vlaneseq
        %v3302 = vshrl.u32 %v3301, 7
        %v3303 = vsub.s32 %v3300, %v3302
        %v3304 = vrot.slane %v2817, %v3303
        %v3306 = vunpack.c.l.s4 1983009808
        %v3307 = vunpack.c.0.s8 %v3306
        %v3308 = vlaneseq
        %v3309 = vshrl.u32 %v3308, 7
        %v3310 = vsub.s32 %v3307, %v3309
        %v3311 = vrot.slane %v3297, %v3310
        %v3312 = vcombine.high %v3304, %v3304
        %v3313 = vcombine.high %v3311, %v3311
        %v3314 = vcombine.high %v2818, %v2818
        %v3316 = vunpack.c.l.s4 1983009808
        %v3317 = vunpack.c.0.s8 %v3316
        %v3318 = vlaneseq
        %v3319 = vshrl.u32 %v3318, 7
        %v3320 = vsub.s32 %v3317, %v3319
        %v3321 = vrot.slane %v2818, %v3320
        %v3323 = vunpack.c.l.s4 1983009808
        %v3324 = vunpack.c.0.s8 %v3323
        %v3325 = vlaneseq
        %v3326 = vshrl.u32 %v3325, 7
        %v3327 = vsub.s32 %v3324, %v3326
        %v3328 = vrot.slane %v3314, %v3327
        %v3329 = vcombine.high %v3321, %v3321
        %v3330 = vcombine.high %v3328, %v3328
        %v3331 = vcombine.high %v2819, %v2819
        %v3333 = vunpack.c.l.s4 1983009808
        %v3334 = vunpack.c.0.s8 %v3333
        %v3335 = vlaneseq
        %v3336 = vshrl.u32 %v3335, 7
        %v3337 = vsub.s32 %v3334, %v3336
        %v3338 = vrot.slane %v2819, %v3337
        %v3340 = vunpack.c.l.s4 1983009808
        %v3341 = vunpack.c.0.s8 %v3340
        %v3342 = vlaneseq
        %v3343 = vshrl.u32 %v3342, 7
        %v3344 = vsub.s32 %v3341, %v3343
        %v3345 = vrot.slane %v3331, %v3344
        %v3346 = vcombine.high %v3338, %v3338
        %v3347 = vcombine.high %v3345, %v3345
        %v3348 = vcombine.high %v2820, %v2820
        %v3350 = vunpack.c.l.s4 1983009808
        %v3351 = vunpack.c.0.s8 %v3350
        %v3352 = vlaneseq
        %v3353 = vshrl.u32 %v3352, 7
        %v3354 = vsub.s32 %v3351, %v3353
        %v3355 = vrot.slane %v2820, %v3354
        %v3357 = vunpack.c.l.s4 1983009808
        %v3358 = vunpack.c.0.s8 %v3357
        %v3359 = vlaneseq
        %v3360 = vshrl.u32 %v3359, 7
        %v3361 = vsub.s32 %v3358, %v3360
        %v3362 = vrot.slane %v3348, %v3361
        %v3363 = vcombine.high %v3355, %v3355
        %v3364 = vcombine.high %v3362, %v3362
        %v3365 = vcombine.high %v2821, %v2821
        %v3367 = vunpack.c.l.s4 1983009808
        %v3368 = vunpack.c.0.s8 %v3367
        %v3369 = vlaneseq
        %v3370 = vshrl.u32 %v3369, 7
        %v3371 = vsub.s32 %v3368, %v3370
        %v3372 = vrot.slane %v2821, %v3371
        %v3374 = vunpack.c.l.s4 1983009808
        %v3375 = vunpack.c.0.s8 %v3374
        %v3376 = vlaneseq
        %v3377 = vshrl.u32 %v3376, 7
        %v3378 = vsub.s32 %v3375, %v3377
        %v3379 = vrot.slane %v3365, %v3378
        %v3380 = vcombine.high %v3372, %v3372
        %v3381 = vcombine.high %v3379, %v3379
        %v3382 = vcombine.high %v2822, %v2822
        %v3384 = vunpack.c.l.s4 1983009808
        %v3385 = vunpack.c.0.s8 %v3384
        %v3386 = vlaneseq
        %v3387 = vshrl.u32 %v3386, 7
        %v3388 = vsub.s32 %v3385, %v3387
        %v3389 = vrot.slane %v2822, %v3388
        %v3391 = vunpack.c.l.s4 1983009808
        %v3392 = vunpack.c.0.s8 %v3391
        %v3393 = vlaneseq
        %v3394 = vshrl.u32 %v3393, 7
        %v3395 = vsub.s32 %v3392, %v3394
        %v3396 = vrot.slane %v3382, %v3395
        %v3397 = vcombine.high %v3389, %v3389
        %v3398 = vcombine.high %v3396, %v3396
        %v3527 = vrot.slane %v2862, 7
        %v3528 = vrot.slane %v3527, 2
        %v3529 = vrot.slane %v2870, 7
        %v3530 = vrot.slane %v3529, 2
        %v3531 = vrot.slane %v2869, 7
        %v3532 = vrot.slane %v3531, 2
        %v3533 = vrot.slane %v2871, 7
        %v3534 = vrot.slane %v3533, 2
        %v3535 = vrot.slane %v2879, 7
        %v3536 = vrot.slane %v3535, 2
        %v3537 = vrot.slane %v2887, 7
        %v3538 = vrot.slane %v3537, 2
        %v3539 = vrot.slane %v2886, 7
        %v3540 = vrot.slane %v3539, 2
        %v3541 = vrot.slane %v2888, 7
        %v3542 = vrot.slane %v3541, 2
        %v3543 = vrot.slane %v2896, 7
        %v3544 = vrot.slane %v3543, 2
        %v3545 = vrot.slane %v2904, 7
        %v3546 = vrot.slane %v3545, 2
        %v3547 = vrot.slane %v2903, 7
        %v3548 = vrot.slane %v3547, 2
        %v3549 = vrot.slane %v2905, 7
        %v3550 = vrot.slane %v3549, 2
        %v3551 = vrot.slane %v2913, 7
        %v3552 = vrot.slane %v3551, 2
        %v3553 = vrot.slane %v2921, 7
        %v3554 = vrot.slane %v3553, 2
        %v3555 = vrot.slane %v2920, 7
        %v3556 = vrot.slane %v3555, 2
        %v3557 = vrot.slane %v2922, 7
        %v3558 = vrot.slane %v3557, 2
        %v3559 = vrot.slane %v2930, 7
        %v3560 = vrot.slane %v3559, 2
        %v3561 = vrot.slane %v2938, 7
        %v3562 = vrot.slane %v3561, 2
        %v3563 = vrot.slane %v2937, 7
        %v3564 = vrot.slane %v3563, 2
        %v3565 = vrot.slane %v2939, 7
        %v3566 = vrot.slane %v3565, 2
        %v3567 = vrot.slane %v2947, 7
        %v3568 = vrot.slane %v3567, 2
        %v3569 = vrot.slane %v2955, 7
        %v3570 = vrot.slane %v3569, 2
        %v3571 = vrot.slane %v2954, 7
        %v3572 = vrot.slane %v3571, 2
        %v3573 = vrot.slane %v2956, 7
        %v3574 = vrot.slane %v3573, 2
        %v3575 = vrot.slane %v2964, 7
        %v3576 = vrot.slane %v3575, 2
        %v3577 = vrot.slane %v2972, 7
        %v3578 = vrot.slane %v3577, 2
        %v3579 = vrot.slane %v2971, 7
        %v3580 = vrot.slane %v3579, 2
        %v3581 = vrot.slane %v2973, 7
        %v3582 = vrot.slane %v3581, 2
        %v3583 = vrot.slane %v2981, 7
        %v3584 = vrot.slane %v3583, 2
        %v3585 = vrot.slane %v2989, 7
        %v3586 = vrot.slane %v3585, 2
        %v3587 = vrot.slane %v2988, 7
        %v3588 = vrot.slane %v3587, 2
        %v3589 = vrot.slane %v2990, 7
        %v3590 = vrot.slane %v3589, 2
        %v3591 = vrot.slane %v2998, 7
        %v3592 = vrot.slane %v3591, 2
        %v3593 = vrot.slane %v3006, 7
        %v3594 = vrot.slane %v3593, 2
        %v3595 = vrot.slane %v3005, 7
        %v3596 = vrot.slane %v3595, 2
        %v3597 = vrot.slane %v3007, 7
        %v3598 = vrot.slane %v3597, 2
        %v3599 = vrot.slane %v3015, 7
        %v3600 = vrot.slane %v3599, 2
        %v3601 = vrot.slane %v3023, 7
        %v3602 = vrot.slane %v3601, 2
        %v3603 = vrot.slane %v3022, 7
        %v3604 = vrot.slane %v3603, 2
        %v3605 = vrot.slane %v3024, 7
        %v3606 = vrot.slane %v3605, 2
        %v3607 = vrot.slane %v3032, 7
        %v3608 = vrot.slane %v3607, 2
        %v3609 = vrot.slane %v3040, 7
        %v3610 = vrot.slane %v3609, 2
        %v3611 = vrot.slane %v3039, 7
        %v3612 = vrot.slane %v3611, 2
        %v3613 = vrot.slane %v3041, 7
        %v3614 = vrot.slane %v3613, 2
        %v3615 = vrot.slane %v3049, 7
        %v3616 = vrot.slane %v3615, 2
        %v3617 = vrot.slane %v3057, 7
        %v3618 = vrot.slane %v3617, 2
        %v3619 = vrot.slane %v3056, 7
        %v3620 = vrot.slane %v3619, 2
        %v3621 = vrot.slane %v3058, 7
        %v3622 = vrot.slane %v3621, 2
        %v3623 = vrot.slane %v3066, 7
        %v3624 = vrot.slane %v3623, 2
        %v3625 = vrot.slane %v3074, 7
        %v3626 = vrot.slane %v3625, 2
        %v3627 = vrot.slane %v3073, 7
        %v3628 = vrot.slane %v3627, 2
        %v3629 = vrot.slane %v3075, 7
        %v3630 = vrot.slane %v3629, 2
        %v3631 = vrot.slane %v3083, 7
        %v3632 = vrot.slane %v3631, 2
        %v3633 = vrot.slane %v3091, 7
        %v3634 = vrot.slane %v3633, 2
        %v3635 = vrot.slane %v3090, 7
        %v3636 = vrot.slane %v3635, 2
        %v3637 = vrot.slane %v3092, 7
        %v3638 = vrot.slane %v3637, 2
        %v3639 = vrot.slane %v3100, 7
        %v3640 = vrot.slane %v3639, 2
        %v3641 = vrot.slane %v3108, 7
        %v3642 = vrot.slane %v3641, 2
        %v3643 = vrot.slane %v3107, 7
        %v3644 = vrot.slane %v3643, 2
        %v3645 = vrot.slane %v3109, 7
        %v3646 = vrot.slane %v3645, 2
        %v3647 = vrot.slane %v3117, 7
        %v3648 = vrot.slane %v3647, 2
        %v3649 = vrot.slane %v3125, 7
        %v3650 = vrot.slane %v3649, 2
        %v3651 = vrot.slane %v3124, 7
        %v3652 = vrot.slane %v3651, 2
        %v3653 = vrot.slane %v3126, 7
        %v3654 = vrot.slane %v3653, 2
        %v3655 = vrot.slane %v3134, 7
        %v3656 = vrot.slane %v3655, 2
        %v3657 = vrot.slane %v3142, 7
        %v3658 = vrot.slane %v3657, 2
        %v3659 = vrot.slane %v3141, 7
        %v3660 = vrot.slane %v3659, 2
        %v3661 = vrot.slane %v3143, 7
        %v3662 = vrot.slane %v3661, 2
        %v3663 = vrot.slane %v3151, 7
        %v3664 = vrot.slane %v3663, 2
        %v3665 = vrot.slane %v3159, 7
        %v3666 = vrot.slane %v3665, 2
        %v3667 = vrot.slane %v3158, 7
        %v3668 = vrot.slane %v3667, 2
        %v3669 = vrot.slane %v3160, 7
        %v3670 = vrot.slane %v3669, 2
        %v3671 = vrot.slane %v3168, 7
        %v3672 = vrot.slane %v3671, 2
        %v3673 = vrot.slane %v3176, 7
        %v3674 = vrot.slane %v3673, 2
        %v3675 = vrot.slane %v3175, 7
        %v3676 = vrot.slane %v3675, 2
        %v3677 = vrot.slane %v3177, 7
        %v3678 = vrot.slane %v3677, 2
        %v3679 = vrot.slane %v3185, 7
        %v3680 = vrot.slane %v3679, 2
        %v3681 = vrot.slane %v3193, 7
        %v3682 = vrot.slane %v3681, 2
        %v3683 = vrot.slane %v3192, 7
        %v3684 = vrot.slane %v3683, 2
        %v3685 = vrot.slane %v3194, 7
        %v3686 = vrot.slane %v3685, 2
        %v3687 = vrot.slane %v3202, 7
        %v3688 = vrot.slane %v3687, 2
        %v3689 = vrot.slane %v3210, 7
        %v3690 = vrot.slane %v3689, 2
        %v3691 = vrot.slane %v3209, 7
        %v3692 = vrot.slane %v3691, 2
        %v3693 = vrot.slane %v3211, 7
        %v3694 = vrot.slane %v3693, 2
        %v3695 = vrot.slane %v3219, 7
        %v3696 = vrot.slane %v3695, 2
        %v3697 = vrot.slane %v3227, 7
        %v3698 = vrot.slane %v3697, 2
        %v3699 = vrot.slane %v3226, 7
        %v3700 = vrot.slane %v3699, 2
        %v3701 = vrot.slane %v3228, 7
        %v3702 = vrot.slane %v3701, 2
        %v3703 = vrot.slane %v3236, 7
        %v3704 = vrot.slane %v3703, 2
        %v3705 = vrot.slane %v3244, 7
        %v3706 = vrot.slane %v3705, 2
        %v3707 = vrot.slane %v3243, 7
        %v3708 = vrot.slane %v3707, 2
        %v3709 = vrot.slane %v3245, 7
        %v3710 = vrot.slane %v3709, 2
        %v3711 = vrot.slane %v3253, 7
        %v3712 = vrot.slane %v3711, 2
        %v3713 = vrot.slane %v3261, 7
        %v3714 = vrot.slane %v3713, 2
        %v3715 = vrot.slane %v3260, 7
        %v3716 = vrot.slane %v3715, 2
        %v3717 = vrot.slane %v3262, 7
        %v3718 = vrot.slane %v3717, 2
        %v3719 = vrot.slane %v3270, 7
        %v3720 = vrot.slane %v3719, 2
        %v3721 = vrot.slane %v3278, 7
        %v3722 = vrot.slane %v3721, 2
        %v3723 = vrot.slane %v3277, 7
        %v3724 = vrot.slane %v3723, 2
        %v3725 = vrot.slane %v3279, 7
        %v3726 = vrot.slane %v3725, 2
        %v3727 = vrot.slane %v3287, 7
        %v3728 = vrot.slane %v3727, 2
        %v3729 = vrot.slane %v3295, 7
        %v3730 = vrot.slane %v3729, 2
        %v3731 = vrot.slane %v3294, 7
        %v3732 = vrot.slane %v3731, 2
        %v3733 = vrot.slane %v3296, 7
        %v3734 = vrot.slane %v3733, 2
        %v3735 = vrot.slane %v3304, 7
        %v3736 = vrot.slane %v3735, 2
        %v3737 = vrot.slane %v3312, 7
        %v3738 = vrot.slane %v3737, 2
        %v3739 = vrot.slane %v3311, 7
        %v3740 = vrot.slane %v3739, 2
        %v3741 = vrot.slane %v3313, 7
        %v3742 = vrot.slane %v3741, 2
        %v3743 = vrot.slane %v3321, 7
        %v3744 = vrot.slane %v3743, 2
        %v3745 = vrot.slane %v3329, 7
        %v3746 = vrot.slane %v3745, 2
        %v3747 = vrot.slane %v3328, 7
        %v3748 = vrot.slane %v3747, 2
        %v3749 = vrot.slane %v3330, 7
        %v3750 = vrot.slane %v3749, 2
        %v3751 = vrot.slane %v3338, 7
        %v3752 = vrot.slane %v3751, 2
        %v3753 = vrot.slane %v3346, 7
        %v3754 = vrot.slane %v3753, 2
        %v3755 = vrot.slane %v3345, 7
        %v3756 = vrot.slane %v3755, 2
        %v3757 = vrot.slane %v3347, 7
        %v3758 = vrot.slane %v3757, 2
        %v3759 = vrot.slane %v3355, 7
        %v3760 = vrot.slane %v3759, 2
        %v3761 = vrot.slane %v3363, 7
        %v3762 = vrot.slane %v3761, 2
        %v3763 = vrot.slane %v3362, 7
        %v3764 = vrot.slane %v3763, 2
        %v3765 = vrot.slane %v3364, 7
        %v3766 = vrot.slane %v3765, 2
        %v3767 = vrot.slane %v3372, 7
        %v3768 = vrot.slane %v3767, 2
        %v3769 = vrot.slane %v3380, 7
        %v3770 = vrot.slane %v3769, 2
        %v3771 = vrot.slane %v3379, 7
        %v3772 = vrot.slane %v3771, 2
        %v3773 = vrot.slane %v3381, 7
        %v3774 = vrot.slane %v3773, 2
        %v3775 = vrot.slane %v3389, 7
        %v3776 = vrot.slane %v3775, 2
        %v3777 = vrot.slane %v3397, 7
        %v3778 = vrot.slane %v3777, 2
        %v3779 = vrot.slane %v3396, 7
        %v3780 = vrot.slane %v3779, 2
        %v3781 = vrot.slane %v3398, 7
        %v3782 = vrot.slane %v3781, 2
        %v3911 = vmax.f32 %v2862, %v3528
        %v3912 = vmax.f32 %v2870, %v3530
        %v3913 = vmax.f32 %v2869, %v3532
        %v3914 = vmax.f32 %v2871, %v3534
        %v3915 = vmax.f32 %v2879, %v3536
        %v3916 = vmax.f32 %v2887, %v3538
        %v3917 = vmax.f32 %v2886, %v3540
        %v3918 = vmax.f32 %v2888, %v3542
        %v3919 = vmax.f32 %v2896, %v3544
        %v3920 = vmax.f32 %v2904, %v3546
        %v3921 = vmax.f32 %v2903, %v3548
        %v3922 = vmax.f32 %v2905, %v3550
        %v3923 = vmax.f32 %v2913, %v3552
        %v3924 = vmax.f32 %v2921, %v3554
        %v3925 = vmax.f32 %v2920, %v3556
        %v3926 = vmax.f32 %v2922, %v3558
        %v3927 = vmax.f32 %v2930, %v3560
        %v3928 = vmax.f32 %v2938, %v3562
        %v3929 = vmax.f32 %v2937, %v3564
        %v3930 = vmax.f32 %v2939, %v3566
        %v3931 = vmax.f32 %v2947, %v3568
        %v3932 = vmax.f32 %v2955, %v3570
        %v3933 = vmax.f32 %v2954, %v3572
        %v3934 = vmax.f32 %v2956, %v3574
        %v3935 = vmax.f32 %v2964, %v3576
        %v3936 = vmax.f32 %v2972, %v3578
        %v3937 = vmax.f32 %v2971, %v3580
        %v3938 = vmax.f32 %v2973, %v3582
        %v3939 = vmax.f32 %v2981, %v3584
        %v3940 = vmax.f32 %v2989, %v3586
        %v3941 = vmax.f32 %v2988, %v3588
        %v3942 = vmax.f32 %v2990, %v3590
        %v3943 = vmax.f32 %v2998, %v3592
        %v3944 = vmax.f32 %v3006, %v3594
        %v3945 = vmax.f32 %v3005, %v3596
        %v3946 = vmax.f32 %v3007, %v3598
        %v3947 = vmax.f32 %v3015, %v3600
        %v3948 = vmax.f32 %v3023, %v3602
        %v3949 = vmax.f32 %v3022, %v3604
        %v3950 = vmax.f32 %v3024, %v3606
        %v3951 = vmax.f32 %v3032, %v3608
        %v3952 = vmax.f32 %v3040, %v3610
        %v3953 = vmax.f32 %v3039, %v3612
        %v3954 = vmax.f32 %v3041, %v3614
        %v3955 = vmax.f32 %v3049, %v3616
        %v3956 = vmax.f32 %v3057, %v3618
        %v3957 = vmax.f32 %v3056, %v3620
        %v3958 = vmax.f32 %v3058, %v3622
        %v3959 = vmax.f32 %v3066, %v3624
        %v3960 = vmax.f32 %v3074, %v3626
        %v3961 = vmax.f32 %v3073, %v3628
        %v3962 = vmax.f32 %v3075, %v3630
        %v3963 = vmax.f32 %v3083, %v3632
        %v3964 = vmax.f32 %v3091, %v3634
        %v3965 = vmax.f32 %v3090, %v3636
        %v3966 = vmax.f32 %v3092, %v3638
        %v3967 = vmax.f32 %v3100, %v3640
        %v3968 = vmax.f32 %v3108, %v3642
        %v3969 = vmax.f32 %v3107, %v3644
        %v3970 = vmax.f32 %v3109, %v3646
        %v3971 = vmax.f32 %v3117, %v3648
        %v3972 = vmax.f32 %v3125, %v3650
        %v3973 = vmax.f32 %v3124, %v3652
        %v3974 = vmax.f32 %v3126, %v3654
        %v3975 = vmax.f32 %v3134, %v3656
        %v3976 = vmax.f32 %v3142, %v3658
        %v3977 = vmax.f32 %v3141, %v3660
        %v3978 = vmax.f32 %v3143, %v3662
        %v3979 = vmax.f32 %v3151, %v3664
        %v3980 = vmax.f32 %v3159, %v3666
        %v3981 = vmax.f32 %v3158, %v3668
        %v3982 = vmax.f32 %v3160, %v3670
        %v3983 = vmax.f32 %v3168, %v3672
        %v3984 = vmax.f32 %v3176, %v3674
        %v3985 = vmax.f32 %v3175, %v3676
        %v3986 = vmax.f32 %v3177, %v3678
        %v3987 = vmax.f32 %v3185, %v3680
        %v3988 = vmax.f32 %v3193, %v3682
        %v3989 = vmax.f32 %v3192, %v3684
        %v3990 = vmax.f32 %v3194, %v3686
        %v3991 = vmax.f32 %v3202, %v3688
        %v3992 = vmax.f32 %v3210, %v3690
        %v3993 = vmax.f32 %v3209, %v3692
        %v3994 = vmax.f32 %v3211, %v3694
        %v3995 = vmax.f32 %v3219, %v3696
        %v3996 = vmax.f32 %v3227, %v3698
        %v3997 = vmax.f32 %v3226, %v3700
        %v3998 = vmax.f32 %v3228, %v3702
        %v3999 = vmax.f32 %v3236, %v3704
        %v4000 = vmax.f32 %v3244, %v3706
        %v4001 = vmax.f32 %v3243, %v3708
        %v4002 = vmax.f32 %v3245, %v3710
        %v4003 = vmax.f32 %v3253, %v3712
        %v4004 = vmax.f32 %v3261, %v3714
        %v4005 = vmax.f32 %v3260, %v3716
        %v4006 = vmax.f32 %v3262, %v3718
        %v4007 = vmax.f32 %v3270, %v3720
        %v4008 = vmax.f32 %v3278, %v3722
        %v4009 = vmax.f32 %v3277, %v3724
        %v4010 = vmax.f32 %v3279, %v3726
        %v4011 = vmax.f32 %v3287, %v3728
        %v4012 = vmax.f32 %v3295, %v3730
        %v4013 = vmax.f32 %v3294, %v3732
        %v4014 = vmax.f32 %v3296, %v3734
        %v4015 = vmax.f32 %v3304, %v3736
        %v4016 = vmax.f32 %v3312, %v3738
        %v4017 = vmax.f32 %v3311, %v3740
        %v4018 = vmax.f32 %v3313, %v3742
        %v4019 = vmax.f32 %v3321, %v3744
        %v4020 = vmax.f32 %v3329, %v3746
        %v4021 = vmax.f32 %v3328, %v3748
        %v4022 = vmax.f32 %v3330, %v3750
        %v4023 = vmax.f32 %v3338, %v3752
        %v4024 = vmax.f32 %v3346, %v3754
        %v4025 = vmax.f32 %v3345, %v3756
        %v4026 = vmax.f32 %v3347, %v3758
        %v4027 = vmax.f32 %v3355, %v3760
        %v4028 = vmax.f32 %v3363, %v3762
        %v4029 = vmax.f32 %v3362, %v3764
        %v4030 = vmax.f32 %v3364, %v3766
        %v4031 = vmax.f32 %v3372, %v3768
        %v4032 = vmax.f32 %v3380, %v3770
        %v4033 = vmax.f32 %v3379, %v3772
        %v4034 = vmax.f32 %v3381, %v3774
        %v4035 = vmax.f32 %v3389, %v3776
        %v4036 = vmax.f32 %v3397, %v3778
        %v4037 = vmax.f32 %v3396, %v3780
        %v4038 = vmax.f32 %v3398, %v3782
        %v4039 = vmax.f32 %v3911, %v3919
        %v4040 = vmax.f32 %v3912, %v3920
        %v4041 = vmax.f32 %v3913, %v3921
        %v4042 = vmax.f32 %v3914, %v3922
        %v4043 = vmax.f32 %v3915, %v3923
        %v4044 = vmax.f32 %v3916, %v3924
        %v4045 = vmax.f32 %v3917, %v3925
        %v4046 = vmax.f32 %v3918, %v3926
        %v4047 = vmax.f32 %v3927, %v3935
        %v4048 = vmax.f32 %v3928, %v3936
        %v4049 = vmax.f32 %v3929, %v3937
        %v4050 = vmax.f32 %v3930, %v3938
        %v4051 = vmax.f32 %v3931, %v3939
        %v4052 = vmax.f32 %v3932, %v3940
        %v4053 = vmax.f32 %v3933, %v3941
        %v4054 = vmax.f32 %v3934, %v3942
        %v4055 = vmax.f32 %v3943, %v3951
        %v4056 = vmax.f32 %v3944, %v3952
        %v4057 = vmax.f32 %v3945, %v3953
        %v4058 = vmax.f32 %v3946, %v3954
        %v4059 = vmax.f32 %v3947, %v3955
        %v4060 = vmax.f32 %v3948, %v3956
        %v4061 = vmax.f32 %v3949, %v3957
        %v4062 = vmax.f32 %v3950, %v3958
        %v4063 = vmax.f32 %v3959, %v3967
        %v4064 = vmax.f32 %v3960, %v3968
        %v4065 = vmax.f32 %v3961, %v3969
        %v4066 = vmax.f32 %v3962, %v3970
        %v4067 = vmax.f32 %v3963, %v3971
        %v4068 = vmax.f32 %v3964, %v3972
        %v4069 = vmax.f32 %v3965, %v3973
        %v4070 = vmax.f32 %v3966, %v3974
        %v4071 = vmax.f32 %v3975, %v3983
        %v4072 = vmax.f32 %v3976, %v3984
        %v4073 = vmax.f32 %v3977, %v3985
        %v4074 = vmax.f32 %v3978, %v3986
        %v4075 = vmax.f32 %v3979, %v3987
        %v4076 = vmax.f32 %v3980, %v3988
        %v4077 = vmax.f32 %v3981, %v3989
        %v4078 = vmax.f32 %v3982, %v3990
        %v4079 = vmax.f32 %v3991, %v3999
        %v4080 = vmax.f32 %v3992, %v4000
        %v4081 = vmax.f32 %v3993, %v4001
        %v4082 = vmax.f32 %v3994, %v4002
        %v4083 = vmax.f32 %v3995, %v4003
        %v4084 = vmax.f32 %v3996, %v4004
        %v4085 = vmax.f32 %v3997, %v4005
        %v4086 = vmax.f32 %v3998, %v4006
        %v4087 = vmax.f32 %v4007, %v4015
        %v4088 = vmax.f32 %v4008, %v4016
        %v4089 = vmax.f32 %v4009, %v4017
        %v4090 = vmax.f32 %v4010, %v4018
        %v4091 = vmax.f32 %v4011, %v4019
        %v4092 = vmax.f32 %v4012, %v4020
        %v4093 = vmax.f32 %v4013, %v4021
        %v4094 = vmax.f32 %v4014, %v4022
        %v4095 = vmax.f32 %v4023, %v4031
        %v4096 = vmax.f32 %v4024, %v4032
        %v4097 = vmax.f32 %v4025, %v4033
        %v4098 = vmax.f32 %v4026, %v4034
        %v4099 = vmax.f32 %v4027, %v4035
        %v4100 = vmax.f32 %v4028, %v4036
        %v4101 = vmax.f32 %v4029, %v4037
        %v4102 = vmax.f32 %v4030, %v4038
        %v4103 = vpack.c.bf16 %v4039, %v4039
        %v4104 = vpack.c.bf16 %v4040, %v4040
        %v4105 = vpack.c.bf16 %v4041, %v4041
        %v4106 = vpack.c.bf16 %v4042, %v4042
        %v4107 = vpack.c.bf16 %v4043, %v4043
        %v4108 = vpack.c.bf16 %v4044, %v4044
        %v4109 = vpack.c.bf16 %v4045, %v4045
        %v4110 = vpack.c.bf16 %v4046, %v4046
        %v4111 = vpack.c.bf16 %v4047, %v4047
        %v4112 = vpack.c.bf16 %v4048, %v4048
        %v4113 = vpack.c.bf16 %v4049, %v4049
        %v4114 = vpack.c.bf16 %v4050, %v4050
        %v4115 = vpack.c.bf16 %v4051, %v4051
        %v4116 = vpack.c.bf16 %v4052, %v4052
        %v4117 = vpack.c.bf16 %v4053, %v4053
        %v4118 = vpack.c.bf16 %v4054, %v4054
        %v4119 = vpack.c.bf16 %v4055, %v4055
        %v4120 = vpack.c.bf16 %v4056, %v4056
        %v4121 = vpack.c.bf16 %v4057, %v4057
        %v4122 = vpack.c.bf16 %v4058, %v4058
        %v4123 = vpack.c.bf16 %v4059, %v4059
        %v4124 = vpack.c.bf16 %v4060, %v4060
        %v4125 = vpack.c.bf16 %v4061, %v4061
        %v4126 = vpack.c.bf16 %v4062, %v4062
        %v4127 = vpack.c.bf16 %v4063, %v4063
        %v4128 = vpack.c.bf16 %v4064, %v4064
        %v4129 = vpack.c.bf16 %v4065, %v4065
        %v4130 = vpack.c.bf16 %v4066, %v4066
        %v4131 = vpack.c.bf16 %v4067, %v4067
        %v4132 = vpack.c.bf16 %v4068, %v4068
        %v4133 = vpack.c.bf16 %v4069, %v4069
        %v4134 = vpack.c.bf16 %v4070, %v4070
        %v4135 = vpack.c.bf16 %v4071, %v4071
        %v4136 = vpack.c.bf16 %v4072, %v4072
        %v4137 = vpack.c.bf16 %v4073, %v4073
        %v4138 = vpack.c.bf16 %v4074, %v4074
        %v4139 = vpack.c.bf16 %v4075, %v4075
        %v4140 = vpack.c.bf16 %v4076, %v4076
        %v4141 = vpack.c.bf16 %v4077, %v4077
        %v4142 = vpack.c.bf16 %v4078, %v4078
        %v4143 = vpack.c.bf16 %v4079, %v4079
        %v4144 = vpack.c.bf16 %v4080, %v4080
        %v4145 = vpack.c.bf16 %v4081, %v4081
        %v4146 = vpack.c.bf16 %v4082, %v4082
        %v4147 = vpack.c.bf16 %v4083, %v4083
        %v4148 = vpack.c.bf16 %v4084, %v4084
        %v4149 = vpack.c.bf16 %v4085, %v4085
        %v4150 = vpack.c.bf16 %v4086, %v4086
        %v4151 = vpack.c.bf16 %v4087, %v4087
        %v4152 = vpack.c.bf16 %v4088, %v4088
        %v4153 = vpack.c.bf16 %v4089, %v4089
        %v4154 = vpack.c.bf16 %v4090, %v4090
        %v4155 = vpack.c.bf16 %v4091, %v4091
        %v4156 = vpack.c.bf16 %v4092, %v4092
        %v4157 = vpack.c.bf16 %v4093, %v4093
        %v4158 = vpack.c.bf16 %v4094, %v4094
        %v4159 = vpack.c.bf16 %v4095, %v4095
        %v4160 = vpack.c.bf16 %v4096, %v4096
        %v4161 = vpack.c.bf16 %v4097, %v4097
        %v4162 = vpack.c.bf16 %v4098, %v4098
        %v4163 = vpack.c.bf16 %v4099, %v4099
        %v4164 = vpack.c.bf16 %v4100, %v4100
        %v4165 = vpack.c.bf16 %v4101, %v4101
        %v4166 = vpack.c.bf16 %v4102, %v4102
        %v4231 = vunpack.c.l.b16 %v4103
        %v4232 = vunpack.c.l.b16 %v4104
        %v4233 = vunpack.c.l.b16 %v4105
        %v4234 = vunpack.c.l.b16 %v4106
        %v4235 = vunpack.c.l.b16 %v4107
        %v4236 = vunpack.c.l.b16 %v4108
        %v4237 = vunpack.c.l.b16 %v4109
        %v4238 = vunpack.c.l.b16 %v4110
        %v4239 = vunpack.c.l.b16 %v4111
        %v4240 = vunpack.c.l.b16 %v4112
        %v4241 = vunpack.c.l.b16 %v4113
        %v4242 = vunpack.c.l.b16 %v4114
        %v4243 = vunpack.c.l.b16 %v4115
        %v4244 = vunpack.c.l.b16 %v4116
        %v4245 = vunpack.c.l.b16 %v4117
        %v4246 = vunpack.c.l.b16 %v4118
        %v4247 = vunpack.c.l.b16 %v4119
        %v4248 = vunpack.c.l.b16 %v4120
        %v4249 = vunpack.c.l.b16 %v4121
        %v4250 = vunpack.c.l.b16 %v4122
        %v4251 = vunpack.c.l.b16 %v4123
        %v4252 = vunpack.c.l.b16 %v4124
        %v4253 = vunpack.c.l.b16 %v4125
        %v4254 = vunpack.c.l.b16 %v4126
        %v4255 = vunpack.c.l.b16 %v4127
        %v4256 = vunpack.c.l.b16 %v4128
        %v4257 = vunpack.c.l.b16 %v4129
        %v4258 = vunpack.c.l.b16 %v4130
        %v4259 = vunpack.c.l.b16 %v4131
        %v4260 = vunpack.c.l.b16 %v4132
        %v4261 = vunpack.c.l.b16 %v4133
        %v4262 = vunpack.c.l.b16 %v4134
        %v4263 = vunpack.c.l.b16 %v4135
        %v4264 = vunpack.c.l.b16 %v4136
        %v4265 = vunpack.c.l.b16 %v4137
        %v4266 = vunpack.c.l.b16 %v4138
        %v4267 = vunpack.c.l.b16 %v4139
        %v4268 = vunpack.c.l.b16 %v4140
        %v4269 = vunpack.c.l.b16 %v4141
        %v4270 = vunpack.c.l.b16 %v4142
        %v4271 = vunpack.c.l.b16 %v4143
        %v4272 = vunpack.c.l.b16 %v4144
        %v4273 = vunpack.c.l.b16 %v4145
        %v4274 = vunpack.c.l.b16 %v4146
        %v4275 = vunpack.c.l.b16 %v4147
        %v4276 = vunpack.c.l.b16 %v4148
        %v4277 = vunpack.c.l.b16 %v4149
        %v4278 = vunpack.c.l.b16 %v4150
        %v4279 = vunpack.c.l.b16 %v4151
        %v4280 = vunpack.c.l.b16 %v4152
        %v4281 = vunpack.c.l.b16 %v4153
        %v4282 = vunpack.c.l.b16 %v4154
        %v4283 = vunpack.c.l.b16 %v4155
        %v4284 = vunpack.c.l.b16 %v4156
        %v4285 = vunpack.c.l.b16 %v4157
        %v4286 = vunpack.c.l.b16 %v4158
        %v4287 = vunpack.c.l.b16 %v4159
        %v4288 = vunpack.c.l.b16 %v4160
        %v4289 = vunpack.c.l.b16 %v4161
        %v4290 = vunpack.c.l.b16 %v4162
        %v4291 = vunpack.c.l.b16 %v4163
        %v4292 = vunpack.c.l.b16 %v4164
        %v4293 = vunpack.c.l.b16 %v4165
        %v4294 = vunpack.c.l.b16 %v4166
        %v4295 = vrot.slane %v4231, 7
        %v4296 = vrot.slane %v4232, 6
        %vm4297 = vcmask 1042434
        %v4298 = vsel %vm4297, %v4296, %v4295
        %v4299 = vrot.slane %v4233, 5
        %vm4300 = vcmask 1043459
        %v4301 = vsel %vm4300, %v4299, %v4298
        %v4302 = vrot.slane %v4234, 4
        %vm4303 = vcmask 1044484
        %v4304 = vsel %vm4303, %v4302, %v4301
        %v4305 = vrot.slane %v4235, 3
        %vm4306 = vcmask 1045509
        %v4307 = vsel %vm4306, %v4305, %v4304
        %v4308 = vrot.slane %v4236, 2
        %vm4309 = vcmask 1046534
        %v4310 = vsel %vm4309, %v4308, %v4307
        %v4311 = vrot.slane %v4237, 1
        %vm4312 = vcmask 1047559
        %v4313 = vsel %vm4312, %v4311, %v4310
        %v4314 = vrot.slane %v4239, 7
        %v4315 = vrot.slane %v4240, 6
        %v4316 = vsel %vm4297, %v4315, %v4314
        %v4317 = vrot.slane %v4241, 5
        %v4318 = vsel %vm4300, %v4317, %v4316
        %v4319 = vrot.slane %v4242, 4
        %v4320 = vsel %vm4303, %v4319, %v4318
        %v4321 = vrot.slane %v4243, 3
        %v4322 = vsel %vm4306, %v4321, %v4320
        %v4323 = vrot.slane %v4244, 2
        %v4324 = vsel %vm4309, %v4323, %v4322
        %v4325 = vrot.slane %v4245, 1
        %v4326 = vsel %vm4312, %v4325, %v4324
        %v4327 = vrot.slane %v4247, 7
        %v4328 = vrot.slane %v4248, 6
        %v4329 = vsel %vm4297, %v4328, %v4327
        %v4330 = vrot.slane %v4249, 5
        %v4331 = vsel %vm4300, %v4330, %v4329
        %v4332 = vrot.slane %v4250, 4
        %v4333 = vsel %vm4303, %v4332, %v4331
        %v4334 = vrot.slane %v4251, 3
        %v4335 = vsel %vm4306, %v4334, %v4333
        %v4336 = vrot.slane %v4252, 2
        %v4337 = vsel %vm4309, %v4336, %v4335
        %v4338 = vrot.slane %v4253, 1
        %v4339 = vsel %vm4312, %v4338, %v4337
        %v4340 = vrot.slane %v4255, 7
        %v4341 = vrot.slane %v4256, 6
        %v4342 = vsel %vm4297, %v4341, %v4340
        %v4343 = vrot.slane %v4257, 5
        %v4344 = vsel %vm4300, %v4343, %v4342
        %v4345 = vrot.slane %v4258, 4
        %v4346 = vsel %vm4303, %v4345, %v4344
        %v4347 = vrot.slane %v4259, 3
        %v4348 = vsel %vm4306, %v4347, %v4346
        %v4349 = vrot.slane %v4260, 2
        %v4350 = vsel %vm4309, %v4349, %v4348
        %v4351 = vrot.slane %v4261, 1
        %v4352 = vsel %vm4312, %v4351, %v4350
        %v4353 = vrot.slane %v4263, 7
        %v4354 = vrot.slane %v4264, 6
        %v4355 = vsel %vm4297, %v4354, %v4353
        %v4356 = vrot.slane %v4265, 5
        %v4357 = vsel %vm4300, %v4356, %v4355
        %v4358 = vrot.slane %v4266, 4
        %v4359 = vsel %vm4303, %v4358, %v4357
        %v4360 = vrot.slane %v4267, 3
        %v4361 = vsel %vm4306, %v4360, %v4359
        %v4362 = vrot.slane %v4268, 2
        %v4363 = vsel %vm4309, %v4362, %v4361
        %v4364 = vrot.slane %v4269, 1
        %v4365 = vsel %vm4312, %v4364, %v4363
        %v4366 = vrot.slane %v4271, 7
        %v4367 = vrot.slane %v4272, 6
        %v4368 = vsel %vm4297, %v4367, %v4366
        %v4369 = vrot.slane %v4273, 5
        %v4370 = vsel %vm4300, %v4369, %v4368
        %v4371 = vrot.slane %v4274, 4
        %v4372 = vsel %vm4303, %v4371, %v4370
        %v4373 = vrot.slane %v4275, 3
        %v4374 = vsel %vm4306, %v4373, %v4372
        %v4375 = vrot.slane %v4276, 2
        %v4376 = vsel %vm4309, %v4375, %v4374
        %v4377 = vrot.slane %v4277, 1
        %v4378 = vsel %vm4312, %v4377, %v4376
        %v4379 = vrot.slane %v4279, 7
        %v4380 = vrot.slane %v4280, 6
        %v4381 = vsel %vm4297, %v4380, %v4379
        %v4382 = vrot.slane %v4281, 5
        %v4383 = vsel %vm4300, %v4382, %v4381
        %v4384 = vrot.slane %v4282, 4
        %v4385 = vsel %vm4303, %v4384, %v4383
        %v4386 = vrot.slane %v4283, 3
        %v4387 = vsel %vm4306, %v4386, %v4385
        %v4388 = vrot.slane %v4284, 2
        %v4389 = vsel %vm4309, %v4388, %v4387
        %v4390 = vrot.slane %v4285, 1
        %v4391 = vsel %vm4312, %v4390, %v4389
        %v4392 = vrot.slane %v4287, 7
        %v4393 = vrot.slane %v4288, 6
        %v4394 = vsel %vm4297, %v4393, %v4392
        %v4395 = vrot.slane %v4289, 5
        %v4396 = vsel %vm4300, %v4395, %v4394
        %v4397 = vrot.slane %v4290, 4
        %v4398 = vsel %vm4303, %v4397, %v4396
        %v4399 = vrot.slane %v4291, 3
        %v4400 = vsel %vm4306, %v4399, %v4398
        %v4401 = vrot.slane %v4292, 2
        %v4402 = vsel %vm4309, %v4401, %v4400
        %v4403 = vrot.slane %v4293, 1
        %v4404 = vsel %vm4312, %v4403, %v4402
        %v4405 = vpack.c.b16 %v4238, %v4313
        %v4406 = vpack.c.b16 %v4246, %v4326
        %v4407 = vpack.c.b16 %v4254, %v4339
        %v4408 = vpack.c.b16 %v4262, %v4352
        %v4409 = vpack.c.b16 %v4270, %v4365
        %v4410 = vpack.c.b16 %v4278, %v4378
        %v4411 = vpack.c.b16 %v4286, %v4391
        %v4412 = vpack.c.b16 %v4294, %v4404
        %v4421 = vsel %vm536, 0, %v4405
        %v4422 = vsel %vm536, 0, %v4406
        %v4423 = vsel %vm536, 0, %v4407
        %v4424 = vsel %vm536, 0, %v4408
        %v4425 = vsel %vm536, 0, %v4409
        %v4426 = vsel %vm536, 0, %v4410
        %v4427 = vsel %vm536, 0, %v4411
        %v4428 = vsel %vm536, 0, %v4412
        %vm4429 = vcmask 1044480
        %vm4430 = vsmask.f32 4352
        %vm4431 = vmand %vm4429, %vm4430
        %v4432 = vsel %vm4431, %v4421, 0
        %v4433 = vsel %vm4431, %v4422, 0
        %v4434 = vsel %vm4431, %v4423, 0
        %v4435 = vsel %vm4431, %v4424, 0
        %v4436 = vsel %vm4431, %v4425, 0
        %v4437 = vsel %vm4431, %v4426, 0
        %v4438 = vsel %vm4431, %v4427, 0
        %v4439 = vsel %vm4431, %v4428, 0
        %v4440 = vld [vmem:[%s4] sm:$0xf]
        %v4441 = vld [vmem:[%s4 + $0x4] sm:$0xf]
        %v4442 = vld [vmem:[%s4 + $0x8] sm:$0xf]
        %v4443 = vld [vmem:[%s4 + $0xc] sm:$0xf]
        %v4444 = vld [vmem:[%s4 + $0x10] sm:$0xf]
        %v4445 = vld [vmem:[%s4 + $0x14] sm:$0xf]
        %v4446 = vld [vmem:[%s4 + $0x18] sm:$0xf]
        %v4447 = vld [vmem:[%s4 + $0x1c] sm:$0xf]
        %v4448 = vld [vmem:[%s4 + $0x20] sm:$0xf]
        %v4456 = vunpack.c.l.b16 0
        %v4457 = vunpack.c.h.b16 0
        %v4458 = vunpack.c.l.b16 %v4432
        %v4459 = vunpack.c.h.b16 %v4432
        %v4460 = vunpack.c.l.b16 %v4433
        %v4461 = vunpack.c.h.b16 %v4433
        %v4462 = vunpack.c.l.b16 %v4434
        %v4463 = vunpack.c.h.b16 %v4434
        %v4464 = vunpack.c.l.b16 %v4435
        %v4465 = vunpack.c.h.b16 %v4435
        %v4466 = vunpack.c.l.b16 %v4436
        %v4467 = vunpack.c.h.b16 %v4436
        %v4468 = vunpack.c.l.b16 %v4437
        %v4469 = vunpack.c.h.b16 %v4437
        %v4470 = vunpack.c.l.b16 %v4438
        %v4471 = vunpack.c.h.b16 %v4438
        %v4472 = vpack.c.b16 %v4456, %v4456
        %v4473 = vpack.c.b16 %v4457, %v4457
        %v4474 = vpack.c.b16 %v4458, %v4458
        %v4475 = vpack.c.b16 %v4459, %v4459
        %v4476 = vpack.c.b16 %v4460, %v4460
        %v4477 = vpack.c.b16 %v4461, %v4461
        %v4478 = vpack.c.b16 %v4462, %v4462
        %v4479 = vpack.c.b16 %v4463, %v4463
        %v4480 = vpack.c.b16 %v4464, %v4464
        %v4481 = vpack.c.b16 %v4465, %v4465
        %v4482 = vpack.c.b16 %v4466, %v4466
        %v4483 = vpack.c.b16 %v4467, %v4467
        %v4484 = vpack.c.b16 %v4468, %v4468
        %v4485 = vpack.c.b16 %v4469, %v4469
        %v4486 = vpack.c.b16 %v4470, %v4470
        %v4487 = vpack.c.b16 %v4471, %v4471
        %vm4488 = vsmask.f32 3328
        %vm4489 = vsmask.f32 7440
        %vm4490 = vmor %vm4488, %vm4489
        %v4492 = vshrl.u32 %v4472, 16
        %v4494 = vrot.slane %v4492, 4
        %v4495 = vshll.u32 %v4472, 16
        %v4497 = vrot.slane %v4495, 5
        %v4498 = vor.u32 %v4494, %v4497
        %v4499 = vrot.slane %v4498, 4
        %v4501 = vshll.u32 %v4473, 16
        %v4503 = vrot.slane %v4501, 5
        %v4504 = vsel %vm4490, %v4499, %v4503
        %v4506 = vshrl.u32 %v4474, 16
        %v4508 = vrot.slane %v4506, 4
        %v4509 = vshll.u32 %v4474, 16
        %v4511 = vrot.slane %v4509, 5
        %v4512 = vor.u32 %v4508, %v4511
        %v4513 = vrot.slane %v4512, 4
        %v4515 = vshll.u32 %v4475, 16
        %v4517 = vrot.slane %v4515, 5
        %v4518 = vsel %vm4490, %v4513, %v4517
        %v4520 = vshrl.u32 %v4476, 16
        %v4522 = vrot.slane %v4520, 4
        %v4523 = vshll.u32 %v4476, 16
        %v4525 = vrot.slane %v4523, 5
        %v4526 = vor.u32 %v4522, %v4525
        %v4527 = vrot.slane %v4526, 4
        %v4529 = vshll.u32 %v4477, 16
        %v4531 = vrot.slane %v4529, 5
        %v4532 = vsel %vm4490, %v4527, %v4531
        %v4534 = vshrl.u32 %v4478, 16
        %v4536 = vrot.slane %v4534, 4
        %v4537 = vshll.u32 %v4478, 16
        %v4539 = vrot.slane %v4537, 5
        %v4540 = vor.u32 %v4536, %v4539
        %v4541 = vrot.slane %v4540, 4
        %v4543 = vshll.u32 %v4479, 16
        %v4545 = vrot.slane %v4543, 5
        %v4546 = vsel %vm4490, %v4541, %v4545
        %v4548 = vshrl.u32 %v4480, 16
        %v4550 = vrot.slane %v4548, 4
        %v4551 = vshll.u32 %v4480, 16
        %v4553 = vrot.slane %v4551, 5
        %v4554 = vor.u32 %v4550, %v4553
        %v4555 = vrot.slane %v4554, 4
        %v4557 = vshll.u32 %v4481, 16
        %v4559 = vrot.slane %v4557, 5
        %v4560 = vsel %vm4490, %v4555, %v4559
        %v4562 = vshrl.u32 %v4482, 16
        %v4564 = vrot.slane %v4562, 4
        %v4565 = vshll.u32 %v4482, 16
        %v4567 = vrot.slane %v4565, 5
        %v4568 = vor.u32 %v4564, %v4567
        %v4569 = vrot.slane %v4568, 4
        %v4571 = vshll.u32 %v4483, 16
        %v4573 = vrot.slane %v4571, 5
        %v4574 = vsel %vm4490, %v4569, %v4573
        %v4576 = vshrl.u32 %v4484, 16
        %v4578 = vrot.slane %v4576, 4
        %v4579 = vshll.u32 %v4484, 16
        %v4581 = vrot.slane %v4579, 5
        %v4582 = vor.u32 %v4578, %v4581
        %v4583 = vrot.slane %v4582, 4
        %v4585 = vshll.u32 %v4485, 16
        %v4587 = vrot.slane %v4585, 5
        %v4588 = vsel %vm4490, %v4583, %v4587
        %v4590 = vshrl.u32 %v4486, 16
        %v4592 = vrot.slane %v4590, 4
        %v4593 = vshll.u32 %v4486, 16
        %v4595 = vrot.slane %v4593, 5
        %v4596 = vor.u32 %v4592, %v4595
        %v4597 = vrot.slane %v4596, 4
        %v4599 = vshll.u32 %v4487, 16
        %v4601 = vrot.slane %v4599, 5
        %v4602 = vsel %vm4490, %v4597, %v4601
        %v4603 = vunpack.c.l.b16 %v4504
        %v4604 = vunpack.c.l.b16 %v4518
        %v4605 = vunpack.c.l.b16 %v4532
        %v4606 = vunpack.c.l.b16 %v4546
        %v4607 = vunpack.c.l.b16 %v4560
        %v4608 = vunpack.c.l.b16 %v4574
        %v4609 = vunpack.c.l.b16 %v4588
        %v4610 = vunpack.c.l.b16 %v4602
        %v4611 = vpack.c.b16 %v4604, %v4603
        %v4612 = vpack.c.b16 %v4606, %v4605
        %v4613 = vpack.c.b16 %v4608, %v4607
        %v4614 = vpack.c.b16 %v4610, %v4609
        %vm4615 = vcmask 64512
        %v4617 = vsel %vm4615, %v4611, 0
        %v4620 = vsel %vm4615, %v4612, 0
        %v4623 = vsel %vm4615, %v4613, 0
        %v4626 = vsel %vm4615, %v4614, 0
        %vm4628 = vcmask 1043456
        %v4630 = vsel %vm4628, %v4441, 0
        %4632 = vmatprep.subr.bf16.mxu0 0
        %4633 = vmatpush1.bf16.msra.mxu0 0
        %4634 = vmatprep.subr.bf16.mxu0 0
        %4635 = vmatpush1.bf16.msra.mxu0 0
        %4636 = vmatprep.subr.bf16.mxu0 0
        %4637 = vmatpush1.bf16.msra.mxu0 0
        %4638 = vmatprep.subr.bf16.mxu0 0
        %4639 = vmatpush1.bf16.msra.mxu0 0
        %4640 = vmatprep.subr.bf16.mxu0 0
        %4641 = vmatpush1.bf16.msra.mxu0 0
        %4642 = vmatprep.subr.bf16.mxu0 0
        %4643 = vmatpush1.bf16.msra.mxu0 0
        %4644 = vmatprep.subr.bf16.mxu0 0
        %4645 = vmatpush1.bf16.msra.mxu0 0
        %4646 = vmatprep.subr.bf16.mxu0 0
        %4647 = vmatpush1.bf16.msra.mxu0 %v4630
        %4648 = vmatprep.subr.bf16.mxu0 0
        %4649 = vmatpush2.bf16.msra.mxu0 0
        %4650 = vmatprep.subr.bf16.mxu0 0
        %4651 = vmatpush2.bf16.msra.mxu0 0
        %4652 = vmatprep.subr.bf16.mxu0 0
        %4653 = vmatpush2.bf16.msra.mxu0 0
        %4654 = vmatprep.subr.bf16.mxu0 0
        %4655 = vmatpush2.bf16.msra.mxu0 0
        %4656 = vmatprep.subr.bf16.mxu0 0
        %4657 = vmatpush2.bf16.msra.mxu0 0
        %4658 = vmatprep.subr.bf16.mxu0 0
        %4659 = vmatpush2.bf16.msra.mxu0 0
        %4660 = vmatprep.subr.bf16.mxu0 0
        %4661 = vmatpush2.bf16.msra.mxu0 0
        %4662 = vmatprep.subr.bf16.mxu0 0
        %4663 = vmatpush2.bf16.msra.mxu0 0
        %4664 = vmatprep.mubr.bf16.mxu0 0
        %4665 = vmatmul.mubr.bf16.gmra.mxu0 %v4617
        %v4666 = vpop.f32.mrf.mxu0
        %v4667 = vadd.f32 0.0, %v4666
        %v4668 = vpop.f32.mrf.mxu0
        %v4669 = vpop.f32.mrf.mxu0
        %v4670 = vadd.f32 0.0, %v4669
        %v4671 = vpop.f32.mrf.mxu0
        %4672 = vmatprep.mubr.bf16.mxu0 0
        %4673 = vmatmul.mubr.bf16.gmra.mxu0 %v4620
        %v4674 = vpop.f32.mrf.mxu0
        %v4675 = vadd.f32 0.0, %v4674
        %v4676 = vpop.f32.mrf.mxu0
        %v4677 = vpop.f32.mrf.mxu0
        %v4678 = vadd.f32 0.0, %v4677
        %v4679 = vpop.f32.mrf.mxu0
        %4680 = vmatprep.mubr.bf16.mxu0 0
        %4681 = vmatmul.mubr.bf16.gmra.mxu0 %v4623
        %v4682 = vpop.f32.mrf.mxu0
        %v4683 = vadd.f32 0.0, %v4682
        %v4684 = vpop.f32.mrf.mxu0
        %v4685 = vpop.f32.mrf.mxu0
        %v4686 = vadd.f32 0.0, %v4685
        %v4687 = vpop.f32.mrf.mxu0
        %4688 = vmatprep.mubr.bf16.mxu0 0
        %4689 = vmatmul.mubr.bf16.gmra.mxu0 %v4626
        %v4690 = vpop.f32.mrf.mxu0
        %v4691 = vadd.f32 0.0, %v4690
        %v4692 = vpop.f32.mrf.mxu0
        %v4693 = vpop.f32.mrf.mxu0
        %v4694 = vadd.f32 0.0, %v4693
        %v4695 = vpop.f32.mrf.mxu0
        %4696 = vdwg.mxu0
        %v4697 = vpack.c.b16 %v4458, %v4456
        %v4698 = vpack.c.b16 %v4462, %v4460
        %v4699 = vpack.c.b16 %v4466, %v4464
        %v4700 = vpack.c.b16 %v4470, %v4468
        %v4702 = vsel %vm4615, %v4697, 0
        %v4705 = vsel %vm4615, %v4698, 0
        %v4708 = vsel %vm4615, %v4699, 0
        %v4711 = vsel %vm4615, %v4700, 0
        %v4714 = vsel %vm4628, %v4440, 0
        %4716 = vmatprep.subr.bf16.mxu0 0
        %4717 = vmatpush1.bf16.msra.mxu0 0
        %4718 = vmatprep.subr.bf16.mxu0 0
        %4719 = vmatpush1.bf16.msra.mxu0 0
        %4720 = vmatprep.subr.bf16.mxu0 0
        %4721 = vmatpush1.bf16.msra.mxu0 0
        %4722 = vmatprep.subr.bf16.mxu0 0
        %4723 = vmatpush1.bf16.msra.mxu0 0
        %4724 = vmatprep.subr.bf16.mxu0 0
        %4725 = vmatpush1.bf16.msra.mxu0 0
        %4726 = vmatprep.subr.bf16.mxu0 0
        %4727 = vmatpush1.bf16.msra.mxu0 0
        %4728 = vmatprep.subr.bf16.mxu0 0
        %4729 = vmatpush1.bf16.msra.mxu0 0
        %4730 = vmatprep.subr.bf16.mxu0 0
        %4731 = vmatpush1.bf16.msra.mxu0 %v4714
        %4732 = vmatprep.subr.bf16.mxu0 0
        %4733 = vmatpush2.bf16.msra.mxu0 0
        %4734 = vmatprep.subr.bf16.mxu0 0
        %4735 = vmatpush2.bf16.msra.mxu0 0
        %4736 = vmatprep.subr.bf16.mxu0 0
        %4737 = vmatpush2.bf16.msra.mxu0 0
        %4738 = vmatprep.subr.bf16.mxu0 0
        %4739 = vmatpush2.bf16.msra.mxu0 0
        %4740 = vmatprep.subr.bf16.mxu0 0
        %4741 = vmatpush2.bf16.msra.mxu0 0
        %4742 = vmatprep.subr.bf16.mxu0 0
        %4743 = vmatpush2.bf16.msra.mxu0 0
        %4744 = vmatprep.subr.bf16.mxu0 0
        %4745 = vmatpush2.bf16.msra.mxu0 0
        %4746 = vmatprep.subr.bf16.mxu0 0
        %4747 = vmatpush2.bf16.msra.mxu0 0
        %4748 = vmatprep.mubr.bf16.mxu0 0
        %4749 = vmatmul.mubr.bf16.gmra.mxu0 %v4702
        %v4750 = vpop.f32.mrf.mxu0
        %v4751 = vadd.f32 %v4667, %v4750
        %v4752 = vpop.f32.mrf.mxu0
        %v4753 = vpop.f32.mrf.mxu0
        %v4754 = vadd.f32 %v4670, %v4753
        %v4755 = vpop.f32.mrf.mxu0
        %4756 = vmatprep.mubr.bf16.mxu0 0
        %4757 = vmatmul.mubr.bf16.gmra.mxu0 %v4705
        %v4758 = vpop.f32.mrf.mxu0
        %v4759 = vadd.f32 %v4675, %v4758
        %v4760 = vpop.f32.mrf.mxu0
        %v4761 = vpop.f32.mrf.mxu0
        %v4762 = vadd.f32 %v4678, %v4761
        %v4763 = vpop.f32.mrf.mxu0
        %4764 = vmatprep.mubr.bf16.mxu0 0
        %4765 = vmatmul.mubr.bf16.gmra.mxu0 %v4708
        %v4766 = vpop.f32.mrf.mxu0
        %v4767 = vadd.f32 %v4683, %v4766
        %v4768 = vpop.f32.mrf.mxu0
        %v4769 = vpop.f32.mrf.mxu0
        %v4770 = vadd.f32 %v4686, %v4769
        %v4771 = vpop.f32.mrf.mxu0
        %4772 = vmatprep.mubr.bf16.mxu0 0
        %4773 = vmatmul.mubr.bf16.gmra.mxu0 %v4711
        %v4774 = vpop.f32.mrf.mxu0
        %v4775 = vadd.f32 %v4691, %v4774
        %v4776 = vpop.f32.mrf.mxu0
        %v4777 = vpop.f32.mrf.mxu0
        %v4778 = vadd.f32 %v4694, %v4777
        %v4779 = vpop.f32.mrf.mxu0
        %4780 = vdwg.mxu0
        %vm4781 = vcmask 1042432
        %vm4782 = vcmask 1046532
        %vm4783 = vmor %vm4781, %vm4782
        %v4784 = vrot.slane %v4472, 5
        %v4785 = vrot.slane %v4784, 4
        %v4786 = vrot.slane %v4473, 5
        %v4787 = vsel %vm4783, %v4785, %v4786
        %v4788 = vrot.slane %v4474, 5
        %v4789 = vrot.slane %v4788, 4
        %v4790 = vrot.slane %v4475, 5
        %v4791 = vsel %vm4783, %v4789, %v4790
        %v4792 = vrot.slane %v4476, 5
        %v4793 = vrot.slane %v4792, 4
        %v4794 = vrot.slane %v4477, 5
        %v4795 = vsel %vm4783, %v4793, %v4794
        %v4796 = vrot.slane %v4478, 5
        %v4797 = vrot.slane %v4796, 4
        %v4798 = vrot.slane %v4479, 5
        %v4799 = vsel %vm4783, %v4797, %v4798
        %v4800 = vrot.slane %v4480, 5
        %v4801 = vrot.slane %v4800, 4
        %v4802 = vrot.slane %v4481, 5
        %v4803 = vsel %vm4783, %v4801, %v4802
        %v4804 = vrot.slane %v4482, 5
        %v4805 = vrot.slane %v4804, 4
        %v4806 = vrot.slane %v4483, 5
        %v4807 = vsel %vm4783, %v4805, %v4806
        %v4808 = vrot.slane %v4484, 5
        %v4809 = vrot.slane %v4808, 4
        %v4810 = vrot.slane %v4485, 5
        %v4811 = vsel %vm4783, %v4809, %v4810
        %v4812 = vrot.slane %v4486, 5
        %v4813 = vrot.slane %v4812, 4
        %v4814 = vrot.slane %v4487, 5
        %v4815 = vsel %vm4783, %v4813, %v4814
        %v4816 = vunpack.c.l.b16 %v4787
        %v4817 = vunpack.c.l.b16 %v4791
        %v4818 = vunpack.c.l.b16 %v4795
        %v4819 = vunpack.c.l.b16 %v4799
        %v4820 = vunpack.c.l.b16 %v4803
        %v4821 = vunpack.c.l.b16 %v4807
        %v4822 = vunpack.c.l.b16 %v4811
        %v4823 = vunpack.c.l.b16 %v4815
        %v4824 = vpack.c.b16 %v4817, %v4816
        %v4825 = vpack.c.b16 %v4819, %v4818
        %v4826 = vpack.c.b16 %v4821, %v4820
        %v4827 = vpack.c.b16 %v4823, %v4822
        %v4829 = vsel %vm4615, %v4824, 0
        %v4832 = vsel %vm4615, %v4825, 0
        %v4835 = vsel %vm4615, %v4826, 0
        %v4838 = vsel %vm4615, %v4827, 0
        %v4841 = vsel %vm4628, %v4442, 0
        %4843 = vmatprep.subr.bf16.mxu0 0
        %4844 = vmatpush1.bf16.msra.mxu0 0
        %4845 = vmatprep.subr.bf16.mxu0 0
        %4846 = vmatpush1.bf16.msra.mxu0 0
        %4847 = vmatprep.subr.bf16.mxu0 0
        %4848 = vmatpush1.bf16.msra.mxu0 0
        %4849 = vmatprep.subr.bf16.mxu0 0
        %4850 = vmatpush1.bf16.msra.mxu0 0
        %4851 = vmatprep.subr.bf16.mxu0 0
        %4852 = vmatpush1.bf16.msra.mxu0 0
        %4853 = vmatprep.subr.bf16.mxu0 0
        %4854 = vmatpush1.bf16.msra.mxu0 0
        %4855 = vmatprep.subr.bf16.mxu0 0
        %4856 = vmatpush1.bf16.msra.mxu0 0
        %4857 = vmatprep.subr.bf16.mxu0 0
        %4858 = vmatpush1.bf16.msra.mxu0 %v4841
        %4859 = vmatprep.subr.bf16.mxu0 0
        %4860 = vmatpush2.bf16.msra.mxu0 0
        %4861 = vmatprep.subr.bf16.mxu0 0
        %4862 = vmatpush2.bf16.msra.mxu0 0
        %4863 = vmatprep.subr.bf16.mxu0 0
        %4864 = vmatpush2.bf16.msra.mxu0 0
        %4865 = vmatprep.subr.bf16.mxu0 0
        %4866 = vmatpush2.bf16.msra.mxu0 0
        %4867 = vmatprep.subr.bf16.mxu0 0
        %4868 = vmatpush2.bf16.msra.mxu0 0
        %4869 = vmatprep.subr.bf16.mxu0 0
        %4870 = vmatpush2.bf16.msra.mxu0 0
        %4871 = vmatprep.subr.bf16.mxu0 0
        %4872 = vmatpush2.bf16.msra.mxu0 0
        %4873 = vmatprep.subr.bf16.mxu0 0
        %4874 = vmatpush2.bf16.msra.mxu0 0
        %4875 = vmatprep.mubr.bf16.mxu0 0
        %4876 = vmatmul.mubr.bf16.gmra.mxu0 %v4829
        %v4877 = vpop.f32.mrf.mxu0
        %v4878 = vadd.f32 0.0, %v4877
        %v4879 = vpop.f32.mrf.mxu0
        %v4880 = vpop.f32.mrf.mxu0
        %v4881 = vadd.f32 0.0, %v4880
        %v4882 = vpop.f32.mrf.mxu0
        %4883 = vmatprep.mubr.bf16.mxu0 0
        %4884 = vmatmul.mubr.bf16.gmra.mxu0 %v4832
        %v4885 = vpop.f32.mrf.mxu0
        %v4886 = vadd.f32 0.0, %v4885
        %v4887 = vpop.f32.mrf.mxu0
        %v4888 = vpop.f32.mrf.mxu0
        %v4889 = vadd.f32 0.0, %v4888
        %v4890 = vpop.f32.mrf.mxu0
        %4891 = vmatprep.mubr.bf16.mxu0 0
        %4892 = vmatmul.mubr.bf16.gmra.mxu0 %v4835
        %v4893 = vpop.f32.mrf.mxu0
        %v4894 = vadd.f32 0.0, %v4893
        %v4895 = vpop.f32.mrf.mxu0
        %v4896 = vpop.f32.mrf.mxu0
        %v4897 = vadd.f32 0.0, %v4896
        %v4898 = vpop.f32.mrf.mxu0
        %4899 = vmatprep.mubr.bf16.mxu0 0
        %4900 = vmatmul.mubr.bf16.gmra.mxu0 %v4838
        %v4901 = vpop.f32.mrf.mxu0
        %v4902 = vadd.f32 0.0, %v4901
        %v4903 = vpop.f32.mrf.mxu0
        %v4904 = vpop.f32.mrf.mxu0
        %v4905 = vadd.f32 0.0, %v4904
        %v4906 = vpop.f32.mrf.mxu0
        %4907 = vdwg.mxu0
        %v4908 = vadd.f32 %v4751, %v4878
        %v4909 = vadd.f32 %v4754, %v4881
        %v4910 = vadd.f32 %v4759, %v4886
        %v4911 = vadd.f32 %v4762, %v4889
        %v4912 = vadd.f32 %v4767, %v4894
        %v4913 = vadd.f32 %v4770, %v4897
        %v4914 = vadd.f32 %v4775, %v4902
        %v4915 = vadd.f32 %v4778, %v4905
        %v4917 = vunpack.c.l.b16 %v4439
        %v4918 = vpack.c.b16 %v4460, %v4458
        %v4919 = vpack.c.b16 %v4464, %v4462
        %v4920 = vpack.c.b16 %v4468, %v4466
        %v4921 = vpack.c.b16 %v4917, %v4470
        %v4923 = vsel %vm4615, %v4918, 0
        %v4926 = vsel %vm4615, %v4919, 0
        %v4929 = vsel %vm4615, %v4920, 0
        %v4932 = vsel %vm4615, %v4921, 0
        %v4935 = vsel %vm4628, %v4443, 0
        %4937 = vmatprep.subr.bf16.mxu0 0
        %4938 = vmatpush1.bf16.msra.mxu0 0
        %4939 = vmatprep.subr.bf16.mxu0 0
        %4940 = vmatpush1.bf16.msra.mxu0 0
        %4941 = vmatprep.subr.bf16.mxu0 0
        %4942 = vmatpush1.bf16.msra.mxu0 0
        %4943 = vmatprep.subr.bf16.mxu0 0
        %4944 = vmatpush1.bf16.msra.mxu0 0
        %4945 = vmatprep.subr.bf16.mxu0 0
        %4946 = vmatpush1.bf16.msra.mxu0 0
        %4947 = vmatprep.subr.bf16.mxu0 0
        %4948 = vmatpush1.bf16.msra.mxu0 0
        %4949 = vmatprep.subr.bf16.mxu0 0
        %4950 = vmatpush1.bf16.msra.mxu0 0
        %4951 = vmatprep.subr.bf16.mxu0 0
        %4952 = vmatpush1.bf16.msra.mxu0 %v4935
        %4953 = vmatprep.subr.bf16.mxu0 0
        %4954 = vmatpush2.bf16.msra.mxu0 0
        %4955 = vmatprep.subr.bf16.mxu0 0
        %4956 = vmatpush2.bf16.msra.mxu0 0
        %4957 = vmatprep.subr.bf16.mxu0 0
        %4958 = vmatpush2.bf16.msra.mxu0 0
        %4959 = vmatprep.subr.bf16.mxu0 0
        %4960 = vmatpush2.bf16.msra.mxu0 0
        %4961 = vmatprep.subr.bf16.mxu0 0
        %4962 = vmatpush2.bf16.msra.mxu0 0
        %4963 = vmatprep.subr.bf16.mxu0 0
        %4964 = vmatpush2.bf16.msra.mxu0 0
        %4965 = vmatprep.subr.bf16.mxu0 0
        %4966 = vmatpush2.bf16.msra.mxu0 0
        %4967 = vmatprep.subr.bf16.mxu0 0
        %4968 = vmatpush2.bf16.msra.mxu0 0
        %4969 = vmatprep.mubr.bf16.mxu0 0
        %4970 = vmatmul.mubr.bf16.gmra.mxu0 %v4923
        %v4971 = vpop.f32.mrf.mxu0
        %v4972 = vadd.f32 0.0, %v4971
        %v4973 = vpop.f32.mrf.mxu0
        %v4974 = vpop.f32.mrf.mxu0
        %v4975 = vadd.f32 0.0, %v4974
        %v4976 = vpop.f32.mrf.mxu0
        %4977 = vmatprep.mubr.bf16.mxu0 0
        %4978 = vmatmul.mubr.bf16.gmra.mxu0 %v4926
        %v4979 = vpop.f32.mrf.mxu0
        %v4980 = vadd.f32 0.0, %v4979
        %v4981 = vpop.f32.mrf.mxu0
        %v4982 = vpop.f32.mrf.mxu0
        %v4983 = vadd.f32 0.0, %v4982
        %v4984 = vpop.f32.mrf.mxu0
        %4985 = vmatprep.mubr.bf16.mxu0 0
        %4986 = vmatmul.mubr.bf16.gmra.mxu0 %v4929
        %v4987 = vpop.f32.mrf.mxu0
        %v4988 = vadd.f32 0.0, %v4987
        %v4989 = vpop.f32.mrf.mxu0
        %v4990 = vpop.f32.mrf.mxu0
        %v4991 = vadd.f32 0.0, %v4990
        %v4992 = vpop.f32.mrf.mxu0
        %4993 = vmatprep.mubr.bf16.mxu0 0
        %4994 = vmatmul.mubr.bf16.gmra.mxu0 %v4932
        %v4995 = vpop.f32.mrf.mxu0
        %v4996 = vadd.f32 0.0, %v4995
        %v4997 = vpop.f32.mrf.mxu0
        %v4998 = vpop.f32.mrf.mxu0
        %v4999 = vadd.f32 0.0, %v4998
        %v5000 = vpop.f32.mrf.mxu0
        %5001 = vdwg.mxu0
        %v5002 = vadd.f32 %v4908, %v4972
        %v5003 = vadd.f32 %v4909, %v4975
        %v5004 = vadd.f32 %v4910, %v4980
        %v5005 = vadd.f32 %v4911, %v4983
        %v5006 = vadd.f32 %v4912, %v4988
        %v5007 = vadd.f32 %v4913, %v4991
        %v5008 = vadd.f32 %v4914, %v4996
        %v5009 = vadd.f32 %v4915, %v4999
        %v5010 = vunpack.c.h.b16 %v4439
        %v5011 = vpack.c.b16 %v4917, %v4917
        %v5012 = vpack.c.b16 %v5010, %v5010
        %v5014 = vshrl.u32 %v5011, 16
        %v5016 = vrot.slane %v5014, 4
        %v5017 = vshll.u32 %v5011, 16
        %v5019 = vrot.slane %v5017, 5
        %v5020 = vor.u32 %v5016, %v5019
        %v5021 = vrot.slane %v5020, 4
        %v5023 = vshll.u32 %v5012, 16
        %v5025 = vrot.slane %v5023, 5
        %v5026 = vsel %vm4490, %v5021, %v5025
        %v5027 = vunpack.c.l.b16 %v5026
        %v5028 = vpack.c.b16 %v4605, %v4604
        %v5029 = vpack.c.b16 %v4607, %v4606
        %v5030 = vpack.c.b16 %v4609, %v4608
        %v5031 = vpack.c.b16 %v5027, %v4610
        %v5033 = vsel %vm4615, %v5028, 0
        %v5036 = vsel %vm4615, %v5029, 0
        %v5039 = vsel %vm4615, %v5030, 0
        %v5042 = vsel %vm4615, %v5031, 0
        %v5045 = vsel %vm4628, %v4444, 0
        %5047 = vmatprep.subr.bf16.mxu0 0
        %5048 = vmatpush1.bf16.msra.mxu0 0
        %5049 = vmatprep.subr.bf16.mxu0 0
        %5050 = vmatpush1.bf16.msra.mxu0 0
        %5051 = vmatprep.subr.bf16.mxu0 0
        %5052 = vmatpush1.bf16.msra.mxu0 0
        %5053 = vmatprep.subr.bf16.mxu0 0
        %5054 = vmatpush1.bf16.msra.mxu0 0
        %5055 = vmatprep.subr.bf16.mxu0 0
        %5056 = vmatpush1.bf16.msra.mxu0 0
        %5057 = vmatprep.subr.bf16.mxu0 0
        %5058 = vmatpush1.bf16.msra.mxu0 0
        %5059 = vmatprep.subr.bf16.mxu0 0
        %5060 = vmatpush1.bf16.msra.mxu0 0
        %5061 = vmatprep.subr.bf16.mxu0 0
        %5062 = vmatpush1.bf16.msra.mxu0 %v5045
        %5063 = vmatprep.subr.bf16.mxu0 0
        %5064 = vmatpush2.bf16.msra.mxu0 0
        %5065 = vmatprep.subr.bf16.mxu0 0
        %5066 = vmatpush2.bf16.msra.mxu0 0
        %5067 = vmatprep.subr.bf16.mxu0 0
        %5068 = vmatpush2.bf16.msra.mxu0 0
        %5069 = vmatprep.subr.bf16.mxu0 0
        %5070 = vmatpush2.bf16.msra.mxu0 0
        %5071 = vmatprep.subr.bf16.mxu0 0
        %5072 = vmatpush2.bf16.msra.mxu0 0
        %5073 = vmatprep.subr.bf16.mxu0 0
        %5074 = vmatpush2.bf16.msra.mxu0 0
        %5075 = vmatprep.subr.bf16.mxu0 0
        %5076 = vmatpush2.bf16.msra.mxu0 0
        %5077 = vmatprep.subr.bf16.mxu0 0
        %5078 = vmatpush2.bf16.msra.mxu0 0
        %5079 = vmatprep.mubr.bf16.mxu0 0
        %5080 = vmatmul.mubr.bf16.gmra.mxu0 %v5033
        %v5081 = vpop.f32.mrf.mxu0
        %v5082 = vadd.f32 0.0, %v5081
        %v5083 = vpop.f32.mrf.mxu0
        %v5084 = vpop.f32.mrf.mxu0
        %v5085 = vadd.f32 0.0, %v5084
        %v5086 = vpop.f32.mrf.mxu0
        %5087 = vmatprep.mubr.bf16.mxu0 0
        %5088 = vmatmul.mubr.bf16.gmra.mxu0 %v5036
        %v5089 = vpop.f32.mrf.mxu0
        %v5090 = vadd.f32 0.0, %v5089
        %v5091 = vpop.f32.mrf.mxu0
        %v5092 = vpop.f32.mrf.mxu0
        %v5093 = vadd.f32 0.0, %v5092
        %v5094 = vpop.f32.mrf.mxu0
        %5095 = vmatprep.mubr.bf16.mxu0 0
        %5096 = vmatmul.mubr.bf16.gmra.mxu0 %v5039
        %v5097 = vpop.f32.mrf.mxu0
        %v5098 = vadd.f32 0.0, %v5097
        %v5099 = vpop.f32.mrf.mxu0
        %v5100 = vpop.f32.mrf.mxu0
        %v5101 = vadd.f32 0.0, %v5100
        %v5102 = vpop.f32.mrf.mxu0
        %5103 = vmatprep.mubr.bf16.mxu0 0
        %5104 = vmatmul.mubr.bf16.gmra.mxu0 %v5042
        %v5105 = vpop.f32.mrf.mxu0
        %v5106 = vadd.f32 0.0, %v5105
        %v5107 = vpop.f32.mrf.mxu0
        %v5108 = vpop.f32.mrf.mxu0
        %v5109 = vadd.f32 0.0, %v5108
        %v5110 = vpop.f32.mrf.mxu0
        %5111 = vdwg.mxu0
        %v5112 = vadd.f32 %v5002, %v5082
        %v5113 = vadd.f32 %v5003, %v5085
        %v5114 = vadd.f32 %v5004, %v5090
        %v5115 = vadd.f32 %v5005, %v5093
        %v5116 = vadd.f32 %v5006, %v5098
        %v5117 = vadd.f32 %v5007, %v5101
        %v5118 = vadd.f32 %v5008, %v5106
        %v5119 = vadd.f32 %v5009, %v5109
        %v5120 = vrot.slane %v5011, 5
        %v5121 = vrot.slane %v5120, 4
        %v5122 = vrot.slane %v5012, 5
        %v5123 = vsel %vm4783, %v5121, %v5122
        %v5124 = vunpack.c.l.b16 %v5123
        %v5125 = vpack.c.b16 %v4818, %v4817
        %v5126 = vpack.c.b16 %v4820, %v4819
        %v5127 = vpack.c.b16 %v4822, %v4821
        %v5128 = vpack.c.b16 %v5124, %v4823
        %v5130 = vsel %vm4615, %v5125, 0
        %v5133 = vsel %vm4615, %v5126, 0
        %v5136 = vsel %vm4615, %v5127, 0
        %v5139 = vsel %vm4615, %v5128, 0
        %v5142 = vsel %vm4628, %v4445, 0
        %5144 = vmatprep.subr.bf16.mxu0 0
        %5145 = vmatpush1.bf16.msra.mxu0 0
        %5146 = vmatprep.subr.bf16.mxu0 0
        %5147 = vmatpush1.bf16.msra.mxu0 0
        %5148 = vmatprep.subr.bf16.mxu0 0
        %5149 = vmatpush1.bf16.msra.mxu0 0
        %5150 = vmatprep.subr.bf16.mxu0 0
        %5151 = vmatpush1.bf16.msra.mxu0 0
        %5152 = vmatprep.subr.bf16.mxu0 0
        %5153 = vmatpush1.bf16.msra.mxu0 0
        %5154 = vmatprep.subr.bf16.mxu0 0
        %5155 = vmatpush1.bf16.msra.mxu0 0
        %5156 = vmatprep.subr.bf16.mxu0 0
        %5157 = vmatpush1.bf16.msra.mxu0 0
        %5158 = vmatprep.subr.bf16.mxu0 0
        %5159 = vmatpush1.bf16.msra.mxu0 %v5142
        %5160 = vmatprep.subr.bf16.mxu0 0
        %5161 = vmatpush2.bf16.msra.mxu0 0
        %5162 = vmatprep.subr.bf16.mxu0 0
        %5163 = vmatpush2.bf16.msra.mxu0 0
        %5164 = vmatprep.subr.bf16.mxu0 0
        %5165 = vmatpush2.bf16.msra.mxu0 0
        %5166 = vmatprep.subr.bf16.mxu0 0
        %5167 = vmatpush2.bf16.msra.mxu0 0
        %5168 = vmatprep.subr.bf16.mxu0 0
        %5169 = vmatpush2.bf16.msra.mxu0 0
        %5170 = vmatprep.subr.bf16.mxu0 0
        %5171 = vmatpush2.bf16.msra.mxu0 0
        %5172 = vmatprep.subr.bf16.mxu0 0
        %5173 = vmatpush2.bf16.msra.mxu0 0
        %5174 = vmatprep.subr.bf16.mxu0 0
        %5175 = vmatpush2.bf16.msra.mxu0 0
        %5176 = vmatprep.mubr.bf16.mxu0 0
        %5177 = vmatmul.mubr.bf16.gmra.mxu0 %v5130
        %v5178 = vpop.f32.mrf.mxu0
        %v5179 = vadd.f32 0.0, %v5178
        %v5180 = vpop.f32.mrf.mxu0
        %v5181 = vpop.f32.mrf.mxu0
        %v5182 = vadd.f32 0.0, %v5181
        %v5183 = vpop.f32.mrf.mxu0
        %5184 = vmatprep.mubr.bf16.mxu0 0
        %5185 = vmatmul.mubr.bf16.gmra.mxu0 %v5133
        %v5186 = vpop.f32.mrf.mxu0
        %v5187 = vadd.f32 0.0, %v5186
        %v5188 = vpop.f32.mrf.mxu0
        %v5189 = vpop.f32.mrf.mxu0
        %v5190 = vadd.f32 0.0, %v5189
        %v5191 = vpop.f32.mrf.mxu0
        %5192 = vmatprep.mubr.bf16.mxu0 0
        %5193 = vmatmul.mubr.bf16.gmra.mxu0 %v5136
        %v5194 = vpop.f32.mrf.mxu0
        %v5195 = vadd.f32 0.0, %v5194
        %v5196 = vpop.f32.mrf.mxu0
        %v5197 = vpop.f32.mrf.mxu0
        %v5198 = vadd.f32 0.0, %v5197
        %v5199 = vpop.f32.mrf.mxu0
        %5200 = vmatprep.mubr.bf16.mxu0 0
        %5201 = vmatmul.mubr.bf16.gmra.mxu0 %v5139
        %v5202 = vpop.f32.mrf.mxu0
        %v5203 = vadd.f32 0.0, %v5202
        %v5204 = vpop.f32.mrf.mxu0
        %v5205 = vpop.f32.mrf.mxu0
        %v5206 = vadd.f32 0.0, %v5205
        %v5207 = vpop.f32.mrf.mxu0
        %5208 = vdwg.mxu0
        %v5209 = vadd.f32 %v5112, %v5179
        %v5210 = vadd.f32 %v5113, %v5182
        %v5211 = vadd.f32 %v5114, %v5187
        %v5212 = vadd.f32 %v5115, %v5190
        %v5213 = vadd.f32 %v5116, %v5195
        %v5214 = vadd.f32 %v5117, %v5198
        %v5215 = vadd.f32 %v5118, %v5203
        %v5216 = vadd.f32 %v5119, %v5206
        %v5217 = vpack.c.b16 %v4456, %v4917
        %v5219 = vsel %vm4615, %v5217, 0
        %v5222 = vsel %vm4628, %v4446, 0
        %5224 = vmatprep.subr.bf16.mxu0 0
        %5225 = vmatpush1.bf16.msra.mxu0 0
        %5226 = vmatprep.subr.bf16.mxu0 0
        %5227 = vmatpush1.bf16.msra.mxu0 0
        %5228 = vmatprep.subr.bf16.mxu0 0
        %5229 = vmatpush1.bf16.msra.mxu0 0
        %5230 = vmatprep.subr.bf16.mxu0 0
        %5231 = vmatpush1.bf16.msra.mxu0 0
        %5232 = vmatprep.subr.bf16.mxu0 0
        %5233 = vmatpush1.bf16.msra.mxu0 0
        %5234 = vmatprep.subr.bf16.mxu0 0
        %5235 = vmatpush1.bf16.msra.mxu0 0
        %5236 = vmatprep.subr.bf16.mxu0 0
        %5237 = vmatpush1.bf16.msra.mxu0 0
        %5238 = vmatprep.subr.bf16.mxu0 0
        %5239 = vmatpush1.bf16.msra.mxu0 %v5222
        %5240 = vmatprep.subr.bf16.mxu0 0
        %5241 = vmatpush2.bf16.msra.mxu0 0
        %5242 = vmatprep.subr.bf16.mxu0 0
        %5243 = vmatpush2.bf16.msra.mxu0 0
        %5244 = vmatprep.subr.bf16.mxu0 0
        %5245 = vmatpush2.bf16.msra.mxu0 0
        %5246 = vmatprep.subr.bf16.mxu0 0
        %5247 = vmatpush2.bf16.msra.mxu0 0
        %5248 = vmatprep.subr.bf16.mxu0 0
        %5249 = vmatpush2.bf16.msra.mxu0 0
        %5250 = vmatprep.subr.bf16.mxu0 0
        %5251 = vmatpush2.bf16.msra.mxu0 0
        %5252 = vmatprep.subr.bf16.mxu0 0
        %5253 = vmatpush2.bf16.msra.mxu0 0
        %5254 = vmatprep.subr.bf16.mxu0 0
        %5255 = vmatpush2.bf16.msra.mxu0 0
        %5256 = vmatprep.mubr.bf16.mxu0 0
        %5257 = vmatmul.mubr.bf16.gmra.mxu0 %v4705
        %v5258 = vpop.f32.mrf.mxu0
        %v5259 = vadd.f32 0.0, %v5258
        %v5260 = vpop.f32.mrf.mxu0
        %v5261 = vpop.f32.mrf.mxu0
        %v5262 = vadd.f32 0.0, %v5261
        %v5263 = vpop.f32.mrf.mxu0
        %5264 = vmatprep.mubr.bf16.mxu0 0
        %5265 = vmatmul.mubr.bf16.gmra.mxu0 %v4708
        %v5266 = vpop.f32.mrf.mxu0
        %v5267 = vadd.f32 0.0, %v5266
        %v5268 = vpop.f32.mrf.mxu0
        %v5269 = vpop.f32.mrf.mxu0
        %v5270 = vadd.f32 0.0, %v5269
        %v5271 = vpop.f32.mrf.mxu0
        %5272 = vmatprep.mubr.bf16.mxu0 0
        %5273 = vmatmul.mubr.bf16.gmra.mxu0 %v4711
        %v5274 = vpop.f32.mrf.mxu0
        %v5275 = vadd.f32 0.0, %v5274
        %v5276 = vpop.f32.mrf.mxu0
        %v5277 = vpop.f32.mrf.mxu0
        %v5278 = vadd.f32 0.0, %v5277
        %v5279 = vpop.f32.mrf.mxu0
        %5280 = vmatprep.mubr.bf16.mxu0 0
        %5281 = vmatmul.mubr.bf16.gmra.mxu0 %v5219
        %v5282 = vpop.f32.mrf.mxu0
        %v5283 = vadd.f32 0.0, %v5282
        %v5284 = vpop.f32.mrf.mxu0
        %v5285 = vpop.f32.mrf.mxu0
        %v5286 = vadd.f32 0.0, %v5285
        %v5287 = vpop.f32.mrf.mxu0
        %5288 = vdwg.mxu0
        %v5289 = vadd.f32 %v5209, %v5259
        %v5290 = vadd.f32 %v5210, %v5262
        %v5291 = vadd.f32 %v5211, %v5267
        %v5292 = vadd.f32 %v5212, %v5270
        %v5293 = vadd.f32 %v5213, %v5275
        %v5294 = vadd.f32 %v5214, %v5278
        %v5295 = vadd.f32 %v5215, %v5283
        %v5296 = vadd.f32 %v5216, %v5286
        %v5297 = vpack.c.b16 %v4603, %v5027
        %v5299 = vsel %vm4615, %v5297, 0
        %v5302 = vsel %vm4628, %v4447, 0
        %5304 = vmatprep.subr.bf16.mxu0 0
        %5305 = vmatpush1.bf16.msra.mxu0 0
        %5306 = vmatprep.subr.bf16.mxu0 0
        %5307 = vmatpush1.bf16.msra.mxu0 0
        %5308 = vmatprep.subr.bf16.mxu0 0
        %5309 = vmatpush1.bf16.msra.mxu0 0
        %5310 = vmatprep.subr.bf16.mxu0 0
        %5311 = vmatpush1.bf16.msra.mxu0 0
        %5312 = vmatprep.subr.bf16.mxu0 0
        %5313 = vmatpush1.bf16.msra.mxu0 0
        %5314 = vmatprep.subr.bf16.mxu0 0
        %5315 = vmatpush1.bf16.msra.mxu0 0
        %5316 = vmatprep.subr.bf16.mxu0 0
        %5317 = vmatpush1.bf16.msra.mxu0 0
        %5318 = vmatprep.subr.bf16.mxu0 0
        %5319 = vmatpush1.bf16.msra.mxu0 %v5302
        %5320 = vmatprep.subr.bf16.mxu0 0
        %5321 = vmatpush2.bf16.msra.mxu0 0
        %5322 = vmatprep.subr.bf16.mxu0 0
        %5323 = vmatpush2.bf16.msra.mxu0 0
        %5324 = vmatprep.subr.bf16.mxu0 0
        %5325 = vmatpush2.bf16.msra.mxu0 0
        %5326 = vmatprep.subr.bf16.mxu0 0
        %5327 = vmatpush2.bf16.msra.mxu0 0
        %5328 = vmatprep.subr.bf16.mxu0 0
        %5329 = vmatpush2.bf16.msra.mxu0 0
        %5330 = vmatprep.subr.bf16.mxu0 0
        %5331 = vmatpush2.bf16.msra.mxu0 0
        %5332 = vmatprep.subr.bf16.mxu0 0
        %5333 = vmatpush2.bf16.msra.mxu0 0
        %5334 = vmatprep.subr.bf16.mxu0 0
        %5335 = vmatpush2.bf16.msra.mxu0 0
        %5336 = vmatprep.mubr.bf16.mxu0 0
        %5337 = vmatmul.mubr.bf16.gmra.mxu0 %v4620
        %v5338 = vpop.f32.mrf.mxu0
        %v5339 = vadd.f32 0.0, %v5338
        %v5340 = vpop.f32.mrf.mxu0
        %v5341 = vpop.f32.mrf.mxu0
        %v5342 = vadd.f32 0.0, %v5341
        %v5343 = vpop.f32.mrf.mxu0
        %5344 = vmatprep.mubr.bf16.mxu0 0
        %5345 = vmatmul.mubr.bf16.gmra.mxu0 %v4623
        %v5346 = vpop.f32.mrf.mxu0
        %v5347 = vadd.f32 0.0, %v5346
        %v5348 = vpop.f32.mrf.mxu0
        %v5349 = vpop.f32.mrf.mxu0
        %v5350 = vadd.f32 0.0, %v5349
        %v5351 = vpop.f32.mrf.mxu0
        %5352 = vmatprep.mubr.bf16.mxu0 0
        %5353 = vmatmul.mubr.bf16.gmra.mxu0 %v4626
        %v5354 = vpop.f32.mrf.mxu0
        %v5355 = vadd.f32 0.0, %v5354
        %v5356 = vpop.f32.mrf.mxu0
        %v5357 = vpop.f32.mrf.mxu0
        %v5358 = vadd.f32 0.0, %v5357
        %v5359 = vpop.f32.mrf.mxu0
        %5360 = vmatprep.mubr.bf16.mxu0 0
        %5361 = vmatmul.mubr.bf16.gmra.mxu0 %v5299
        %v5362 = vpop.f32.mrf.mxu0
        %v5363 = vadd.f32 0.0, %v5362
        %v5364 = vpop.f32.mrf.mxu0
        %v5365 = vpop.f32.mrf.mxu0
        %v5366 = vadd.f32 0.0, %v5365
        %v5367 = vpop.f32.mrf.mxu0
        %5368 = vdwg.mxu0
        %v5369 = vadd.f32 %v5289, %v5339
        %v5370 = vadd.f32 %v5290, %v5342
        %v5371 = vadd.f32 %v5291, %v5347
        %v5372 = vadd.f32 %v5292, %v5350
        %v5373 = vadd.f32 %v5293, %v5355
        %v5374 = vadd.f32 %v5294, %v5358
        %v5375 = vadd.f32 %v5295, %v5363
        %v5376 = vadd.f32 %v5296, %v5366
        %v5377 = vpack.c.b16 %v4816, %v5124
        %v5379 = vsel %vm4615, %v5377, 0
        %v5382 = vsel %vm4628, %v4448, 0
        %5384 = vmatprep.subr.bf16.mxu0 0
        %5385 = vmatpush1.bf16.msra.mxu0 0
        %5386 = vmatprep.subr.bf16.mxu0 0
        %5387 = vmatpush1.bf16.msra.mxu0 0
        %5388 = vmatprep.subr.bf16.mxu0 0
        %5389 = vmatpush1.bf16.msra.mxu0 0
        %5390 = vmatprep.subr.bf16.mxu0 0
        %5391 = vmatpush1.bf16.msra.mxu0 0
        %5392 = vmatprep.subr.bf16.mxu0 0
        %5393 = vmatpush1.bf16.msra.mxu0 0
        %5394 = vmatprep.subr.bf16.mxu0 0
        %5395 = vmatpush1.bf16.msra.mxu0 0
        %5396 = vmatprep.subr.bf16.mxu0 0
        %5397 = vmatpush1.bf16.msra.mxu0 0
        %5398 = vmatprep.subr.bf16.mxu0 0
        %5399 = vmatpush1.bf16.msra.mxu0 %v5382
        %5400 = vmatprep.subr.bf16.mxu0 0
        %5401 = vmatpush2.bf16.msra.mxu0 0
        %5402 = vmatprep.subr.bf16.mxu0 0
        %5403 = vmatpush2.bf16.msra.mxu0 0
        %5404 = vmatprep.subr.bf16.mxu0 0
        %5405 = vmatpush2.bf16.msra.mxu0 0
        %5406 = vmatprep.subr.bf16.mxu0 0
        %5407 = vmatpush2.bf16.msra.mxu0 0
        %5408 = vmatprep.subr.bf16.mxu0 0
        %5409 = vmatpush2.bf16.msra.mxu0 0
        %5410 = vmatprep.subr.bf16.mxu0 0
        %5411 = vmatpush2.bf16.msra.mxu0 0
        %5412 = vmatprep.subr.bf16.mxu0 0
        %5413 = vmatpush2.bf16.msra.mxu0 0
        %5414 = vmatprep.subr.bf16.mxu0 0
        %5415 = vmatpush2.bf16.msra.mxu0 0
        %5416 = vmatprep.mubr.bf16.mxu0 0
        %5417 = vmatmul.mubr.bf16.gmra.mxu0 %v4832
        %v5418 = vpop.f32.mrf.mxu0
        %v5419 = vadd.f32 0.0, %v5418
        %v5420 = vpop.f32.mrf.mxu0
        %v5421 = vpop.f32.mrf.mxu0
        %v5422 = vadd.f32 0.0, %v5421
        %v5423 = vpop.f32.mrf.mxu0
        %5424 = vmatprep.mubr.bf16.mxu0 0
        %5425 = vmatmul.mubr.bf16.gmra.mxu0 %v4835
        %v5426 = vpop.f32.mrf.mxu0
        %v5427 = vadd.f32 0.0, %v5426
        %v5428 = vpop.f32.mrf.mxu0
        %v5429 = vpop.f32.mrf.mxu0
        %v5430 = vadd.f32 0.0, %v5429
        %v5431 = vpop.f32.mrf.mxu0
        %5432 = vmatprep.mubr.bf16.mxu0 0
        %5433 = vmatmul.mubr.bf16.gmra.mxu0 %v4838
        %v5434 = vpop.f32.mrf.mxu0
        %v5435 = vadd.f32 0.0, %v5434
        %v5436 = vpop.f32.mrf.mxu0
        %v5437 = vpop.f32.mrf.mxu0
        %v5438 = vadd.f32 0.0, %v5437
        %v5439 = vpop.f32.mrf.mxu0
        %5440 = vmatprep.mubr.bf16.mxu0 0
        %5441 = vmatmul.mubr.bf16.gmra.mxu0 %v5379
        %v5442 = vpop.f32.mrf.mxu0
        %v5443 = vadd.f32 0.0, %v5442
        %v5444 = vpop.f32.mrf.mxu0
        %v5445 = vpop.f32.mrf.mxu0
        %v5446 = vadd.f32 0.0, %v5445
        %v5447 = vpop.f32.mrf.mxu0
        %5448 = vdwg.mxu0
        %v5449 = vadd.f32 %v5369, %v5419
        %v5450 = vadd.f32 %v5370, %v5422
        %v5451 = vadd.f32 %v5371, %v5427
        %v5452 = vadd.f32 %v5372, %v5430
        %v5453 = vadd.f32 %v5373, %v5435
        %v5454 = vadd.f32 %v5374, %v5438
        %v5455 = vadd.f32 %v5375, %v5443
        %v5456 = vadd.f32 %v5376, %v5446
        %v5457 = vld [vmem:[%s5] sm:$0x1]
        %v5459 = vlaneseq
        %v5460 = vshrl.u32 %v5459, 7
        %v5461 = vsub.s32 0, %v5460
        %v5462 = vrot.slane %v5457, %v5461
        %v5464 = vmul.f32 %v5449, %v5462
        %v5465 = vmul.f32 %v5450, %v5462
        %v5466 = vmul.f32 %v5451, %v5462
        %v5467 = vmul.f32 %v5452, %v5462
        %v5468 = vmul.f32 %v5453, %v5462
        %v5469 = vmul.f32 %v5454, %v5462
        %v5470 = vmul.f32 %v5455, %v5462
        %v5471 = vmul.f32 %v5456, %v5462
        %v5472 = vld [vmem:[%s6] sm:$0x1]
        %v5474 = vlaneseq
        %v5475 = vshrl.u32 %v5474, 7
        %v5476 = vsub.s32 0, %v5475
        %v5477 = vrot.slane %v5472, %v5476
        %v5479 = vadd.f32 %v5464, %v5477
        %v5480 = vadd.f32 %v5465, %v5477
        %v5481 = vadd.f32 %v5466, %v5477
        %v5482 = vadd.f32 %v5467, %v5477
        %v5483 = vadd.f32 %v5468, %v5477
        %v5484 = vadd.f32 %v5469, %v5477
        %v5485 = vadd.f32 %v5470, %v5477
        %v5486 = vadd.f32 %v5471, %v5477
        %v5487 = vmax.f32 %v5479, 0.0
        %v5488 = vmax.f32 %v5480, 0.0
        %v5489 = vmax.f32 %v5481, 0.0
        %v5490 = vmax.f32 %v5482, 0.0
        %v5491 = vmax.f32 %v5483, 0.0
        %v5492 = vmax.f32 %v5484, 0.0
        %v5493 = vmax.f32 %v5485, 0.0
        %v5494 = vmax.f32 %v5486, 0.0
        %v5503 = vcombine.high %v5487, %v5487
        %v5505 = vunpack.c.l.s4 1983009808
        %v5506 = vunpack.c.0.s8 %v5505
        %v5507 = vlaneseq
        %v5508 = vshrl.u32 %v5507, 7
        %v5509 = vsub.s32 %v5506, %v5508
        %v5510 = vrot.slane %v5487, %v5509
        %v5512 = vunpack.c.l.s4 1983009808
        %v5513 = vunpack.c.0.s8 %v5512
        %v5514 = vlaneseq
        %v5515 = vshrl.u32 %v5514, 7
        %v5516 = vsub.s32 %v5513, %v5515
        %v5517 = vrot.slane %v5503, %v5516
        %v5518 = vcombine.high %v5510, %v5510
        %v5519 = vcombine.high %v5517, %v5517
        %v5520 = vcombine.high %v5488, %v5488
        %v5522 = vunpack.c.l.s4 1983009808
        %v5523 = vunpack.c.0.s8 %v5522
        %v5524 = vlaneseq
        %v5525 = vshrl.u32 %v5524, 7
        %v5526 = vsub.s32 %v5523, %v5525
        %v5527 = vrot.slane %v5488, %v5526
        %v5529 = vunpack.c.l.s4 1983009808
        %v5530 = vunpack.c.0.s8 %v5529
        %v5531 = vlaneseq
        %v5532 = vshrl.u32 %v5531, 7
        %v5533 = vsub.s32 %v5530, %v5532
        %v5534 = vrot.slane %v5520, %v5533
        %v5535 = vcombine.high %v5527, %v5527
        %v5536 = vcombine.high %v5534, %v5534
        %v5537 = vcombine.high %v5489, %v5489
        %v5539 = vunpack.c.l.s4 1983009808
        %v5540 = vunpack.c.0.s8 %v5539
        %v5541 = vlaneseq
        %v5542 = vshrl.u32 %v5541, 7
        %v5543 = vsub.s32 %v5540, %v5542
        %v5544 = vrot.slane %v5489, %v5543
        %v5546 = vunpack.c.l.s4 1983009808
        %v5547 = vunpack.c.0.s8 %v5546
        %v5548 = vlaneseq
        %v5549 = vshrl.u32 %v5548, 7
        %v5550 = vsub.s32 %v5547, %v5549
        %v5551 = vrot.slane %v5537, %v5550
        %v5552 = vcombine.high %v5544, %v5544
        %v5553 = vcombine.high %v5551, %v5551
        %v5554 = vcombine.high %v5490, %v5490
        %v5556 = vunpack.c.l.s4 1983009808
        %v5557 = vunpack.c.0.s8 %v5556
        %v5558 = vlaneseq
        %v5559 = vshrl.u32 %v5558, 7
        %v5560 = vsub.s32 %v5557, %v5559
        %v5561 = vrot.slane %v5490, %v5560
        %v5563 = vunpack.c.l.s4 1983009808
        %v5564 = vunpack.c.0.s8 %v5563
        %v5565 = vlaneseq
        %v5566 = vshrl.u32 %v5565, 7
        %v5567 = vsub.s32 %v5564, %v5566
        %v5568 = vrot.slane %v5554, %v5567
        %v5569 = vcombine.high %v5561, %v5561
        %v5570 = vcombine.high %v5568, %v5568
        %v5571 = vcombine.high %v5491, %v5491
        %v5573 = vunpack.c.l.s4 1983009808
        %v5574 = vunpack.c.0.s8 %v5573
        %v5575 = vlaneseq
        %v5576 = vshrl.u32 %v5575, 7
        %v5577 = vsub.s32 %v5574, %v5576
        %v5578 = vrot.slane %v5491, %v5577
        %v5580 = vunpack.c.l.s4 1983009808
        %v5581 = vunpack.c.0.s8 %v5580
        %v5582 = vlaneseq
        %v5583 = vshrl.u32 %v5582, 7
        %v5584 = vsub.s32 %v5581, %v5583
        %v5585 = vrot.slane %v5571, %v5584
        %v5586 = vcombine.high %v5578, %v5578
        %v5587 = vcombine.high %v5585, %v5585
        %v5588 = vcombine.high %v5492, %v5492
        %v5590 = vunpack.c.l.s4 1983009808
        %v5591 = vunpack.c.0.s8 %v5590
        %v5592 = vlaneseq
        %v5593 = vshrl.u32 %v5592, 7
        %v5594 = vsub.s32 %v5591, %v5593
        %v5595 = vrot.slane %v5492, %v5594
        %v5597 = vunpack.c.l.s4 1983009808
        %v5598 = vunpack.c.0.s8 %v5597
        %v5599 = vlaneseq
        %v5600 = vshrl.u32 %v5599, 7
        %v5601 = vsub.s32 %v5598, %v5600
        %v5602 = vrot.slane %v5588, %v5601
        %v5603 = vcombine.high %v5595, %v5595
        %v5604 = vcombine.high %v5602, %v5602
        %v5605 = vcombine.high %v5493, %v5493
        %v5607 = vunpack.c.l.s4 1983009808
        %v5608 = vunpack.c.0.s8 %v5607
        %v5609 = vlaneseq
        %v5610 = vshrl.u32 %v5609, 7
        %v5611 = vsub.s32 %v5608, %v5610
        %v5612 = vrot.slane %v5493, %v5611
        %v5614 = vunpack.c.l.s4 1983009808
        %v5615 = vunpack.c.0.s8 %v5614
        %v5616 = vlaneseq
        %v5617 = vshrl.u32 %v5616, 7
        %v5618 = vsub.s32 %v5615, %v5617
        %v5619 = vrot.slane %v5605, %v5618
        %v5620 = vcombine.high %v5612, %v5612
        %v5621 = vcombine.high %v5619, %v5619
        %v5622 = vcombine.high %v5494, %v5494
        %v5624 = vunpack.c.l.s4 1983009808
        %v5625 = vunpack.c.0.s8 %v5624
        %v5626 = vlaneseq
        %v5627 = vshrl.u32 %v5626, 7
        %v5628 = vsub.s32 %v5625, %v5627
        %v5629 = vrot.slane %v5494, %v5628
        %v5631 = vunpack.c.l.s4 1983009808
        %v5632 = vunpack.c.0.s8 %v5631
        %v5633 = vlaneseq
        %v5634 = vshrl.u32 %v5633, 7
        %v5635 = vsub.s32 %v5632, %v5634
        %v5636 = vrot.slane %v5622, %v5635
        %v5637 = vcombine.high %v5629, %v5629
        %v5638 = vcombine.high %v5636, %v5636
        %v5671 = vrot.slane %v5510, 7
        %v5672 = vrot.slane %v5671, 2
        %v5673 = vrot.slane %v5518, 7
        %v5674 = vrot.slane %v5673, 2
        %v5675 = vrot.slane %v5517, 7
        %v5676 = vrot.slane %v5675, 2
        %v5677 = vrot.slane %v5519, 7
        %v5678 = vrot.slane %v5677, 2
        %v5679 = vrot.slane %v5527, 7
        %v5680 = vrot.slane %v5679, 2
        %v5681 = vrot.slane %v5535, 7
        %v5682 = vrot.slane %v5681, 2
        %v5683 = vrot.slane %v5534, 7
        %v5684 = vrot.slane %v5683, 2
        %v5685 = vrot.slane %v5536, 7
        %v5686 = vrot.slane %v5685, 2
        %v5687 = vrot.slane %v5544, 7
        %v5688 = vrot.slane %v5687, 2
        %v5689 = vrot.slane %v5552, 7
        %v5690 = vrot.slane %v5689, 2
        %v5691 = vrot.slane %v5551, 7
        %v5692 = vrot.slane %v5691, 2
        %v5693 = vrot.slane %v5553, 7
        %v5694 = vrot.slane %v5693, 2
        %v5695 = vrot.slane %v5561, 7
        %v5696 = vrot.slane %v5695, 2
        %v5697 = vrot.slane %v5569, 7
        %v5698 = vrot.slane %v5697, 2
        %v5699 = vrot.slane %v5568, 7
        %v5700 = vrot.slane %v5699, 2
        %v5701 = vrot.slane %v5570, 7
        %v5702 = vrot.slane %v5701, 2
        %v5703 = vrot.slane %v5578, 7
        %v5704 = vrot.slane %v5703, 2
        %v5705 = vrot.slane %v5586, 7
        %v5706 = vrot.slane %v5705, 2
        %v5707 = vrot.slane %v5585, 7
        %v5708 = vrot.slane %v5707, 2
        %v5709 = vrot.slane %v5587, 7
        %v5710 = vrot.slane %v5709, 2
        %v5711 = vrot.slane %v5595, 7
        %v5712 = vrot.slane %v5711, 2
        %v5713 = vrot.slane %v5603, 7
        %v5714 = vrot.slane %v5713, 2
        %v5715 = vrot.slane %v5602, 7
        %v5716 = vrot.slane %v5715, 2
        %v5717 = vrot.slane %v5604, 7
        %v5718 = vrot.slane %v5717, 2
        %v5719 = vrot.slane %v5612, 7
        %v5720 = vrot.slane %v5719, 2
        %v5721 = vrot.slane %v5620, 7
        %v5722 = vrot.slane %v5721, 2
        %v5723 = vrot.slane %v5619, 7
        %v5724 = vrot.slane %v5723, 2
        %v5725 = vrot.slane %v5621, 7
        %v5726 = vrot.slane %v5725, 2
        %v5727 = vrot.slane %v5629, 7
        %v5728 = vrot.slane %v5727, 2
        %v5729 = vrot.slane %v5637, 7
        %v5730 = vrot.slane %v5729, 2
        %v5731 = vrot.slane %v5636, 7
        %v5732 = vrot.slane %v5731, 2
        %v5733 = vrot.slane %v5638, 7
        %v5734 = vrot.slane %v5733, 2
        %v5767 = vmax.f32 %v5510, %v5672
        %v5768 = vmax.f32 %v5518, %v5674
        %v5769 = vmax.f32 %v5517, %v5676
        %v5770 = vmax.f32 %v5519, %v5678
        %v5771 = vmax.f32 %v5527, %v5680
        %v5772 = vmax.f32 %v5535, %v5682
        %v5773 = vmax.f32 %v5534, %v5684
        %v5774 = vmax.f32 %v5536, %v5686
        %v5775 = vmax.f32 %v5544, %v5688
        %v5776 = vmax.f32 %v5552, %v5690
        %v5777 = vmax.f32 %v5551, %v5692
        %v5778 = vmax.f32 %v5553, %v5694
        %v5779 = vmax.f32 %v5561, %v5696
        %v5780 = vmax.f32 %v5569, %v5698
        %v5781 = vmax.f32 %v5568, %v5700
        %v5782 = vmax.f32 %v5570, %v5702
        %v5783 = vmax.f32 %v5578, %v5704
        %v5784 = vmax.f32 %v5586, %v5706
        %v5785 = vmax.f32 %v5585, %v5708
        %v5786 = vmax.f32 %v5587, %v5710
        %v5787 = vmax.f32 %v5595, %v5712
        %v5788 = vmax.f32 %v5603, %v5714
        %v5789 = vmax.f32 %v5602, %v5716
        %v5790 = vmax.f32 %v5604, %v5718
        %v5791 = vmax.f32 %v5612, %v5720
        %v5792 = vmax.f32 %v5620, %v5722
        %v5793 = vmax.f32 %v5619, %v5724
        %v5794 = vmax.f32 %v5621, %v5726
        %v5795 = vmax.f32 %v5629, %v5728
        %v5796 = vmax.f32 %v5637, %v5730
        %v5797 = vmax.f32 %v5636, %v5732
        %v5798 = vmax.f32 %v5638, %v5734
        %v5799 = vmax.f32 %v5767, %v5771
        %v5800 = vmax.f32 %v5768, %v5772
        %v5801 = vmax.f32 %v5769, %v5773
        %v5802 = vmax.f32 %v5770, %v5774
        %v5803 = vmax.f32 %v5775, %v5779
        %v5804 = vmax.f32 %v5776, %v5780
        %v5805 = vmax.f32 %v5777, %v5781
        %v5806 = vmax.f32 %v5778, %v5782
        %v5807 = vmax.f32 %v5783, %v5787
        %v5808 = vmax.f32 %v5784, %v5788
        %v5809 = vmax.f32 %v5785, %v5789
        %v5810 = vmax.f32 %v5786, %v5790
        %v5811 = vmax.f32 %v5791, %v5795
        %v5812 = vmax.f32 %v5792, %v5796
        %v5813 = vmax.f32 %v5793, %v5797
        %v5814 = vmax.f32 %v5794, %v5798
        %v5831 = vsel %vm4303, %v5799, %v5799
        %v5832 = vsel %vm4309, %v5799, %v5831
        %v5833 = vrot.slane %v5800, 7
        %vm5834 = vcmask 1041409
        %v5835 = vsel %vm5834, %v5833, %v5832
        %v5836 = vsel %vm4300, %v5833, %v5835
        %v5837 = vsel %vm4306, %v5833, %v5836
        %v5838 = vsel %vm4312, %v5833, %v5837
        %v5839 = vsel %vm4303, %v5801, %v5801
        %v5840 = vsel %vm4309, %v5801, %v5839
        %v5841 = vrot.slane %v5802, 7
        %v5842 = vsel %vm5834, %v5841, %v5840
        %v5843 = vsel %vm4300, %v5841, %v5842
        %v5844 = vsel %vm4306, %v5841, %v5843
        %v5845 = vsel %vm4312, %v5841, %v5844
        %v5846 = vsel %vm4303, %v5803, %v5803
        %v5847 = vsel %vm4309, %v5803, %v5846
        %v5848 = vrot.slane %v5804, 7
        %v5849 = vsel %vm5834, %v5848, %v5847
        %v5850 = vsel %vm4300, %v5848, %v5849
        %v5851 = vsel %vm4306, %v5848, %v5850
        %v5852 = vsel %vm4312, %v5848, %v5851
        %v5853 = vsel %vm4303, %v5805, %v5805
        %v5854 = vsel %vm4309, %v5805, %v5853
        %v5855 = vrot.slane %v5806, 7
        %v5856 = vsel %vm5834, %v5855, %v5854
        %v5857 = vsel %vm4300, %v5855, %v5856
        %v5858 = vsel %vm4306, %v5855, %v5857
        %v5859 = vsel %vm4312, %v5855, %v5858
        %v5860 = vsel %vm4303, %v5807, %v5807
        %v5861 = vsel %vm4309, %v5807, %v5860
        %v5862 = vrot.slane %v5808, 7
        %v5863 = vsel %vm5834, %v5862, %v5861
        %v5864 = vsel %vm4300, %v5862, %v5863
        %v5865 = vsel %vm4306, %v5862, %v5864
        %v5866 = vsel %vm4312, %v5862, %v5865
        %v5867 = vsel %vm4303, %v5809, %v5809
        %v5868 = vsel %vm4309, %v5809, %v5867
        %v5869 = vrot.slane %v5810, 7
        %v5870 = vsel %vm5834, %v5869, %v5868
        %v5871 = vsel %vm4300, %v5869, %v5870
        %v5872 = vsel %vm4306, %v5869, %v5871
        %v5873 = vsel %vm4312, %v5869, %v5872
        %v5874 = vsel %vm4303, %v5811, %v5811
        %v5875 = vsel %vm4309, %v5811, %v5874
        %v5876 = vrot.slane %v5812, 7
        %v5877 = vsel %vm5834, %v5876, %v5875
        %v5878 = vsel %vm4300, %v5876, %v5877
        %v5879 = vsel %vm4306, %v5876, %v5878
        %v5880 = vsel %vm4312, %v5876, %v5879
        %v5881 = vsel %vm4303, %v5813, %v5813
        %v5882 = vsel %vm4309, %v5813, %v5881
        %v5883 = vrot.slane %v5814, 7
        %v5884 = vsel %vm5834, %v5883, %v5882
        %v5885 = vsel %vm4300, %v5883, %v5884
        %v5886 = vsel %vm4306, %v5883, %v5885
        %v5887 = vsel %vm4312, %v5883, %v5886
        %v5896 = vcombine.low %v5838, %v5852
        %v5898 = vunpack.c.l.s4 1934713408
        %v5899 = vunpack.c.0.s8 %v5898
        %v5900 = vlaneseq
        %v5901 = vshrl.u32 %v5900, 7
        %v5902 = vsub.s32 %v5899, %v5901
        %v5903 = vrot.slane %v5896, %v5902
        %v5904 = vcombine.high %v5903, 0.0
        %v5905 = vcombine.low %v5866, %v5880
        %v5907 = vunpack.c.l.s4 1934713408
        %v5908 = vunpack.c.0.s8 %v5907
        %v5909 = vlaneseq
        %v5910 = vshrl.u32 %v5909, 7
        %v5911 = vsub.s32 %v5908, %v5910
        %v5912 = vrot.slane %v5905, %v5911
        %v5913 = vcombine.high %v5912, 0.0
        %v5914 = vcombine.low %v5845, %v5859
        %v5916 = vunpack.c.l.s4 1934713408
        %v5917 = vunpack.c.0.s8 %v5916
        %v5918 = vlaneseq
        %v5919 = vshrl.u32 %v5918, 7
        %v5920 = vsub.s32 %v5917, %v5919
        %v5921 = vrot.slane %v5914, %v5920
        %v5922 = vcombine.high %v5921, 0.0
        %v5923 = vcombine.low %v5873, %v5887
        %v5925 = vunpack.c.l.s4 1934713408
        %v5926 = vunpack.c.0.s8 %v5925
        %v5927 = vlaneseq
        %v5928 = vshrl.u32 %v5927, 7
        %v5929 = vsub.s32 %v5926, %v5928
        %v5930 = vrot.slane %v5923, %v5929
        %v5931 = vcombine.high %v5930, 0.0
        %v5934 = vcombine.low %v5903, %v5912
        %v5936 = vunpack.c.l.s4 1983009808
        %v5937 = vunpack.c.0.s8 %v5936
        %v5938 = vlaneseq
        %v5939 = vshrl.u32 %v5938, 7
        %v5940 = vsub.s32 %v5937, %v5939
        %v5941 = vrot.slane %v5934, %v5940
        %v5945 = vcombine.low %v5904, %v5913
        %v5947 = vunpack.c.l.s4 1983009808
        %v5948 = vunpack.c.0.s8 %v5947
        %v5949 = vlaneseq
        %v5950 = vshrl.u32 %v5949, 7
        %v5951 = vsub.s32 %v5948, %v5950
        %v5952 = vrot.slane %v5945, %v5951
        %5953 = vrot.lane.b32.xlu0 %v5952, 16
        %v5954 = vpop.permute.xlu0 %5953
        %v5958 = vcombine.low %v5921, %v5930
        %v5960 = vunpack.c.l.s4 1983009808
        %v5961 = vunpack.c.0.s8 %v5960
        %v5962 = vlaneseq
        %v5963 = vshrl.u32 %v5962, 7
        %v5964 = vsub.s32 %v5961, %v5963
        %v5965 = vrot.slane %v5958, %v5964
        %5966 = vrot.lane.b32.xlu0 %v5965, 32
        %v5967 = vpop.permute.xlu0 %5966
        %v5971 = vcombine.low %v5922, %v5931
        %v5973 = vunpack.c.l.s4 1983009808
        %v5974 = vunpack.c.0.s8 %v5973
        %v5975 = vlaneseq
        %v5976 = vshrl.u32 %v5975, 7
        %v5977 = vsub.s32 %v5974, %v5976
        %v5978 = vrot.slane %v5971, %v5977
        %5979 = vrot.lane.b32.xlu0 %v5978, 48
        %v5980 = vpop.permute.xlu0 %5979
        %vm5982 = vcmask 130048
        %v5983 = vsel %vm5982, %v5941, %v5954
        %vm5984 = vcmask 261120
        %v5985 = vsel %vm5984, %v5983, %v5967
        %vm5986 = vcmask 392192
        %v5987 = vsel %vm5986, %v5985, %v5980
        %vm5988 = vcmask 519168
        %5989 = vst.msk [vmem:[%s271] sm:$0xf] %vm5988, %v5987
        %s5990 = sand.u32 %s181, 1
        %s5991 = scalar_lea.sflag [#allocation3], %s5990
        %s5992 = sand.u32 %s181, 1
        %s5993 = smul.addr %s5992, 4
        %s5994 = scalar_lea.vmem [#allocation2], %s5993
        // Predicated region
        $region49: #{tpu_custom_call.1} parent=47 // pred_check
          %p5995 = pneg %p191
        $region50: #{tpu_custom_call.1} parent=47 // pred_check_branch
          %5997 = sbr.rel (%p5995) target = $region52
        $region51: #{tpu_custom_call.1} parent=47 // pred_region
          %s5999 = ssub.s32 64, 64
          %6000 = vsyncadd %s5991, %s5999
          %s6001 = smul.addr %s21, 64
          %s6002 = scalar_lea.hbm %s7, %s6001
          %s6004 = sshll.u32 %s5994, 4
          %s6005 = int_to_ptr.vmem [resolvable:$true] %s6004
          %6007 = dma.vmem_to_hbm [thread:$0]  %s6005, 64, %s6002, %s5991
        $region52: #{tpu_custom_call.1} parent=47 // pred_fallthru
          _
      $region48: #{tpu_custom_call.1} parent=5 // pred_fallthru
        _
      %p6008 = scmp.le.s32.totalorder 2, %s16
      // Predicated region
      $region53: #{tpu_custom_call.1} parent=5 // pred_check
        %p6009 = pneg %p6008
      $region54: #{tpu_custom_call.1} parent=5 // pred_check_branch
        %6011 = sbr.rel (%p6009) target = $region56
      $region55: #{tpu_custom_call.1} parent=5 // pred_region
        %s6012 = ssub.s32 %s16, 2
        // Predicated region
        $region57: #{tpu_custom_call.1} parent=55 // pred_check
          %p6013 = pneg %p197
        $region58: #{tpu_custom_call.1} parent=55 // pred_check_branch
          %6015 = sbr.rel (%p6013) target = $region60
        $region59: #{tpu_custom_call.1} parent=55 // pred_region
          %s6016 = sand.u32 %s182, 1
          %s6017 = scalar_lea.sflag [#allocation3], %s6016
          %s6018 = sand.u32 %s182, 1
          %s6019 = smul.addr %s6018, 4
          %s6020 = scalar_lea.vmem [#allocation2], %s6019
          %6021 = dma.done %s6017, 64
        $region60: #{tpu_custom_call.1} parent=55 // pred_fallthru
          _
      $region56: #{tpu_custom_call.1} parent=5 // pred_fallthru
        _
    $region6: #{tpu_custom_call.1} parent=1 // loop_footer
      %s20 = sadd.s32 1, %s16
    $region7: #{tpu_custom_call.1} parent=1 // loop_footer_branch
      %15 = sbr.rel target = $region3
    $region8: #{tpu_custom_call.1} parent=1 // loop_exit
      _
    %6022 = vsyncpa [#allocation3], 1
    %s6023 = scalar_lea.sflag [#allocation3], 1
    %6024 = vsyncpa %s6023, 1

</llo_original>
